<compile_context>
chip_gen: v7x
topology: tpu7x:2x2x1
jax: 0.10.0
libtpu: 0.0.40
codegen_flags: <defaults>
</compile_context>

<pallas_src>
import functools

import jax
import jax.numpy as jnp
from jax.experimental import pallas as pl
from jax.experimental.pallas import tpu as pltpu

V_IN = 881            # input sequence length (derived from the 776-dim flatten)
L_C1 = V_IN - 2       # 879 : Conv1d(1,1,3) output length
L_U1 = L_C1 - 2       # 877 : window max at every position (pre pool-1 selection)
L_P1 = L_C1 // 3      # 293 : MaxPool1d(3) output length
L_C2 = L_P1 - 2       # 291 : Conv1d(1,8,3) output length
L_U2 = L_C2 - 2       # 289 : window max at every position (pre pool-2 selection)
L_P2 = L_C2 // 3      # 97  : MaxPool1d(3) output length
C2 = 8                # conv2 output channels
FLAT = C2 * L_P2      # 776


def _fused_kernel(x_ref, w1_ref, b1_ref, w2_ref, b2_ref, s1_ref, w1e_ref,
                  bl1_ref, wl2_ref, bl2_ref, wl3_ref, bl3_ref,
                  o_ref, z1_s, p1_s, p1sh_s, r2_s):
    """Whole forward pass for one (TILE_B, 881) batch tile.

    x_ref    (TILE_B, 881) VMEM    raw input tile
    w1_ref   (1, 3)  SMEM          conv1 weight,  b1_ref (1,1) SMEM conv1 bias
    w2_ref   (8, 3)  SMEM          conv2 weights, b2_ref (1,8) SMEM conv2 bias
    s1_ref   (877, 293) VMEM       exact 0/1 stride-3 selection for pool-1
    w1e_ref  (8, 289, 32) VMEM     Linear(776,32) weight with pool-2 selection +
                                   channel flatten folded in (zero rows between)
    bl1/wl2/bl2/wl3/bl3            remaining dense-layer params (VMEM resident)
    o_ref    (TILE_B, 2)  VMEM     logits
    z1_s     (TILE_B, 879) VMEM    conv1 + ReLU output (scratch)
    p1_s     (TILE_B, 293) VMEM    pooled p1 (scratch)
    p1sh_s   (3, TILE_B, 291) VMEM the 3 shifted views of p1 (hoisted out of the
                                   channel loop -> aligned in-loop loads)
    r2_s     (TILE_B, 291) VMEM    per-channel conv2 + ReLU output (scratch)
    """
    # ---- Conv1d(1,1,3) + ReLU at every position (length 879) ----------------
    w10 = w1_ref[0, 0]
    w11 = w1_ref[0, 1]
    w12 = w1_ref[0, 2]
    z1 = (w10 * x_ref[:, pl.ds(0, L_C1)]
          + w11 * x_ref[:, pl.ds(1, L_C1)]
          + w12 * x_ref[:, pl.ds(2, L_C1)]
          + b1_ref[0, 0])
    z1_s[...] = jnp.maximum(z1, 0.0)

    # ---- MaxPool1d(3): shift-max over scratch slices, then exact stride-3
    #      selection as a matmul on the MXU (no strided memory access). -------
    u1 = jnp.maximum(jnp.maximum(z1_s[:, pl.ds(0, L_U1)],
                                 z1_s[:, pl.ds(1, L_U1)]),
                     z1_s[:, pl.ds(2, L_U1)])
    p1_s[...] = jnp.dot(u1, s1_ref[...], preferred_element_type=jnp.float32)

    # Materialize the three shifted views of p1 once (pays the lane rotation a
    # single time instead of once per conv2 channel).
    for k in range(3):
        p1sh_s[k] = p1_s[:, pl.ds(k, L_C2)]

    # ---- Conv1d(1,8,3) + ReLU + MaxPool1d(3) + flatten + Linear(776,32) ------
    acc = None
    for c in range(C2):
        # hoist the scalar reads (one broadcast each per channel)
        wc0 = w2_ref[c, 0]
        wc1 = w2_ref[c, 1]
        wc2 = w2_ref[c, 2]
        bc = b2_ref[0, c]
        v2 = wc0 * p1sh_s[0] + wc1 * p1sh_s[1] + wc2 * p1sh_s[2] + bc
        r2_s[...] = jnp.maximum(v2, 0.0)
        u2 = jnp.maximum(jnp.maximum(r2_s[:, pl.ds(0, L_U2)],
                                     r2_s[:, pl.ds(1, L_U2)]),
                         r2_s[:, pl.ds(2, L_U2)])
        # stride-3 pool selection + flatten are folded into w1e_ref[c] (exact 0/1).
        contrib = jnp.dot(u2, w1e_ref[c], preferred_element_type=jnp.float32)
        acc = contrib if acc is None else acc + contrib

    # ---- small MLP head ------------------------------------------------------
    h1 = jnp.maximum(acc + bl1_ref[...], 0.0)                                   # (B, 32)
    h2 = jnp.maximum(
        jnp.dot(h1, wl2_ref[...], preferred_element_type=jnp.float32)
        + bl2_ref[...], 0.0)                                                    # (B, 8)
    o_ref[...] = (jnp.dot(h2, wl3_ref[...], preferred_element_type=jnp.float32)
                  + bl3_ref[...])                                               # (B, 2)


def _round_up(n, m):
    return ((n + m - 1) // m) * m


def _selection_matrix():
    # S1[3*i, i] = 1  so that (u1 @ S1)[:, i] == u1[:, 3*i]  (exact).
    idx = jnp.arange(L_P1)
    return jnp.zeros((L_U1, L_P1), jnp.float32).at[3 * idx, idx].set(1.0)


def _expand_linear1(W1):
    # W1 is (32, 776) with flat index c*97 + j.  Fold the stride-3 pool-2
    # selection into it:  W1e[c, 3*j, :] = W1.T[c*97 + j, :], zero elsewhere.
    w1r = W1.T.reshape(C2, L_P2, 32)                      # (8, 97, 32)
    return jnp.zeros((C2, L_U2, 32), jnp.float32).at[:, ::3, :].set(w1r)


def conv_classifier_forward(x, params, *, max_tile_b=256):
    (w1c, b1c, w2c, b2c, W1, b_l1, W2, b_l2, W3, b_l3) = params
    B, V = x.shape
    assert V == V_IN, f"expected input length {V_IN}, got {V}"

    # Batch tile: multiple of 8 sublanes; 256 fills the MXU M dimension on
    # v6e/v7x and is a multiple of 128 for v5e.  Small batches just round up to 8.
    tile_b = min(max_tile_b, _round_up(B, 8))
    b_pad = _round_up(B, tile_b)
    if b_pad != B:
        x = jnp.pad(x, ((0, b_pad - B), (0, 0)))

    s1 = _selection_matrix()                              # (877, 293)
    w1e = _expand_linear1(W1)                             # (8, 289, 32)

    smem = functools.partial(pl.BlockSpec, memory_space=pltpu.MemorySpace.SMEM)
    grid = (b_pad // tile_b,)

    out = pl.pallas_call(
        _fused_kernel,
        out_shape=jax.ShapeDtypeStruct((b_pad, 2), jnp.float32),
        grid=grid,
        in_specs=[
            pl.BlockSpec((tile_b, V_IN), lambda i: (i, 0)),        # x (streamed)
            smem((1, 3), lambda i: (0, 0)),                        # conv1 weight
            smem((1, 1), lambda i: (0, 0)),                        # conv1 bias
            smem((C2, 3), lambda i: (0, 0)),                       # conv2 weight
            smem((1, C2), lambda i: (0, 0)),                       # conv2 bias
            pl.BlockSpec((L_U1, L_P1), lambda i: (0, 0)),          # S1 (resident)
            pl.BlockSpec((C2, L_U2, 32), lambda i: (0, 0, 0)),     # W1e (resident)
            pl.BlockSpec((1, 32), lambda i: (0, 0)),               # b_l1
            pl.BlockSpec((32, C2), lambda i: (0, 0)),              # W2^T
            pl.BlockSpec((1, C2), lambda i: (0, 0)),               # b_l2
            pl.BlockSpec((C2, 2), lambda i: (0, 0)),               # W3^T
            pl.BlockSpec((1, 2), lambda i: (0, 0)),                # b_l3
        ],
        out_specs=pl.BlockSpec((tile_b, 2), lambda i: (i, 0)),
        scratch_shapes=[
            pltpu.VMEM((tile_b, L_C1), jnp.float32),       # conv1 + ReLU output
            pltpu.VMEM((tile_b, L_P1), jnp.float32),       # pooled p1
            pltpu.VMEM((3, tile_b, L_C2), jnp.float32),    # shifted p1 views
            pltpu.VMEM((tile_b, L_C2), jnp.float32),       # per-channel conv2+ReLU
        ],
        compiler_params=pltpu.CompilerParams(
            dimension_semantics=("parallel",),
            vmem_limit_bytes=32 * 1024 * 1024),
    )(x, w1c.reshape(1, 3), b1c.reshape(1, 1), w2c.reshape(C2, 3),
      b2c.reshape(1, C2), s1, w1e, b_l1.reshape(1, 32), W2.T,
      b_l2.reshape(1, C2), W3.T, b_l3.reshape(1, 2))
    return out[:B]


def ref_forward(x, params):
    """Pure-JAX reference of the PyTorch forward."""
    (w1c, b1c, w2c, b2c, W1, b_l1, W2, b_l2, W3, b_l3) = params
    B = x.shape[0]
    w1 = w1c.reshape(3)
    y1 = w1[0] * x[:, 0:879] + w1[1] * x[:, 1:880] + w1[2] * x[:, 2:881] + b1c[0]
    y1 = jnp.maximum(y1, 0.0)
    p1 = jnp.max(y1.reshape(B, L_P1, 3), axis=-1)
    w2 = w2c.reshape(C2, 3)
    y2 = jnp.stack([w2[c, 0] * p1[:, 0:291] + w2[c, 1] * p1[:, 1:292]
                    + w2[c, 2] * p1[:, 2:293] + b2c[c] for c in range(C2)], axis=1)
    y2 = jnp.maximum(y2, 0.0)
    p2 = jnp.max(y2.reshape(B, C2, L_P2, 3), axis=-1)
    flat = p2.reshape(B, FLAT)
    h1 = jnp.maximum(flat @ W1.T + b_l1, 0.0)
    h2 = jnp.maximum(h1 @ W2.T + b_l2, 0.0)
    return h2 @ W3.T + b_l3


def init_params(key):
    ks = jax.random.split(key, 10)

    def u(k, shape, fan_in):
        bound = 1.0 / jnp.sqrt(jnp.float32(fan_in))
        return jax.random.uniform(k, shape, jnp.float32, -bound, bound)

    w1c = u(ks[0], (1, 1, 3), 3)        # Conv1d(1,1,3).weight
    b1c = u(ks[1], (1,), 3)             # Conv1d(1,1,3).bias
    w2c = u(ks[2], (8, 1, 3), 3)        # Conv1d(1,8,3).weight
    b2c = u(ks[3], (8,), 3)             # Conv1d(1,8,3).bias
    W1 = u(ks[4], (32, FLAT), FLAT)     # Linear(776,32).weight
    b_l1 = u(ks[5], (32,), FLAT)
    W2 = u(ks[6], (8, 32), 32)          # Linear(32,8).weight
    b_l2 = u(ks[7], (8,), 32)
    W3 = u(ks[8], (2, 8), 8)            # Linear(8,2).weight
    b_l3 = u(ks[9], (2,), 8)
    return (w1c, b1c, w2c, b2c, W1, b_l1, W2, b_l2, W3, b_l3)


# TODO(synk): optimisation_step (BCEWithLogitsLoss + Adam update) is training-only
# and not part of the forward pass; it is intentionally not implemented here.

if __name__ == "__main__":
    key = jax.random.PRNGKey(0)
    pkey, xkey = jax.random.split(key)
    params = init_params(pkey)
    x = jax.random.normal(xkey, (2, V_IN), jnp.float32)   # (batch=2, v=881)

    fwd = jax.jit(conv_classifier_forward)
    out = jax.block_until_ready(fwd(x, params))

    ref = ref_forward(x, params)
    assert out.shape == (2, 2)
    assert jnp.allclose(out, ref, rtol=1e-4, atol=1e-4), (out, ref)
    print("KERNEL_OK")
</pallas_src>

<mosaic_0001>
module attributes {stable_mosaic.version = 11 : i64} {
  func.func @_fused_kernel(%arg0: i32, %arg1: memref<8x881xf32, #tpu.memory_space<vmem>>, %arg2: memref<1x3xf32, #tpu.memory_space<smem>>, %arg3: memref<1x1xf32, #tpu.memory_space<smem>>, %arg4: memref<8x3xf32, #tpu.memory_space<smem>>, %arg5: memref<1x8xf32, #tpu.memory_space<smem>>, %arg6: memref<877x293xf32, #tpu.memory_space<vmem>>, %arg7: memref<8x289x32xf32, #tpu.memory_space<vmem>>, %arg8: memref<1x32xf32, #tpu.memory_space<vmem>>, %arg9: memref<32x8xf32, #tpu.memory_space<vmem>>, %arg10: memref<1x8xf32, #tpu.memory_space<vmem>>, %arg11: memref<8x2xf32, #tpu.memory_space<vmem>>, %arg12: memref<1x2xf32, #tpu.memory_space<vmem>>, %arg13: memref<8x2xf32, #tpu.memory_space<vmem>>, %arg14: memref<8x879xf32, #tpu.memory_space<vmem>>, %arg15: memref<8x293xf32, #tpu.memory_space<vmem>>, %arg16: memref<3x8x291xf32, #tpu.memory_space<vmem>>, %arg17: memref<8x291xf32, #tpu.memory_space<vmem>>) attributes {dimension_semantics = [#tpu.dimension_semantics<parallel>], iteration_bounds = array<i64: 1>, scalar_prefetch = 0 : i64, scratch_operands = 4 : i64, tpu.core_type = #tpu.core_type<tc>, window_params = [{transform_indices = @transform_0, window_bounds = array<i64: 8, 881>}, {transform_indices = @transform_1, window_bounds = array<i64: 1, 3>}, {transform_indices = @transform_2, window_bounds = array<i64: 1, 1>}, {transform_indices = @transform_3, window_bounds = array<i64: 8, 3>}, {transform_indices = @transform_4, window_bounds = array<i64: 1, 8>}, {pipeline_mode = #tpu.pipeline_mode<synchronous>, transform_indices = @transform_5, window_bounds = array<i64: 877, 293>}, {pipeline_mode = #tpu.pipeline_mode<synchronous>, transform_indices = @transform_6, window_bounds = array<i64: 8, 289, 32>}, {pipeline_mode = #tpu.pipeline_mode<synchronous>, transform_indices = @transform_7, window_bounds = array<i64: 1, 32>}, {pipeline_mode = #tpu.pipeline_mode<synchronous>, transform_indices = @transform_8, window_bounds = array<i64: 32, 8>}, {pipeline_mode = #tpu.pipeline_mode<synchronous>, transform_indices = @transform_9, window_bounds = array<i64: 1, 8>}, {pipeline_mode = #tpu.pipeline_mode<synchronous>, transform_indices = @transform_10, window_bounds = array<i64: 8, 2>}, {pipeline_mode = #tpu.pipeline_mode<synchronous>, transform_indices = @transform_11, window_bounds = array<i64: 1, 2>}, {transform_indices = @transform_12, window_bounds = array<i64: 8, 2>}]} {
    %c0 = arith.constant 0 : index
    %c0_0 = arith.constant 0 : index
    %0 = memref.load %arg2[%c0, %c0_0] : memref<1x3xf32, #tpu.memory_space<smem>>
    %c0_1 = arith.constant 0 : index
    %c1 = arith.constant 1 : index
    %1 = memref.load %arg2[%c0_1, %c1] : memref<1x3xf32, #tpu.memory_space<smem>>
    %c0_2 = arith.constant 0 : index
    %c2 = arith.constant 2 : index
    %2 = memref.load %arg2[%c0_2, %c2] : memref<1x3xf32, #tpu.memory_space<smem>>
    %c0_3 = arith.constant 0 : index
    %c0_4 = arith.constant 0 : index
    %3 = vector.load %arg1[%c0_3, %c0_4] : memref<8x881xf32, #tpu.memory_space<vmem>>, vector<8x879xf32>
    %4 = vector.broadcast %0 : f32 to vector<8x879xf32>
    %5 = arith.mulf %4, %3 : vector<8x879xf32>
    %c0_5 = arith.constant 0 : index
    %c1_6 = arith.constant 1 : index
    %6 = vector.load %arg1[%c0_5, %c1_6] : memref<8x881xf32, #tpu.memory_space<vmem>>, vector<8x879xf32>
    %7 = vector.broadcast %1 : f32 to vector<8x879xf32>
    %8 = arith.mulf %7, %6 : vector<8x879xf32>
    %9 = arith.addf %5, %8 : vector<8x879xf32>
    %c0_7 = arith.constant 0 : index
    %c2_8 = arith.constant 2 : index
    %10 = vector.load %arg1[%c0_7, %c2_8] : memref<8x881xf32, #tpu.memory_space<vmem>>, vector<8x879xf32>
    %11 = vector.broadcast %2 : f32 to vector<8x879xf32>
    %12 = arith.mulf %11, %10 : vector<8x879xf32>
    %13 = arith.addf %9, %12 : vector<8x879xf32>
    %c0_9 = arith.constant 0 : index
    %c0_10 = arith.constant 0 : index
    %14 = memref.load %arg3[%c0_9, %c0_10] : memref<1x1xf32, #tpu.memory_space<smem>>
    %15 = vector.broadcast %14 : f32 to vector<8x879xf32>
    %16 = arith.addf %13, %15 : vector<8x879xf32>
    %cst = arith.constant 0.000000e+00 : f32
    %17 = vector.broadcast %cst : f32 to vector<8x879xf32>
    %18 = arith.maximumf %16, %17 : vector<8x879xf32>
    %c0_11 = arith.constant 0 : index
    %c0_12 = arith.constant 0 : index
    %19 = vector.load %arg14[%c0_11, %c0_12] : memref<8x879xf32, #tpu.memory_space<vmem>>, vector<8x879xf32>
    tpu.vector_store %arg14[%c0_11, %c0_12], %18 {strides = array<i32>} : memref<8x879xf32, #tpu.memory_space<vmem>>, vector<8x879xf32>,
    %c0_13 = arith.constant 0 : index
    %c0_14 = arith.constant 0 : index
    %20 = vector.load %arg14[%c0_13, %c0_14] : memref<8x879xf32, #tpu.memory_space<vmem>>, vector<8x877xf32>
    %c0_15 = arith.constant 0 : index
    %c1_16 = arith.constant 1 : index
    %21 = vector.load %arg14[%c0_15, %c1_16] : memref<8x879xf32, #tpu.memory_space<vmem>>, vector<8x877xf32>
    %22 = arith.maximumf %20, %21 : vector<8x877xf32>
    %c0_17 = arith.constant 0 : index
    %c2_18 = arith.constant 2 : index
    %23 = vector.load %arg14[%c0_17, %c2_18] : memref<8x879xf32, #tpu.memory_space<vmem>>, vector<8x877xf32>
    %24 = arith.maximumf %22, %23 : vector<8x877xf32>
    %c0_19 = arith.constant 0 : index
    %c0_20 = arith.constant 0 : index
    %25 = vector.load %arg6[%c0_19, %c0_20] : memref<877x293xf32, #tpu.memory_space<vmem>>, vector<877x293xf32>
    %cst_21 = arith.constant dense<0.000000e+00> : vector<8x293xf32>
    %26 = tpu.matmul %24, %25, %cst_21 {dimension_numbers = #tpu.dot_dimension_numbers<[1], [0], [0], [1], [0, 0, 1, 1], [], []>} : vector<8x877xf32>, vector<877x293xf32>, vector<8x293xf32> -> vector<8x293xf32>
    %c0_22 = arith.constant 0 : index
    %c0_23 = arith.constant 0 : index
    %27 = vector.load %arg15[%c0_22, %c0_23] : memref<8x293xf32, #tpu.memory_space<vmem>>, vector<8x293xf32>
    tpu.vector_store %arg15[%c0_22, %c0_23], %26 {strides = array<i32>} : memref<8x293xf32, #tpu.memory_space<vmem>>, vector<8x293xf32>,
    %c0_24 = arith.constant 0 : index
    %c0_25 = arith.constant 0 : index
    %28 = vector.load %arg15[%c0_24, %c0_25] : memref<8x293xf32, #tpu.memory_space<vmem>>, vector<8x291xf32>
    %c0_26 = arith.constant 0 : index
    %c0_27 = arith.constant 0 : index
    %c0_28 = arith.constant 0 : index
    %29 = vector.load %arg16[%c0_26, %c0_27, %c0_28] : memref<3x8x291xf32, #tpu.memory_space<vmem>>, vector<1x8x291xf32>
    %30 = vector.shape_cast %29 : vector<1x8x291xf32> to vector<8x291xf32>
    %31 = vector.shape_cast %28 : vector<8x291xf32> to vector<1x8x291xf32>
    tpu.vector_store %arg16[%c0_26, %c0_27, %c0_28], %31 {strides = array<i32>} : memref<3x8x291xf32, #tpu.memory_space<vmem>>, vector<1x8x291xf32>,
    %c0_29 = arith.constant 0 : index
    %c1_30 = arith.constant 1 : index
    %32 = vector.load %arg15[%c0_29, %c1_30] : memref<8x293xf32, #tpu.memory_space<vmem>>, vector<8x291xf32>
    %c1_31 = arith.constant 1 : index
    %c0_32 = arith.constant 0 : index
    %c0_33 = arith.constant 0 : index
    %33 = vector.load %arg16[%c1_31, %c0_32, %c0_33] : memref<3x8x291xf32, #tpu.memory_space<vmem>>, vector<1x8x291xf32>
    %34 = vector.shape_cast %33 : vector<1x8x291xf32> to vector<8x291xf32>
    %35 = vector.shape_cast %32 : vector<8x291xf32> to vector<1x8x291xf32>
    tpu.vector_store %arg16[%c1_31, %c0_32, %c0_33], %35 {strides = array<i32>} : memref<3x8x291xf32, #tpu.memory_space<vmem>>, vector<1x8x291xf32>,
    %c0_34 = arith.constant 0 : index
    %c2_35 = arith.constant 2 : index
    %36 = vector.load %arg15[%c0_34, %c2_35] : memref<8x293xf32, #tpu.memory_space<vmem>>, vector<8x291xf32>
    %c2_36 = arith.constant 2 : index
    %c0_37 = arith.constant 0 : index
    %c0_38 = arith.constant 0 : index
    %37 = vector.load %arg16[%c2_36, %c0_37, %c0_38] : memref<3x8x291xf32, #tpu.memory_space<vmem>>, vector<1x8x291xf32>
    %38 = vector.shape_cast %37 : vector<1x8x291xf32> to vector<8x291xf32>
    %39 = vector.shape_cast %36 : vector<8x291xf32> to vector<1x8x291xf32>
    tpu.vector_store %arg16[%c2_36, %c0_37, %c0_38], %39 {strides = array<i32>} : memref<3x8x291xf32, #tpu.memory_space<vmem>>, vector<1x8x291xf32>,
    %c0_39 = arith.constant 0 : index
    %c0_40 = arith.constant 0 : index
    %40 = memref.load %arg4[%c0_39, %c0_40] : memref<8x3xf32, #tpu.memory_space<smem>>
    %c0_41 = arith.constant 0 : index
    %c1_42 = arith.constant 1 : index
    %41 = memref.load %arg4[%c0_41, %c1_42] : memref<8x3xf32, #tpu.memory_space<smem>>
    %c0_43 = arith.constant 0 : index
    %c2_44 = arith.constant 2 : index
    %42 = memref.load %arg4[%c0_43, %c2_44] : memref<8x3xf32, #tpu.memory_space<smem>>
    %c0_45 = arith.constant 0 : index
    %c0_46 = arith.constant 0 : index
    %43 = memref.load %arg5[%c0_45, %c0_46] : memref<1x8xf32, #tpu.memory_space<smem>>
    %c0_47 = arith.constant 0 : index
    %c0_48 = arith.constant 0 : index
    %c0_49 = arith.constant 0 : index
    %44 = vector.load %arg16[%c0_47, %c0_48, %c0_49] : memref<3x8x291xf32, #tpu.memory_space<vmem>>, vector<1x8x291xf32>
    %45 = vector.shape_cast %44 : vector<1x8x291xf32> to vector<8x291xf32>
    %46 = vector.broadcast %40 : f32 to vector<8x291xf32>
    %47 = arith.mulf %46, %45 : vector<8x291xf32>
    %c1_50 = arith.constant 1 : index
    %c0_51 = arith.constant 0 : index
    %c0_52 = arith.constant 0 : index
    %48 = vector.load %arg16[%c1_50, %c0_51, %c0_52] : memref<3x8x291xf32, #tpu.memory_space<vmem>>, vector<1x8x291xf32>
    %49 = vector.shape_cast %48 : vector<1x8x291xf32> to vector<8x291xf32>
    %50 = vector.broadcast %41 : f32 to vector<8x291xf32>
    %51 = arith.mulf %50, %49 : vector<8x291xf32>
    %52 = arith.addf %47, %51 : vector<8x291xf32>
    %c2_53 = arith.constant 2 : index
    %c0_54 = arith.constant 0 : index
    %c0_55 = arith.constant 0 : index
    %53 = vector.load %arg16[%c2_53, %c0_54, %c0_55] : memref<3x8x291xf32, #tpu.memory_space<vmem>>, vector<1x8x291xf32>
    %54 = vector.shape_cast %53 : vector<1x8x291xf32> to vector<8x291xf32>
    %55 = vector.broadcast %42 : f32 to vector<8x291xf32>
    %56 = arith.mulf %55, %54 : vector<8x291xf32>
    %57 = arith.addf %52, %56 : vector<8x291xf32>
    %58 = vector.broadcast %43 : f32 to vector<8x291xf32>
    %59 = arith.addf %57, %58 : vector<8x291xf32>
    %cst_56 = arith.constant 0.000000e+00 : f32
    %60 = vector.broadcast %cst_56 : f32 to vector<8x291xf32>
    %61 = arith.maximumf %59, %60 : vector<8x291xf32>
    %c0_57 = arith.constant 0 : index
    %c0_58 = arith.constant 0 : index
    %62 = vector.load %arg17[%c0_57, %c0_58] : memref<8x291xf32, #tpu.memory_space<vmem>>, vector<8x291xf32>
    tpu.vector_store %arg17[%c0_57, %c0_58], %61 {strides = array<i32>} : memref<8x291xf32, #tpu.memory_space<vmem>>, vector<8x291xf32>,
    %c0_59 = arith.constant 0 : index
    %c0_60 = arith.constant 0 : index
    %63 = vector.load %arg17[%c0_59, %c0_60] : memref<8x291xf32, #tpu.memory_space<vmem>>, vector<8x289xf32>
    %c0_61 = arith.constant 0 : index
    %c1_62 = arith.constant 1 : index
    %64 = vector.load %arg17[%c0_61, %c1_62] : memref<8x291xf32, #tpu.memory_space<vmem>>, vector<8x289xf32>
    %65 = arith.maximumf %63, %64 : vector<8x289xf32>
    %c0_63 = arith.constant 0 : index
    %c2_64 = arith.constant 2 : index
    %66 = vector.load %arg17[%c0_63, %c2_64] : memref<8x291xf32, #tpu.memory_space<vmem>>, vector<8x289xf32>
    %67 = arith.maximumf %65, %66 : vector<8x289xf32>
    %c0_65 = arith.constant 0 : index
    %c0_66 = arith.constant 0 : index
    %c0_67 = arith.constant 0 : index
    %68 = vector.load %arg7[%c0_65, %c0_66, %c0_67] : memref<8x289x32xf32, #tpu.memory_space<vmem>>, vector<1x289x32xf32>
    %69 = vector.shape_cast %68 : vector<1x289x32xf32> to vector<289x32xf32>
    %cst_68 = arith.constant dense<0.000000e+00> : vector<8x32xf32>
    %70 = tpu.matmul %67, %69, %cst_68 {dimension_numbers = #tpu.dot_dimension_numbers<[1], [0], [0], [1], [0, 0, 1, 1], [], []>} : vector<8x289xf32>, vector<289x32xf32>, vector<8x32xf32> -> vector<8x32xf32>
    %c1_69 = arith.constant 1 : index
    %c0_70 = arith.constant 0 : index
    %71 = memref.load %arg4[%c1_69, %c0_70] : memref<8x3xf32, #tpu.memory_space<smem>>
    %c1_71 = arith.constant 1 : index
    %c1_72 = arith.constant 1 : index
    %72 = memref.load %arg4[%c1_71, %c1_72] : memref<8x3xf32, #tpu.memory_space<smem>>
    %c1_73 = arith.constant 1 : index
    %c2_74 = arith.constant 2 : index
    %73 = memref.load %arg4[%c1_73, %c2_74] : memref<8x3xf32, #tpu.memory_space<smem>>
    %c0_75 = arith.constant 0 : index
    %c1_76 = arith.constant 1 : index
    %74 = memref.load %arg5[%c0_75, %c1_76] : memref<1x8xf32, #tpu.memory_space<smem>>
    %c0_77 = arith.constant 0 : index
    %c0_78 = arith.constant 0 : index
    %c0_79 = arith.constant 0 : index
    %75 = vector.load %arg16[%c0_77, %c0_78, %c0_79] : memref<3x8x291xf32, #tpu.memory_space<vmem>>, vector<1x8x291xf32>
    %76 = vector.shape_cast %75 : vector<1x8x291xf32> to vector<8x291xf32>
    %77 = vector.broadcast %71 : f32 to vector<8x291xf32>
    %78 = arith.mulf %77, %76 : vector<8x291xf32>
    %c1_80 = arith.constant 1 : index
    %c0_81 = arith.constant 0 : index
    %c0_82 = arith.constant 0 : index
    %79 = vector.load %arg16[%c1_80, %c0_81, %c0_82] : memref<3x8x291xf32, #tpu.memory_space<vmem>>, vector<1x8x291xf32>
    %80 = vector.shape_cast %79 : vector<1x8x291xf32> to vector<8x291xf32>
    %81 = vector.broadcast %72 : f32 to vector<8x291xf32>
    %82 = arith.mulf %81, %80 : vector<8x291xf32>
    %83 = arith.addf %78, %82 : vector<8x291xf32>
    %c2_83 = arith.constant 2 : index
    %c0_84 = arith.constant 0 : index
    %c0_85 = arith.constant 0 : index
    %84 = vector.load %arg16[%c2_83, %c0_84, %c0_85] : memref<3x8x291xf32, #tpu.memory_space<vmem>>, vector<1x8x291xf32>
    %85 = vector.shape_cast %84 : vector<1x8x291xf32> to vector<8x291xf32>
    %86 = vector.broadcast %73 : f32 to vector<8x291xf32>
    %87 = arith.mulf %86, %85 : vector<8x291xf32>
    %88 = arith.addf %83, %87 : vector<8x291xf32>
    %89 = vector.broadcast %74 : f32 to vector<8x291xf32>
    %90 = arith.addf %88, %89 : vector<8x291xf32>
    %cst_86 = arith.constant 0.000000e+00 : f32
    %91 = vector.broadcast %cst_86 : f32 to vector<8x291xf32>
    %92 = arith.maximumf %90, %91 : vector<8x291xf32>
    %c0_87 = arith.constant 0 : index
    %c0_88 = arith.constant 0 : index
    %93 = vector.load %arg17[%c0_87, %c0_88] : memref<8x291xf32, #tpu.memory_space<vmem>>, vector<8x291xf32>
    tpu.vector_store %arg17[%c0_87, %c0_88], %92 {strides = array<i32>} : memref<8x291xf32, #tpu.memory_space<vmem>>, vector<8x291xf32>,
    %c0_89 = arith.constant 0 : index
    %c0_90 = arith.constant 0 : index
    %94 = vector.load %arg17[%c0_89, %c0_90] : memref<8x291xf32, #tpu.memory_space<vmem>>, vector<8x289xf32>
    %c0_91 = arith.constant 0 : index
    %c1_92 = arith.constant 1 : index
    %95 = vector.load %arg17[%c0_91, %c1_92] : memref<8x291xf32, #tpu.memory_space<vmem>>, vector<8x289xf32>
    %96 = arith.maximumf %94, %95 : vector<8x289xf32>
    %c0_93 = arith.constant 0 : index
    %c2_94 = arith.constant 2 : index
    %97 = vector.load %arg17[%c0_93, %c2_94] : memref<8x291xf32, #tpu.memory_space<vmem>>, vector<8x289xf32>
    %98 = arith.maximumf %96, %97 : vector<8x289xf32>
    %c1_95 = arith.constant 1 : index
    %c0_96 = arith.constant 0 : index
    %c0_97 = arith.constant 0 : index
    %99 = vector.load %arg7[%c1_95, %c0_96, %c0_97] : memref<8x289x32xf32, #tpu.memory_space<vmem>>, vector<1x289x32xf32>
    %100 = vector.shape_cast %99 : vector<1x289x32xf32> to vector<289x32xf32>
    %cst_98 = arith.constant dense<0.000000e+00> : vector<8x32xf32>
    %101 = tpu.matmul %98, %100, %cst_98 {dimension_numbers = #tpu.dot_dimension_numbers<[1], [0], [0], [1], [0, 0, 1, 1], [], []>} : vector<8x289xf32>, vector<289x32xf32>, vector<8x32xf32> -> vector<8x32xf32>
    %102 = arith.addf %70, %101 : vector<8x32xf32>
    %c2_99 = arith.constant 2 : index
    %c0_100 = arith.constant 0 : index
    %103 = memref.load %arg4[%c2_99, %c0_100] : memref<8x3xf32, #tpu.memory_space<smem>>
    %c2_101 = arith.constant 2 : index
    %c1_102 = arith.constant 1 : index
    %104 = memref.load %arg4[%c2_101, %c1_102] : memref<8x3xf32, #tpu.memory_space<smem>>
    %c2_103 = arith.constant 2 : index
    %c2_104 = arith.constant 2 : index
    %105 = memref.load %arg4[%c2_103, %c2_104] : memref<8x3xf32, #tpu.memory_space<smem>>
    %c0_105 = arith.constant 0 : index
    %c2_106 = arith.constant 2 : index
    %106 = memref.load %arg5[%c0_105, %c2_106] : memref<1x8xf32, #tpu.memory_space<smem>>
    %c0_107 = arith.constant 0 : index
    %c0_108 = arith.constant 0 : index
    %c0_109 = arith.constant 0 : index
    %107 = vector.load %arg16[%c0_107, %c0_108, %c0_109] : memref<3x8x291xf32, #tpu.memory_space<vmem>>, vector<1x8x291xf32>
    %108 = vector.shape_cast %107 : vector<1x8x291xf32> to vector<8x291xf32>
    %109 = vector.broadcast %103 : f32 to vector<8x291xf32>
    %110 = arith.mulf %109, %108 : vector<8x291xf32>
    %c1_110 = arith.constant 1 : index
    %c0_111 = arith.constant 0 : index
    %c0_112 = arith.constant 0 : index
    %111 = vector.load %arg16[%c1_110, %c0_111, %c0_112] : memref<3x8x291xf32, #tpu.memory_space<vmem>>, vector<1x8x291xf32>
    %112 = vector.shape_cast %111 : vector<1x8x291xf32> to vector<8x291xf32>
    %113 = vector.broadcast %104 : f32 to vector<8x291xf32>
    %114 = arith.mulf %113, %112 : vector<8x291xf32>
    %115 = arith.addf %110, %114 : vector<8x291xf32>
    %c2_113 = arith.constant 2 : index
    %c0_114 = arith.constant 0 : index
    %c0_115 = arith.constant 0 : index
    %116 = vector.load %arg16[%c2_113, %c0_114, %c0_115] : memref<3x8x291xf32, #tpu.memory_space<vmem>>, vector<1x8x291xf32>
    %117 = vector.shape_cast %116 : vector<1x8x291xf32> to vector<8x291xf32>
    %118 = vector.broadcast %105 : f32 to vector<8x291xf32>
    %119 = arith.mulf %118, %117 : vector<8x291xf32>
    %120 = arith.addf %115, %119 : vector<8x291xf32>
    %121 = vector.broadcast %106 : f32 to vector<8x291xf32>
    %122 = arith.addf %120, %121 : vector<8x291xf32>
    %cst_116 = arith.constant 0.000000e+00 : f32
    %123 = vector.broadcast %cst_116 : f32 to vector<8x291xf32>
    %124 = arith.maximumf %122, %123 : vector<8x291xf32>
    %c0_117 = arith.constant 0 : index
    %c0_118 = arith.constant 0 : index
    %125 = vector.load %arg17[%c0_117, %c0_118] : memref<8x291xf32, #tpu.memory_space<vmem>>, vector<8x291xf32>
    tpu.vector_store %arg17[%c0_117, %c0_118], %124 {strides = array<i32>} : memref<8x291xf32, #tpu.memory_space<vmem>>, vector<8x291xf32>,
    %c0_119 = arith.constant 0 : index
    %c0_120 = arith.constant 0 : index
    %126 = vector.load %arg17[%c0_119, %c0_120] : memref<8x291xf32, #tpu.memory_space<vmem>>, vector<8x289xf32>
    %c0_121 = arith.constant 0 : index
    %c1_122 = arith.constant 1 : index
    %127 = vector.load %arg17[%c0_121, %c1_122] : memref<8x291xf32, #tpu.memory_space<vmem>>, vector<8x289xf32>
    %128 = arith.maximumf %126, %127 : vector<8x289xf32>
    %c0_123 = arith.constant 0 : index
    %c2_124 = arith.constant 2 : index
    %129 = vector.load %arg17[%c0_123, %c2_124] : memref<8x291xf32, #tpu.memory_space<vmem>>, vector<8x289xf32>
    %130 = arith.maximumf %128, %129 : vector<8x289xf32>
    %c2_125 = arith.constant 2 : index
    %c0_126 = arith.constant 0 : index
    %c0_127 = arith.constant 0 : index
    %131 = vector.load %arg7[%c2_125, %c0_126, %c0_127] : memref<8x289x32xf32, #tpu.memory_space<vmem>>, vector<1x289x32xf32>
    %132 = vector.shape_cast %131 : vector<1x289x32xf32> to vector<289x32xf32>
    %cst_128 = arith.constant dense<0.000000e+00> : vector<8x32xf32>
    %133 = tpu.matmul %130, %132, %cst_128 {dimension_numbers = #tpu.dot_dimension_numbers<[1], [0], [0], [1], [0, 0, 1, 1], [], []>} : vector<8x289xf32>, vector<289x32xf32>, vector<8x32xf32> -> vector<8x32xf32>
    %134 = arith.addf %102, %133 : vector<8x32xf32>
    %c3 = arith.constant 3 : index
    %c0_129 = arith.constant 0 : index
    %135 = memref.load %arg4[%c3, %c0_129] : memref<8x3xf32, #tpu.memory_space<smem>>
    %c3_130 = arith.constant 3 : index
    %c1_131 = arith.constant 1 : index
    %136 = memref.load %arg4[%c3_130, %c1_131] : memref<8x3xf32, #tpu.memory_space<smem>>
    %c3_132 = arith.constant 3 : index
    %c2_133 = arith.constant 2 : index
    %137 = memref.load %arg4[%c3_132, %c2_133] : memref<8x3xf32, #tpu.memory_space<smem>>
    %c0_134 = arith.constant 0 : index
    %c3_135 = arith.constant 3 : index
    %138 = memref.load %arg5[%c0_134, %c3_135] : memref<1x8xf32, #tpu.memory_space<smem>>
    %c0_136 = arith.constant 0 : index
    %c0_137 = arith.constant 0 : index
    %c0_138 = arith.constant 0 : index
    %139 = vector.load %arg16[%c0_136, %c0_137, %c0_138] : memref<3x8x291xf32, #tpu.memory_space<vmem>>, vector<1x8x291xf32>
    %140 = vector.shape_cast %139 : vector<1x8x291xf32> to vector<8x291xf32>
    %141 = vector.broadcast %135 : f32 to vector<8x291xf32>
    %142 = arith.mulf %141, %140 : vector<8x291xf32>
    %c1_139 = arith.constant 1 : index
    %c0_140 = arith.constant 0 : index
    %c0_141 = arith.constant 0 : index
    %143 = vector.load %arg16[%c1_139, %c0_140, %c0_141] : memref<3x8x291xf32, #tpu.memory_space<vmem>>, vector<1x8x291xf32>
    %144 = vector.shape_cast %143 : vector<1x8x291xf32> to vector<8x291xf32>
    %145 = vector.broadcast %136 : f32 to vector<8x291xf32>
    %146 = arith.mulf %145, %144 : vector<8x291xf32>
    %147 = arith.addf %142, %146 : vector<8x291xf32>
    %c2_142 = arith.constant 2 : index
    %c0_143 = arith.constant 0 : index
    %c0_144 = arith.constant 0 : index
    %148 = vector.load %arg16[%c2_142, %c0_143, %c0_144] : memref<3x8x291xf32, #tpu.memory_space<vmem>>, vector<1x8x291xf32>
    %149 = vector.shape_cast %148 : vector<1x8x291xf32> to vector<8x291xf32>
    %150 = vector.broadcast %137 : f32 to vector<8x291xf32>
    %151 = arith.mulf %150, %149 : vector<8x291xf32>
    %152 = arith.addf %147, %151 : vector<8x291xf32>
    %153 = vector.broadcast %138 : f32 to vector<8x291xf32>
    %154 = arith.addf %152, %153 : vector<8x291xf32>
    %cst_145 = arith.constant 0.000000e+00 : f32
    %155 = vector.broadcast %cst_145 : f32 to vector<8x291xf32>
    %156 = arith.maximumf %154, %155 : vector<8x291xf32>
    %c0_146 = arith.constant 0 : index
    %c0_147 = arith.constant 0 : index
    %157 = vector.load %arg17[%c0_146, %c0_147] : memref<8x291xf32, #tpu.memory_space<vmem>>, vector<8x291xf32>
    tpu.vector_store %arg17[%c0_146, %c0_147], %156 {strides = array<i32>} : memref<8x291xf32, #tpu.memory_space<vmem>>, vector<8x291xf32>,
    %c0_148 = arith.constant 0 : index
    %c0_149 = arith.constant 0 : index
    %158 = vector.load %arg17[%c0_148, %c0_149] : memref<8x291xf32, #tpu.memory_space<vmem>>, vector<8x289xf32>
    %c0_150 = arith.constant 0 : index
    %c1_151 = arith.constant 1 : index
    %159 = vector.load %arg17[%c0_150, %c1_151] : memref<8x291xf32, #tpu.memory_space<vmem>>, vector<8x289xf32>
    %160 = arith.maximumf %158, %159 : vector<8x289xf32>
    %c0_152 = arith.constant 0 : index
    %c2_153 = arith.constant 2 : index
    %161 = vector.load %arg17[%c0_152, %c2_153] : memref<8x291xf32, #tpu.memory_space<vmem>>, vector<8x289xf32>
    %162 = arith.maximumf %160, %161 : vector<8x289xf32>
    %c3_154 = arith.constant 3 : index
    %c0_155 = arith.constant 0 : index
    %c0_156 = arith.constant 0 : index
    %163 = vector.load %arg7[%c3_154, %c0_155, %c0_156] : memref<8x289x32xf32, #tpu.memory_space<vmem>>, vector<1x289x32xf32>
    %164 = vector.shape_cast %163 : vector<1x289x32xf32> to vector<289x32xf32>
    %cst_157 = arith.constant dense<0.000000e+00> : vector<8x32xf32>
    %165 = tpu.matmul %162, %164, %cst_157 {dimension_numbers = #tpu.dot_dimension_numbers<[1], [0], [0], [1], [0, 0, 1, 1], [], []>} : vector<8x289xf32>, vector<289x32xf32>, vector<8x32xf32> -> vector<8x32xf32>
    %166 = arith.addf %134, %165 : vector<8x32xf32>
    %c4 = arith.constant 4 : index
    %c0_158 = arith.constant 0 : index
    %167 = memref.load %arg4[%c4, %c0_158] : memref<8x3xf32, #tpu.memory_space<smem>>
    %c4_159 = arith.constant 4 : index
    %c1_160 = arith.constant 1 : index
    %168 = memref.load %arg4[%c4_159, %c1_160] : memref<8x3xf32, #tpu.memory_space<smem>>
    %c4_161 = arith.constant 4 : index
    %c2_162 = arith.constant 2 : index
    %169 = memref.load %arg4[%c4_161, %c2_162] : memref<8x3xf32, #tpu.memory_space<smem>>
    %c0_163 = arith.constant 0 : index
    %c4_164 = arith.constant 4 : index
    %170 = memref.load %arg5[%c0_163, %c4_164] : memref<1x8xf32, #tpu.memory_space<smem>>
    %c0_165 = arith.constant 0 : index
    %c0_166 = arith.constant 0 : index
    %c0_167 = arith.constant 0 : index
    %171 = vector.load %arg16[%c0_165, %c0_166, %c0_167] : memref<3x8x291xf32, #tpu.memory_space<vmem>>, vector<1x8x291xf32>
    %172 = vector.shape_cast %171 : vector<1x8x291xf32> to vector<8x291xf32>
    %173 = vector.broadcast %167 : f32 to vector<8x291xf32>
    %174 = arith.mulf %173, %172 : vector<8x291xf32>
    %c1_168 = arith.constant 1 : index
    %c0_169 = arith.constant 0 : index
    %c0_170 = arith.constant 0 : index
    %175 = vector.load %arg16[%c1_168, %c0_169, %c0_170] : memref<3x8x291xf32, #tpu.memory_space<vmem>>, vector<1x8x291xf32>
    %176 = vector.shape_cast %175 : vector<1x8x291xf32> to vector<8x291xf32>
    %177 = vector.broadcast %168 : f32 to vector<8x291xf32>
    %178 = arith.mulf %177, %176 : vector<8x291xf32>
    %179 = arith.addf %174, %178 : vector<8x291xf32>
    %c2_171 = arith.constant 2 : index
    %c0_172 = arith.constant 0 : index
    %c0_173 = arith.constant 0 : index
    %180 = vector.load %arg16[%c2_171, %c0_172, %c0_173] : memref<3x8x291xf32, #tpu.memory_space<vmem>>, vector<1x8x291xf32>
    %181 = vector.shape_cast %180 : vector<1x8x291xf32> to vector<8x291xf32>
    %182 = vector.broadcast %169 : f32 to vector<8x291xf32>
    %183 = arith.mulf %182, %181 : vector<8x291xf32>
    %184 = arith.addf %179, %183 : vector<8x291xf32>
    %185 = vector.broadcast %170 : f32 to vector<8x291xf32>
    %186 = arith.addf %184, %185 : vector<8x291xf32>
    %cst_174 = arith.constant 0.000000e+00 : f32
    %187 = vector.broadcast %cst_174 : f32 to vector<8x291xf32>
    %188 = arith.maximumf %186, %187 : vector<8x291xf32>
    %c0_175 = arith.constant 0 : index
    %c0_176 = arith.constant 0 : index
    %189 = vector.load %arg17[%c0_175, %c0_176] : memref<8x291xf32, #tpu.memory_space<vmem>>, vector<8x291xf32>
    tpu.vector_store %arg17[%c0_175, %c0_176], %188 {strides = array<i32>} : memref<8x291xf32, #tpu.memory_space<vmem>>, vector<8x291xf32>,
    %c0_177 = arith.constant 0 : index
    %c0_178 = arith.constant 0 : index
    %190 = vector.load %arg17[%c0_177, %c0_178] : memref<8x291xf32, #tpu.memory_space<vmem>>, vector<8x289xf32>
    %c0_179 = arith.constant 0 : index
    %c1_180 = arith.constant 1 : index
    %191 = vector.load %arg17[%c0_179, %c1_180] : memref<8x291xf32, #tpu.memory_space<vmem>>, vector<8x289xf32>
    %192 = arith.maximumf %190, %191 : vector<8x289xf32>
    %c0_181 = arith.constant 0 : index
    %c2_182 = arith.constant 2 : index
    %193 = vector.load %arg17[%c0_181, %c2_182] : memref<8x291xf32, #tpu.memory_space<vmem>>, vector<8x289xf32>
    %194 = arith.maximumf %192, %193 : vector<8x289xf32>
    %c4_183 = arith.constant 4 : index
    %c0_184 = arith.constant 0 : index
    %c0_185 = arith.constant 0 : index
    %195 = vector.load %arg7[%c4_183, %c0_184, %c0_185] : memref<8x289x32xf32, #tpu.memory_space<vmem>>, vector<1x289x32xf32>
    %196 = vector.shape_cast %195 : vector<1x289x32xf32> to vector<289x32xf32>
    %cst_186 = arith.constant dense<0.000000e+00> : vector<8x32xf32>
    %197 = tpu.matmul %194, %196, %cst_186 {dimension_numbers = #tpu.dot_dimension_numbers<[1], [0], [0], [1], [0, 0, 1, 1], [], []>} : vector<8x289xf32>, vector<289x32xf32>, vector<8x32xf32> -> vector<8x32xf32>
    %198 = arith.addf %166, %197 : vector<8x32xf32>
    %c5 = arith.constant 5 : index
    %c0_187 = arith.constant 0 : index
    %199 = memref.load %arg4[%c5, %c0_187] : memref<8x3xf32, #tpu.memory_space<smem>>
    %c5_188 = arith.constant 5 : index
    %c1_189 = arith.constant 1 : index
    %200 = memref.load %arg4[%c5_188, %c1_189] : memref<8x3xf32, #tpu.memory_space<smem>>
    %c5_190 = arith.constant 5 : index
    %c2_191 = arith.constant 2 : index
    %201 = memref.load %arg4[%c5_190, %c2_191] : memref<8x3xf32, #tpu.memory_space<smem>>
    %c0_192 = arith.constant 0 : index
    %c5_193 = arith.constant 5 : index
    %202 = memref.load %arg5[%c0_192, %c5_193] : memref<1x8xf32, #tpu.memory_space<smem>>
    %c0_194 = arith.constant 0 : index
    %c0_195 = arith.constant 0 : index
    %c0_196 = arith.constant 0 : index
    %203 = vector.load %arg16[%c0_194, %c0_195, %c0_196] : memref<3x8x291xf32, #tpu.memory_space<vmem>>, vector<1x8x291xf32>
    %204 = vector.shape_cast %203 : vector<1x8x291xf32> to vector<8x291xf32>
    %205 = vector.broadcast %199 : f32 to vector<8x291xf32>
    %206 = arith.mulf %205, %204 : vector<8x291xf32>
    %c1_197 = arith.constant 1 : index
    %c0_198 = arith.constant 0 : index
    %c0_199 = arith.constant 0 : index
    %207 = vector.load %arg16[%c1_197, %c0_198, %c0_199] : memref<3x8x291xf32, #tpu.memory_space<vmem>>, vector<1x8x291xf32>
    %208 = vector.shape_cast %207 : vector<1x8x291xf32> to vector<8x291xf32>
    %209 = vector.broadcast %200 : f32 to vector<8x291xf32>
    %210 = arith.mulf %209, %208 : vector<8x291xf32>
    %211 = arith.addf %206, %210 : vector<8x291xf32>
    %c2_200 = arith.constant 2 : index
    %c0_201 = arith.constant 0 : index
    %c0_202 = arith.constant 0 : index
    %212 = vector.load %arg16[%c2_200, %c0_201, %c0_202] : memref<3x8x291xf32, #tpu.memory_space<vmem>>, vector<1x8x291xf32>
    %213 = vector.shape_cast %212 : vector<1x8x291xf32> to vector<8x291xf32>
    %214 = vector.broadcast %201 : f32 to vector<8x291xf32>
    %215 = arith.mulf %214, %213 : vector<8x291xf32>
    %216 = arith.addf %211, %215 : vector<8x291xf32>
    %217 = vector.broadcast %202 : f32 to vector<8x291xf32>
    %218 = arith.addf %216, %217 : vector<8x291xf32>
    %cst_203 = arith.constant 0.000000e+00 : f32
    %219 = vector.broadcast %cst_203 : f32 to vector<8x291xf32>
    %220 = arith.maximumf %218, %219 : vector<8x291xf32>
    %c0_204 = arith.constant 0 : index
    %c0_205 = arith.constant 0 : index
    %221 = vector.load %arg17[%c0_204, %c0_205] : memref<8x291xf32, #tpu.memory_space<vmem>>, vector<8x291xf32>
    tpu.vector_store %arg17[%c0_204, %c0_205], %220 {strides = array<i32>} : memref<8x291xf32, #tpu.memory_space<vmem>>, vector<8x291xf32>,
    %c0_206 = arith.constant 0 : index
    %c0_207 = arith.constant 0 : index
    %222 = vector.load %arg17[%c0_206, %c0_207] : memref<8x291xf32, #tpu.memory_space<vmem>>, vector<8x289xf32>
    %c0_208 = arith.constant 0 : index
    %c1_209 = arith.constant 1 : index
    %223 = vector.load %arg17[%c0_208, %c1_209] : memref<8x291xf32, #tpu.memory_space<vmem>>, vector<8x289xf32>
    %224 = arith.maximumf %222, %223 : vector<8x289xf32>
    %c0_210 = arith.constant 0 : index
    %c2_211 = arith.constant 2 : index
    %225 = vector.load %arg17[%c0_210, %c2_211] : memref<8x291xf32, #tpu.memory_space<vmem>>, vector<8x289xf32>
    %226 = arith.maximumf %224, %225 : vector<8x289xf32>
    %c5_212 = arith.constant 5 : index
    %c0_213 = arith.constant 0 : index
    %c0_214 = arith.constant 0 : index
    %227 = vector.load %arg7[%c5_212, %c0_213, %c0_214] : memref<8x289x32xf32, #tpu.memory_space<vmem>>, vector<1x289x32xf32>
    %228 = vector.shape_cast %227 : vector<1x289x32xf32> to vector<289x32xf32>
    %cst_215 = arith.constant dense<0.000000e+00> : vector<8x32xf32>
    %229 = tpu.matmul %226, %228, %cst_215 {dimension_numbers = #tpu.dot_dimension_numbers<[1], [0], [0], [1], [0, 0, 1, 1], [], []>} : vector<8x289xf32>, vector<289x32xf32>, vector<8x32xf32> -> vector<8x32xf32>
    %230 = arith.addf %198, %229 : vector<8x32xf32>
    %c6 = arith.constant 6 : index
    %c0_216 = arith.constant 0 : index
    %231 = memref.load %arg4[%c6, %c0_216] : memref<8x3xf32, #tpu.memory_space<smem>>
    %c6_217 = arith.constant 6 : index
    %c1_218 = arith.constant 1 : index
    %232 = memref.load %arg4[%c6_217, %c1_218] : memref<8x3xf32, #tpu.memory_space<smem>>
    %c6_219 = arith.constant 6 : index
    %c2_220 = arith.constant 2 : index
    %233 = memref.load %arg4[%c6_219, %c2_220] : memref<8x3xf32, #tpu.memory_space<smem>>
    %c0_221 = arith.constant 0 : index
    %c6_222 = arith.constant 6 : index
    %234 = memref.load %arg5[%c0_221, %c6_222] : memref<1x8xf32, #tpu.memory_space<smem>>
    %c0_223 = arith.constant 0 : index
    %c0_224 = arith.constant 0 : index
    %c0_225 = arith.constant 0 : index
    %235 = vector.load %arg16[%c0_223, %c0_224, %c0_225] : memref<3x8x291xf32, #tpu.memory_space<vmem>>, vector<1x8x291xf32>
    %236 = vector.shape_cast %235 : vector<1x8x291xf32> to vector<8x291xf32>
    %237 = vector.broadcast %231 : f32 to vector<8x291xf32>
    %238 = arith.mulf %237, %236 : vector<8x291xf32>
    %c1_226 = arith.constant 1 : index
    %c0_227 = arith.constant 0 : index
    %c0_228 = arith.constant 0 : index
    %239 = vector.load %arg16[%c1_226, %c0_227, %c0_228] : memref<3x8x291xf32, #tpu.memory_space<vmem>>, vector<1x8x291xf32>
    %240 = vector.shape_cast %239 : vector<1x8x291xf32> to vector<8x291xf32>
    %241 = vector.broadcast %232 : f32 to vector<8x291xf32>
    %242 = arith.mulf %241, %240 : vector<8x291xf32>
    %243 = arith.addf %238, %242 : vector<8x291xf32>
    %c2_229 = arith.constant 2 : index
    %c0_230 = arith.constant 0 : index
    %c0_231 = arith.constant 0 : index
    %244 = vector.load %arg16[%c2_229, %c0_230, %c0_231] : memref<3x8x291xf32, #tpu.memory_space<vmem>>, vector<1x8x291xf32>
    %245 = vector.shape_cast %244 : vector<1x8x291xf32> to vector<8x291xf32>
    %246 = vector.broadcast %233 : f32 to vector<8x291xf32>
    %247 = arith.mulf %246, %245 : vector<8x291xf32>
    %248 = arith.addf %243, %247 : vector<8x291xf32>
    %249 = vector.broadcast %234 : f32 to vector<8x291xf32>
    %250 = arith.addf %248, %249 : vector<8x291xf32>
    %cst_232 = arith.constant 0.000000e+00 : f32
    %251 = vector.broadcast %cst_232 : f32 to vector<8x291xf32>
    %252 = arith.maximumf %250, %251 : vector<8x291xf32>
    %c0_233 = arith.constant 0 : index
    %c0_234 = arith.constant 0 : index
    %253 = vector.load %arg17[%c0_233, %c0_234] : memref<8x291xf32, #tpu.memory_space<vmem>>, vector<8x291xf32>
    tpu.vector_store %arg17[%c0_233, %c0_234], %252 {strides = array<i32>} : memref<8x291xf32, #tpu.memory_space<vmem>>, vector<8x291xf32>,
    %c0_235 = arith.constant 0 : index
    %c0_236 = arith.constant 0 : index
    %254 = vector.load %arg17[%c0_235, %c0_236] : memref<8x291xf32, #tpu.memory_space<vmem>>, vector<8x289xf32>
    %c0_237 = arith.constant 0 : index
    %c1_238 = arith.constant 1 : index
    %255 = vector.load %arg17[%c0_237, %c1_238] : memref<8x291xf32, #tpu.memory_space<vmem>>, vector<8x289xf32>
    %256 = arith.maximumf %254, %255 : vector<8x289xf32>
    %c0_239 = arith.constant 0 : index
    %c2_240 = arith.constant 2 : index
    %257 = vector.load %arg17[%c0_239, %c2_240] : memref<8x291xf32, #tpu.memory_space<vmem>>, vector<8x289xf32>
    %258 = arith.maximumf %256, %257 : vector<8x289xf32>
    %c6_241 = arith.constant 6 : index
    %c0_242 = arith.constant 0 : index
    %c0_243 = arith.constant 0 : index
    %259 = vector.load %arg7[%c6_241, %c0_242, %c0_243] : memref<8x289x32xf32, #tpu.memory_space<vmem>>, vector<1x289x32xf32>
    %260 = vector.shape_cast %259 : vector<1x289x32xf32> to vector<289x32xf32>
    %cst_244 = arith.constant dense<0.000000e+00> : vector<8x32xf32>
    %261 = tpu.matmul %258, %260, %cst_244 {dimension_numbers = #tpu.dot_dimension_numbers<[1], [0], [0], [1], [0, 0, 1, 1], [], []>} : vector<8x289xf32>, vector<289x32xf32>, vector<8x32xf32> -> vector<8x32xf32>
    %262 = arith.addf %230, %261 : vector<8x32xf32>
    %c7 = arith.constant 7 : index
    %c0_245 = arith.constant 0 : index
    %263 = memref.load %arg4[%c7, %c0_245] : memref<8x3xf32, #tpu.memory_space<smem>>
    %c7_246 = arith.constant 7 : index
    %c1_247 = arith.constant 1 : index
    %264 = memref.load %arg4[%c7_246, %c1_247] : memref<8x3xf32, #tpu.memory_space<smem>>
    %c7_248 = arith.constant 7 : index
    %c2_249 = arith.constant 2 : index
    %265 = memref.load %arg4[%c7_248, %c2_249] : memref<8x3xf32, #tpu.memory_space<smem>>
    %c0_250 = arith.constant 0 : index
    %c7_251 = arith.constant 7 : index
    %266 = memref.load %arg5[%c0_250, %c7_251] : memref<1x8xf32, #tpu.memory_space<smem>>
    %c0_252 = arith.constant 0 : index
    %c0_253 = arith.constant 0 : index
    %c0_254 = arith.constant 0 : index
    %267 = vector.load %arg16[%c0_252, %c0_253, %c0_254] : memref<3x8x291xf32, #tpu.memory_space<vmem>>, vector<1x8x291xf32>
    %268 = vector.shape_cast %267 : vector<1x8x291xf32> to vector<8x291xf32>
    %269 = vector.broadcast %263 : f32 to vector<8x291xf32>
    %270 = arith.mulf %269, %268 : vector<8x291xf32>
    %c1_255 = arith.constant 1 : index
    %c0_256 = arith.constant 0 : index
    %c0_257 = arith.constant 0 : index
    %271 = vector.load %arg16[%c1_255, %c0_256, %c0_257] : memref<3x8x291xf32, #tpu.memory_space<vmem>>, vector<1x8x291xf32>
    %272 = vector.shape_cast %271 : vector<1x8x291xf32> to vector<8x291xf32>
    %273 = vector.broadcast %264 : f32 to vector<8x291xf32>
    %274 = arith.mulf %273, %272 : vector<8x291xf32>
    %275 = arith.addf %270, %274 : vector<8x291xf32>
    %c2_258 = arith.constant 2 : index
    %c0_259 = arith.constant 0 : index
    %c0_260 = arith.constant 0 : index
    %276 = vector.load %arg16[%c2_258, %c0_259, %c0_260] : memref<3x8x291xf32, #tpu.memory_space<vmem>>, vector<1x8x291xf32>
    %277 = vector.shape_cast %276 : vector<1x8x291xf32> to vector<8x291xf32>
    %278 = vector.broadcast %265 : f32 to vector<8x291xf32>
    %279 = arith.mulf %278, %277 : vector<8x291xf32>
    %280 = arith.addf %275, %279 : vector<8x291xf32>
    %281 = vector.broadcast %266 : f32 to vector<8x291xf32>
    %282 = arith.addf %280, %281 : vector<8x291xf32>
    %cst_261 = arith.constant 0.000000e+00 : f32
    %283 = vector.broadcast %cst_261 : f32 to vector<8x291xf32>
    %284 = arith.maximumf %282, %283 : vector<8x291xf32>
    %c0_262 = arith.constant 0 : index
    %c0_263 = arith.constant 0 : index
    %285 = vector.load %arg17[%c0_262, %c0_263] : memref<8x291xf32, #tpu.memory_space<vmem>>, vector<8x291xf32>
    tpu.vector_store %arg17[%c0_262, %c0_263], %284 {strides = array<i32>} : memref<8x291xf32, #tpu.memory_space<vmem>>, vector<8x291xf32>,
    %c0_264 = arith.constant 0 : index
    %c0_265 = arith.constant 0 : index
    %286 = vector.load %arg17[%c0_264, %c0_265] : memref<8x291xf32, #tpu.memory_space<vmem>>, vector<8x289xf32>
    %c0_266 = arith.constant 0 : index
    %c1_267 = arith.constant 1 : index
    %287 = vector.load %arg17[%c0_266, %c1_267] : memref<8x291xf32, #tpu.memory_space<vmem>>, vector<8x289xf32>
    %288 = arith.maximumf %286, %287 : vector<8x289xf32>
    %c0_268 = arith.constant 0 : index
    %c2_269 = arith.constant 2 : index
    %289 = vector.load %arg17[%c0_268, %c2_269] : memref<8x291xf32, #tpu.memory_space<vmem>>, vector<8x289xf32>
    %290 = arith.maximumf %288, %289 : vector<8x289xf32>
    %c7_270 = arith.constant 7 : index
    %c0_271 = arith.constant 0 : index
    %c0_272 = arith.constant 0 : index
    %291 = vector.load %arg7[%c7_270, %c0_271, %c0_272] : memref<8x289x32xf32, #tpu.memory_space<vmem>>, vector<1x289x32xf32>
    %292 = vector.shape_cast %291 : vector<1x289x32xf32> to vector<289x32xf32>
    %cst_273 = arith.constant dense<0.000000e+00> : vector<8x32xf32>
    %293 = tpu.matmul %290, %292, %cst_273 {dimension_numbers = #tpu.dot_dimension_numbers<[1], [0], [0], [1], [0, 0, 1, 1], [], []>} : vector<8x289xf32>, vector<289x32xf32>, vector<8x32xf32> -> vector<8x32xf32>
    %294 = arith.addf %262, %293 : vector<8x32xf32>
    %c0_274 = arith.constant 0 : index
    %c0_275 = arith.constant 0 : index
    %295 = vector.load %arg8[%c0_274, %c0_275] : memref<1x32xf32, #tpu.memory_space<vmem>>, vector<1x32xf32>
    %296 = vector.broadcast %295 : vector<1x32xf32> to vector<8x32xf32>
    %297 = arith.addf %294, %296 : vector<8x32xf32>
    %cst_276 = arith.constant 0.000000e+00 : f32
    %298 = vector.broadcast %cst_276 : f32 to vector<8x32xf32>
    %299 = arith.maximumf %297, %298 : vector<8x32xf32>
    %c0_277 = arith.constant 0 : index
    %c0_278 = arith.constant 0 : index
    %300 = vector.load %arg9[%c0_277, %c0_278] : memref<32x8xf32, #tpu.memory_space<vmem>>, vector<32x8xf32>
    %cst_279 = arith.constant dense<0.000000e+00> : vector<8x8xf32>
    %301 = tpu.matmul %299, %300, %cst_279 {dimension_numbers = #tpu.dot_dimension_numbers<[1], [0], [0], [1], [0, 0, 1, 1], [], []>} : vector<8x32xf32>, vector<32x8xf32>, vector<8x8xf32> -> vector<8x8xf32>
    %c0_280 = arith.constant 0 : index
    %c0_281 = arith.constant 0 : index
    %302 = vector.load %arg10[%c0_280, %c0_281] : memref<1x8xf32, #tpu.memory_space<vmem>>, vector<1x8xf32>
    %303 = vector.broadcast %302 : vector<1x8xf32> to vector<8x8xf32>
    %304 = arith.addf %301, %303 : vector<8x8xf32>
    %cst_282 = arith.constant 0.000000e+00 : f32
    %305 = vector.broadcast %cst_282 : f32 to vector<8x8xf32>
    %306 = arith.maximumf %304, %305 : vector<8x8xf32>
    %c0_283 = arith.constant 0 : index
    %c0_284 = arith.constant 0 : index
    %307 = vector.load %arg11[%c0_283, %c0_284] : memref<8x2xf32, #tpu.memory_space<vmem>>, vector<8x2xf32>
    %cst_285 = arith.constant dense<0.000000e+00> : vector<8x2xf32>
    %308 = tpu.matmul %306, %307, %cst_285 {dimension_numbers = #tpu.dot_dimension_numbers<[1], [0], [0], [1], [0, 0, 1, 1], [], []>} : vector<8x8xf32>, vector<8x2xf32>, vector<8x2xf32> -> vector<8x2xf32>
    %c0_286 = arith.constant 0 : index
    %c0_287 = arith.constant 0 : index
    %309 = vector.load %arg12[%c0_286, %c0_287] : memref<1x2xf32, #tpu.memory_space<vmem>>, vector<1x2xf32>
    %310 = vector.broadcast %309 : vector<1x2xf32> to vector<8x2xf32>
    %311 = arith.addf %308, %310 : vector<8x2xf32>
    %c0_288 = arith.constant 0 : index
    %c0_289 = arith.constant 0 : index
    %312 = vector.load %arg13[%c0_288, %c0_289] : memref<8x2xf32, #tpu.memory_space<vmem>>, vector<8x2xf32>
    tpu.vector_store %arg13[%c0_288, %c0_289], %311 {strides = array<i32>} : memref<8x2xf32, #tpu.memory_space<vmem>>, vector<8x2xf32>,
    return
  }
  func.func @transform_0(%arg0: i32) -> (i32, i32) {
    %c0_i32 = arith.constant 0 : i32
    %c0_i32_0 = arith.constant 0 : i32
    return %arg0, %c0_i32 : i32, i32
  }
  func.func @transform_1(%arg0: i32) -> (i32, i32) {
    %c0_i32 = arith.constant 0 : i32
    %c0_i32_0 = arith.constant 0 : i32
    %c0_i32_1 = arith.constant 0 : i32
    return %c0_i32, %c0_i32_0 : i32, i32
  }
  func.func @transform_2(%arg0: i32) -> (i32, i32) {
    %c0_i32 = arith.constant 0 : i32
    %c0_i32_0 = arith.constant 0 : i32
    %c0_i32_1 = arith.constant 0 : i32
    return %c0_i32, %c0_i32_0 : i32, i32
  }
  func.func @transform_3(%arg0: i32) -> (i32, i32) {
    %c0_i32 = arith.constant 0 : i32
    %c0_i32_0 = arith.constant 0 : i32
    %c0_i32_1 = arith.constant 0 : i32
    return %c0_i32, %c0_i32_0 : i32, i32
  }
  func.func @transform_4(%arg0: i32) -> (i32, i32) {
    %c0_i32 = arith.constant 0 : i32
    %c0_i32_0 = arith.constant 0 : i32
    %c0_i32_1 = arith.constant 0 : i32
    return %c0_i32, %c0_i32_0 : i32, i32
  }
  func.func @transform_5(%arg0: i32) -> (i32, i32) {
    %c0_i32 = arith.constant 0 : i32
    %c0_i32_0 = arith.constant 0 : i32
    %c0_i32_1 = arith.constant 0 : i32
    return %c0_i32, %c0_i32_0 : i32, i32
  }
  func.func @transform_6(%arg0: i32) -> (i32, i32, i32) {
    %c0_i32 = arith.constant 0 : i32
    %c0_i32_0 = arith.constant 0 : i32
    %c0_i32_1 = arith.constant 0 : i32
    %c0_i32_2 = arith.constant 0 : i32
    return %c0_i32, %c0_i32_0, %c0_i32_1 : i32, i32, i32
  }
  func.func @transform_7(%arg0: i32) -> (i32, i32) {
    %c0_i32 = arith.constant 0 : i32
    %c0_i32_0 = arith.constant 0 : i32
    %c0_i32_1 = arith.constant 0 : i32
    return %c0_i32, %c0_i32_0 : i32, i32
  }
  func.func @transform_8(%arg0: i32) -> (i32, i32) {
    %c0_i32 = arith.constant 0 : i32
    %c0_i32_0 = arith.constant 0 : i32
    %c0_i32_1 = arith.constant 0 : i32
    return %c0_i32, %c0_i32_0 : i32, i32
  }
  func.func @transform_9(%arg0: i32) -> (i32, i32) {
    %c0_i32 = arith.constant 0 : i32
    %c0_i32_0 = arith.constant 0 : i32
    %c0_i32_1 = arith.constant 0 : i32
    return %c0_i32, %c0_i32_0 : i32, i32
  }
  func.func @transform_10(%arg0: i32) -> (i32, i32) {
    %c0_i32 = arith.constant 0 : i32
    %c0_i32_0 = arith.constant 0 : i32
    %c0_i32_1 = arith.constant 0 : i32
    return %c0_i32, %c0_i32_0 : i32, i32
  }
  func.func @transform_11(%arg0: i32) -> (i32, i32) {
    %c0_i32 = arith.constant 0 : i32
    %c0_i32_0 = arith.constant 0 : i32
    %c0_i32_1 = arith.constant 0 : i32
    return %c0_i32, %c0_i32_0 : i32, i32
  }
  func.func @transform_12(%arg0: i32) -> (i32, i32) {
    %c0_i32 = arith.constant 0 : i32
    %c0_i32_0 = arith.constant 0 : i32
    return %arg0, %c0_i32 : i32, i32
  }
}

</mosaic_0001>

<llo_original>
// kernel: conv_classifier_forward.1
$region0: #{conv_classifier_forward.1}
  #allocation0 [shape = 'u32[]', space=smem, size = 0x4, offset = 0x4, fixed_abs, tag = 'smem constant byte address 0x4 - core index']
  #allocation1 [shape = 'u32[144,128]{1,0:T(1,128)}', space=vmem, size = 0x12000, scoped, tag = 'internal scratch']
  #allocation2 [shape = 'f32[8,879]{1,0:T(8,128)}', space=vmem, size = 0x7000, scoped, tag = 'scratch operand']
  #allocation3 [shape = 'f32[8,293]{1,0:T(8,128)}', space=vmem, size = 0x3000, scoped, tag = 'scratch operand']
  #allocation4 [shape = 'f32[3,8,291]{2,1,0:T(8,128)}', space=vmem, size = 0x9000, scoped, tag = 'scratch operand']
  #allocation5 [shape = 'f32[8,291]{1,0:T(8,128)}', space=vmem, size = 0x3000, scoped, tag = 'scratch operand']
  #allocation6 [shape = 'f32[1,1]{1,0:T(1,128)S(6)}', space=smem, size = 0x200, scoped, tag = 'scoped memory for conv_classifier_forward.1']
  %s0 = inlined_call_operand.vmem [shape: f32[8,881], index: 0, kind: input, shape index: {}]
  %s1 = inlined_call_operand.vmem [shape: f32[1,3], index: 1, kind: input, shape index: {}]
  %s2 = inlined_call_operand.<no memory space> [shape: f32[1,1], index: 2, kind: input, shape index: {}]
  %s3 = inlined_call_operand.vmem [shape: f32[8,3], index: 3, kind: input, shape index: {}]
  %s4 = inlined_call_operand.vmem [shape: f32[1,8], index: 4, kind: input, shape index: {}]
  %s5 = inlined_call_operand.vmem [shape: f32[877,293], index: 5, kind: input, shape index: {}]
  %s6 = inlined_call_operand.vmem [shape: f32[8,289,32], index: 6, kind: input, shape index: {}]
  %s7 = inlined_call_operand.vmem [shape: f32[1,32], index: 7, kind: input, shape index: {}]
  %s8 = inlined_call_operand.vmem [shape: f32[32,8], index: 8, kind: input, shape index: {}]
  %s9 = inlined_call_operand.vmem [shape: f32[1,8], index: 9, kind: input, shape index: {}]
  %s10 = inlined_call_operand.vmem [shape: f32[8,2], index: 10, kind: input, shape index: {}]
  %s11 = inlined_call_operand.vmem [shape: f32[1,2], index: 11, kind: input, shape index: {}]
  %s12 = inlined_call_operand.vmem [shape: f32[8,2], index: 12, kind: output, shape index: {}]
  %s13 = sld [smem:[#allocation0]]
  $region70: #{conv_classifier_forward.1} parent=0
    _
  %s15 = ssub.s32 1, %s13
  %s16 = scalar_select 0, %s15, %s13
  %17 = sst [smem:[#allocation6]] %s2
  $region1: #{conv_classifier_forward.1} parent=0
    #allocation7 [shape = 'u8[512]{0}', space=smem, size = 0x200, scoped, tag = 'input window, operand 1, single buffered']
    #allocation8 [shape = 's32[1]{0}', space=sflag, size = 0x4, scoped, tag = 'scoped memory for conv_classifier_forward.1']
    #allocation9 [shape = 'u8[4096]{0}', space=smem, size = 0x1000, scoped, tag = 'input window, operand 3, single buffered']
    #allocation10 [shape = 's32[1]{0}', space=sflag, size = 0x4, scoped, tag = 'scoped memory for conv_classifier_forward.1']
    #allocation11 [shape = 'u8[512]{0}', space=smem, size = 0x200, scoped, tag = 'input window, operand 4, single buffered']
    %18 = vsyncpa [#allocation8], 0
    %19 = vsyncpa [#allocation10], 0
    // Predicated region
    $region2: #{conv_classifier_forward.1} parent=1 // pred_check
      _
    $region3: #{conv_classifier_forward.1} parent=1 // pred_check_branch
      %21 = sbr.rel (0) target = $region5
    $region4: #{conv_classifier_forward.1} parent=1 // pred_region
      _
    $region5: #{conv_classifier_forward.1} parent=1 // pred_fallthru
      _
    // Predicated region
    $region6: #{conv_classifier_forward.1} parent=1 // pred_check
      _
    $region7: #{conv_classifier_forward.1} parent=1 // pred_check_branch
      %23 = sbr.rel (0) target = $region9
    $region8: #{conv_classifier_forward.1} parent=1 // pred_region
      %s25 = ssub.s32 16, 16
      %26 = vsyncadd [#allocation8], %s25
      %s28 = sshll.u32 %s1, 4
      %s29 = int_to_ptr.vmem [resolvable:$true] %s28
      %31 = dma.vmem_to_smem %s29, 16, [#allocation7], [#allocation8]
    $region9: #{conv_classifier_forward.1} parent=1 // pred_fallthru
      _
    // Predicated region
    $region10: #{conv_classifier_forward.1} parent=1 // pred_check
      _
    $region11: #{conv_classifier_forward.1} parent=1 // pred_check_branch
      %33 = sbr.rel (0) target = $region13
    $region12: #{conv_classifier_forward.1} parent=1 // pred_region
      _
    $region13: #{conv_classifier_forward.1} parent=1 // pred_fallthru
      _
    // Predicated region
    $region14: #{conv_classifier_forward.1} parent=1 // pred_check
      _
    $region15: #{conv_classifier_forward.1} parent=1 // pred_check_branch
      %35 = sbr.rel (0) target = $region17
    $region16: #{conv_classifier_forward.1} parent=1 // pred_region
      %s37 = ssub.s32 128, 128
      %38 = vsyncadd [#allocation10], %s37
      %s40 = sshll.u32 %s3, 4
      %s41 = int_to_ptr.vmem [resolvable:$true] %s40
      %43 = dma.vmem_to_smem %s41, 128, [#allocation9], [#allocation10]
    $region17: #{conv_classifier_forward.1} parent=1 // pred_fallthru
      _
    // Predicated region
    $region18: #{conv_classifier_forward.1} parent=1 // pred_check
      _
    $region19: #{conv_classifier_forward.1} parent=1 // pred_check_branch
      %45 = sbr.rel (0) target = $region21
    $region20: #{conv_classifier_forward.1} parent=1 // pred_region
      %s47 = ssub.s32 16, 16
      %48 = vsyncadd [#allocation10], %s47
      %s50 = sshll.u32 %s4, 4
      %s51 = int_to_ptr.vmem [resolvable:$true] %s50
      %53 = dma.vmem_to_smem %s51, 16, [#allocation11], [#allocation10]
    $region21: #{conv_classifier_forward.1} parent=1 // pred_fallthru
      _
    // Predicated region
    $region22: #{conv_classifier_forward.1} parent=1 // pred_check
      _
    $region23: #{conv_classifier_forward.1} parent=1 // pred_check_branch
      %55 = sbr.rel (0) target = $region25
    $region24: #{conv_classifier_forward.1} parent=1 // pred_region
      _
    $region25: #{conv_classifier_forward.1} parent=1 // pred_fallthru
      _
    // Predicated region
    $region26: #{conv_classifier_forward.1} parent=1 // pred_check
      _
    $region27: #{conv_classifier_forward.1} parent=1 // pred_check_branch
      %57 = sbr.rel (0) target = $region29
    $region28: #{conv_classifier_forward.1} parent=1 // pred_region
      _
    $region29: #{conv_classifier_forward.1} parent=1 // pred_fallthru
      _
    // Predicated region
    $region30: #{conv_classifier_forward.1} parent=1 // pred_check
      _
    $region31: #{conv_classifier_forward.1} parent=1 // pred_check_branch
      %59 = sbr.rel (0) target = $region33
    $region32: #{conv_classifier_forward.1} parent=1 // pred_region
      _
    $region33: #{conv_classifier_forward.1} parent=1 // pred_fallthru
      _
    // Predicated region
    $region34: #{conv_classifier_forward.1} parent=1 // pred_check
      _
    $region35: #{conv_classifier_forward.1} parent=1 // pred_check_branch
      %61 = sbr.rel (0) target = $region37
    $region36: #{conv_classifier_forward.1} parent=1 // pred_region
      _
    $region37: #{conv_classifier_forward.1} parent=1 // pred_fallthru
      _
    // Predicated region
    $region38: #{conv_classifier_forward.1} parent=1 // pred_check
      _
    $region39: #{conv_classifier_forward.1} parent=1 // pred_check_branch
      %63 = sbr.rel (0) target = $region41
    $region40: #{conv_classifier_forward.1} parent=1 // pred_region
      _
    $region41: #{conv_classifier_forward.1} parent=1 // pred_fallthru
      _
    // Predicated region
    $region42: #{conv_classifier_forward.1} parent=1 // pred_check
      _
    $region43: #{conv_classifier_forward.1} parent=1 // pred_check_branch
      %65 = sbr.rel (0) target = $region45
    $region44: #{conv_classifier_forward.1} parent=1 // pred_region
      _
    $region45: #{conv_classifier_forward.1} parent=1 // pred_fallthru
      _
    // Predicated region
    $region46: #{conv_classifier_forward.1} parent=1 // pred_check
      _
    $region47: #{conv_classifier_forward.1} parent=1 // pred_check_branch
      %67 = sbr.rel (0) target = $region49
    $region48: #{conv_classifier_forward.1} parent=1 // pred_region
      _
    $region49: #{conv_classifier_forward.1} parent=1 // pred_fallthru
      _
    // Predicated region
    $region50: #{conv_classifier_forward.1} parent=1 // pred_check
      _
    $region51: #{conv_classifier_forward.1} parent=1 // pred_check_branch
      %69 = sbr.rel (0) target = $region53
    $region52: #{conv_classifier_forward.1} parent=1 // pred_region
      %70 = dma.done [#allocation8], 16
    $region53: #{conv_classifier_forward.1} parent=1 // pred_fallthru
      _
    // Predicated region
    $region54: #{conv_classifier_forward.1} parent=1 // pred_check
      _
    $region55: #{conv_classifier_forward.1} parent=1 // pred_check_branch
      %72 = sbr.rel (0) target = $region57
    $region56: #{conv_classifier_forward.1} parent=1 // pred_region
      %73 = dma.done [#allocation10], 128
    $region57: #{conv_classifier_forward.1} parent=1 // pred_fallthru
      _
    // Predicated region
    $region58: #{conv_classifier_forward.1} parent=1 // pred_check
      _
    $region59: #{conv_classifier_forward.1} parent=1 // pred_check_branch
      %75 = sbr.rel (0) target = $region61
    $region60: #{conv_classifier_forward.1} parent=1 // pred_region
      %76 = dma.done [#allocation10], 16
    $region61: #{conv_classifier_forward.1} parent=1 // pred_fallthru
      _
    %77 = sfence
    %s78 = sld [smem:[#allocation7]]
    %s79 = sld [smem:[#allocation7 + $0x1]]
    %s80 = sld [smem:[#allocation7 + $0x2]]
    %v81 = vld [vmem:[%s0] sm:$0xff]
    %v82 = vld [vmem:[%s0 + $0x8] sm:$0xff]
    %v83 = vld [vmem:[%s0 + $0x10] sm:$0xff]
    %v84 = vld [vmem:[%s0 + $0x18] sm:$0xff]
    %v85 = vld [vmem:[%s0 + $0x20] sm:$0xff]
    %v86 = vld [vmem:[%s0 + $0x28] sm:$0xff]
    %v87 = vld [vmem:[%s0 + $0x30] sm:$0xff]
    %v88 = vstv %s78
    %v89 = vmul.f32 %v88, %v81
    %v90 = vmul.f32 %v88, %v82
    %v91 = vmul.f32 %v88, %v83
    %v92 = vmul.f32 %v88, %v84
    %v93 = vmul.f32 %v88, %v85
    %v94 = vmul.f32 %v88, %v86
    %v95 = vmul.f32 %v88, %v87
    %v96 = vstv %s79
    %v97 = vmul.f32 %v96, %v81
    %v98 = vmul.f32 %v96, %v82
    %v99 = vmul.f32 %v96, %v83
    %v100 = vmul.f32 %v96, %v84
    %v101 = vmul.f32 %v96, %v85
    %v102 = vmul.f32 %v96, %v86
    %v103 = vmul.f32 %v96, %v87
    %111 = vrot.lane.b32.xlu0 %v97, 127
    %v112 = vpop.permute.xlu0 %111
    %113 = vrot.lane.b32.xlu0 %v98, 127
    %v114 = vpop.permute.xlu0 %113
    %115 = vrot.lane.b32.xlu0 %v99, 127
    %v116 = vpop.permute.xlu0 %115
    %117 = vrot.lane.b32.xlu0 %v100, 127
    %v118 = vpop.permute.xlu0 %117
    %119 = vrot.lane.b32.xlu0 %v101, 127
    %v120 = vpop.permute.xlu0 %119
    %121 = vrot.lane.b32.xlu0 %v102, 127
    %v122 = vpop.permute.xlu0 %121
    %123 = vrot.lane.b32.xlu0 %v103, 127
    %v124 = vpop.permute.xlu0 %123
    %vm125 = vcmask 1039360
    %v126 = vsel %vm125, %v112, %v114
    %v127 = vsel %vm125, %v114, %v116
    %v128 = vsel %vm125, %v116, %v118
    %v129 = vsel %vm125, %v118, %v120
    %v130 = vsel %vm125, %v120, %v122
    %v131 = vsel %vm125, %v122, %v124
    %v139 = vadd.f32 %v89, %v126
    %v140 = vadd.f32 %v90, %v127
    %v141 = vadd.f32 %v91, %v128
    %v142 = vadd.f32 %v92, %v129
    %v143 = vadd.f32 %v93, %v130
    %v144 = vadd.f32 %v94, %v131
    %v145 = vadd.f32 %v95, %v124
    %v146 = vstv %s80
    %v147 = vmul.f32 %v146, %v81
    %v148 = vmul.f32 %v146, %v82
    %v149 = vmul.f32 %v146, %v83
    %v150 = vmul.f32 %v146, %v84
    %v151 = vmul.f32 %v146, %v85
    %v152 = vmul.f32 %v146, %v86
    %v153 = vmul.f32 %v146, %v87
    %161 = vrot.lane.b32.xlu0 %v147, 126
    %v162 = vpop.permute.xlu0 %161
    %163 = vrot.lane.b32.xlu0 %v148, 126
    %v164 = vpop.permute.xlu0 %163
    %165 = vrot.lane.b32.xlu0 %v149, 126
    %v166 = vpop.permute.xlu0 %165
    %167 = vrot.lane.b32.xlu0 %v150, 126
    %v168 = vpop.permute.xlu0 %167
    %169 = vrot.lane.b32.xlu0 %v151, 126
    %v170 = vpop.permute.xlu0 %169
    %171 = vrot.lane.b32.xlu0 %v152, 126
    %v172 = vpop.permute.xlu0 %171
    %173 = vrot.lane.b32.xlu0 %v153, 126
    %v174 = vpop.permute.xlu0 %173
    %vm175 = vcmask 1031168
    %v176 = vsel %vm175, %v162, %v164
    %v177 = vsel %vm175, %v164, %v166
    %v178 = vsel %vm175, %v166, %v168
    %v179 = vsel %vm175, %v168, %v170
    %v180 = vsel %vm175, %v170, %v172
    %v181 = vsel %vm175, %v172, %v174
    %v189 = vadd.f32 %v139, %v176
    %v190 = vadd.f32 %v140, %v177
    %v191 = vadd.f32 %v141, %v178
    %v192 = vadd.f32 %v142, %v179
    %v193 = vadd.f32 %v143, %v180
    %v194 = vadd.f32 %v144, %v181
    %v195 = vadd.f32 %v145, %v174
    %s196 = sld [smem:[#allocation6]]
    %v197 = vstv %s196
    %v198 = vadd.f32 %v189, %v197
    %v199 = vadd.f32 %v190, %v197
    %v200 = vadd.f32 %v191, %v197
    %v201 = vadd.f32 %v192, %v197
    %v202 = vadd.f32 %v193, %v197
    %v203 = vadd.f32 %v194, %v197
    %v204 = vadd.f32 %v195, %v197
    %v205 = vmax.f32 %v198, 0.0
    %v206 = vmax.f32 %v199, 0.0
    %v207 = vmax.f32 %v200, 0.0
    %v208 = vmax.f32 %v201, 0.0
    %v209 = vmax.f32 %v202, 0.0
    %v210 = vmax.f32 %v203, 0.0
    %v211 = vmax.f32 %v204, 0.0
    %212 = vst [vmem:[#allocation2] sm:$0xff] %v205
    %213 = vst [vmem:[#allocation2 + $0x8] sm:$0xff] %v206
    %214 = vst [vmem:[#allocation2 + $0x10] sm:$0xff] %v207
    %215 = vst [vmem:[#allocation2 + $0x18] sm:$0xff] %v208
    %216 = vst [vmem:[#allocation2 + $0x20] sm:$0xff] %v209
    %217 = vst [vmem:[#allocation2 + $0x28] sm:$0xff] %v210
    %vm218 = vcmask 908288
    %219 = vst.msk [vmem:[#allocation2 + $0x30] sm:$0xff] %vm218, %v211
    %v220 = vld [vmem:[#allocation2] sm:$0xff]
    %v221 = vld [vmem:[#allocation2 + $0x8] sm:$0xff]
    %v222 = vld [vmem:[#allocation2 + $0x10] sm:$0xff]
    %v223 = vld [vmem:[#allocation2 + $0x18] sm:$0xff]
    %v224 = vld [vmem:[#allocation2 + $0x20] sm:$0xff]
    %v225 = vld [vmem:[#allocation2 + $0x28] sm:$0xff]
    %v226 = vld [vmem:[#allocation2 + $0x30] sm:$0xff]
    %234 = vrot.lane.b32.xlu0 %v220, 127
    %v235 = vpop.permute.xlu0 %234
    %236 = vrot.lane.b32.xlu0 %v221, 127
    %v237 = vpop.permute.xlu0 %236
    %238 = vrot.lane.b32.xlu0 %v222, 127
    %v239 = vpop.permute.xlu0 %238
    %240 = vrot.lane.b32.xlu0 %v223, 127
    %v241 = vpop.permute.xlu0 %240
    %242 = vrot.lane.b32.xlu0 %v224, 127
    %v243 = vpop.permute.xlu0 %242
    %244 = vrot.lane.b32.xlu0 %v225, 127
    %v245 = vpop.permute.xlu0 %244
    %246 = vrot.lane.b32.xlu0 %v226, 127
    %v247 = vpop.permute.xlu0 %246
    %v248 = vsel %vm125, %v235, %v237
    %v249 = vsel %vm125, %v237, %v239
    %v250 = vsel %vm125, %v239, %v241
    %v251 = vsel %vm125, %v241, %v243
    %v252 = vsel %vm125, %v243, %v245
    %v253 = vsel %vm125, %v245, %v247
    %v261 = vmax.f32 %v220, %v248
    %v262 = vmax.f32 %v221, %v249
    %v263 = vmax.f32 %v222, %v250
    %v264 = vmax.f32 %v223, %v251
    %v265 = vmax.f32 %v224, %v252
    %v266 = vmax.f32 %v225, %v253
    %v267 = vmax.f32 %v226, %v247
    %268 = vrot.lane.b32.xlu0 %v220, 126
    %v269 = vpop.permute.xlu0 %268
    %270 = vrot.lane.b32.xlu0 %v221, 126
    %v271 = vpop.permute.xlu0 %270
    %272 = vrot.lane.b32.xlu0 %v222, 126
    %v273 = vpop.permute.xlu0 %272
    %274 = vrot.lane.b32.xlu0 %v223, 126
    %v275 = vpop.permute.xlu0 %274
    %276 = vrot.lane.b32.xlu0 %v224, 126
    %v277 = vpop.permute.xlu0 %276
    %278 = vrot.lane.b32.xlu0 %v225, 126
    %v279 = vpop.permute.xlu0 %278
    %280 = vrot.lane.b32.xlu0 %v226, 126
    %v281 = vpop.permute.xlu0 %280
    %v282 = vsel %vm175, %v269, %v271
    %v283 = vsel %vm175, %v271, %v273
    %v284 = vsel %vm175, %v273, %v275
    %v285 = vsel %vm175, %v275, %v277
    %v286 = vsel %vm175, %v277, %v279
    %v287 = vsel %vm175, %v279, %v281
    %v295 = vmax.f32 %v261, %v282
    %v296 = vmax.f32 %v262, %v283
    %v297 = vmax.f32 %v263, %v284
    %v298 = vmax.f32 %v264, %v285
    %v299 = vmax.f32 %v265, %v286
    %v300 = vmax.f32 %v266, %v287
    %v301 = vmax.f32 %v267, %v281
    %v302 = vld [vmem:[%s5] sm:$0xff]
    %v303 = vld [vmem:[%s5 + $0x8] sm:$0xff]
    %v304 = vld [vmem:[%s5 + $0x10] sm:$0xff]
    %v305 = vld [vmem:[%s5 + $0x18] sm:$0xff]
    %v306 = vld [vmem:[%s5 + $0x20] sm:$0xff]
    %v307 = vld [vmem:[%s5 + $0x28] sm:$0xff]
    %v308 = vld [vmem:[%s5 + $0x30] sm:$0xff]
    %v309 = vld [vmem:[%s5 + $0x38] sm:$0xff]
    %v310 = vld [vmem:[%s5 + $0x40] sm:$0xff]
    %v311 = vld [vmem:[%s5 + $0x48] sm:$0xff]
    %v312 = vld [vmem:[%s5 + $0x50] sm:$0xff]
    %v313 = vld [vmem:[%s5 + $0x58] sm:$0xff]
    %v314 = vld [vmem:[%s5 + $0x60] sm:$0xff]
    %v315 = vld [vmem:[%s5 + $0x68] sm:$0xff]
    %v316 = vld [vmem:[%s5 + $0x70] sm:$0xff]
    %v317 = vld [vmem:[%s5 + $0x78] sm:$0xff]
    %v318 = vld [vmem:[%s5 + $0x80] sm:$0xff]
    %v319 = vld [vmem:[%s5 + $0x88] sm:$0xff]
    %v320 = vld [vmem:[%s5 + $0x90] sm:$0xff]
    %v321 = vld [vmem:[%s5 + $0x98] sm:$0xff]
    %v322 = vld [vmem:[%s5 + $0xa0] sm:$0xff]
    %v323 = vld [vmem:[%s5 + $0xa8] sm:$0xff]
    %v324 = vld [vmem:[%s5 + $0xb0] sm:$0xff]
    %v325 = vld [vmem:[%s5 + $0xb8] sm:$0xff]
    %v326 = vld [vmem:[%s5 + $0xc0] sm:$0xff]
    %v327 = vld [vmem:[%s5 + $0xc8] sm:$0xff]
    %v328 = vld [vmem:[%s5 + $0xd0] sm:$0xff]
    %v329 = vld [vmem:[%s5 + $0xd8] sm:$0xff]
    %v330 = vld [vmem:[%s5 + $0xe0] sm:$0xff]
    %v331 = vld [vmem:[%s5 + $0xe8] sm:$0xff]
    %v332 = vld [vmem:[%s5 + $0xf0] sm:$0xff]
    %v333 = vld [vmem:[%s5 + $0xf8] sm:$0xff]
    %v334 = vld [vmem:[%s5 + $0x100] sm:$0xff]
    %v335 = vld [vmem:[%s5 + $0x108] sm:$0xff]
    %v336 = vld [vmem:[%s5 + $0x110] sm:$0xff]
    %v337 = vld [vmem:[%s5 + $0x118] sm:$0xff]
    %v338 = vld [vmem:[%s5 + $0x120] sm:$0xff]
    %v339 = vld [vmem:[%s5 + $0x128] sm:$0xff]
    %v340 = vld [vmem:[%s5 + $0x130] sm:$0xff]
    %v341 = vld [vmem:[%s5 + $0x138] sm:$0xff]
    %v342 = vld [vmem:[%s5 + $0x140] sm:$0xff]
    %v343 = vld [vmem:[%s5 + $0x148] sm:$0xff]
    %v344 = vld [vmem:[%s5 + $0x150] sm:$0xff]
    %v345 = vld [vmem:[%s5 + $0x158] sm:$0xff]
    %v346 = vld [vmem:[%s5 + $0x160] sm:$0xff]
    %v347 = vld [vmem:[%s5 + $0x168] sm:$0xff]
    %v348 = vld [vmem:[%s5 + $0x170] sm:$0xff]
    %v349 = vld [vmem:[%s5 + $0x178] sm:$0xff]
    %v350 = vld [vmem:[%s5 + $0x180] sm:$0xff]
    %v351 = vld [vmem:[%s5 + $0x188] sm:$0xff]
    %v352 = vld [vmem:[%s5 + $0x190] sm:$0xff]
    %v353 = vld [vmem:[%s5 + $0x198] sm:$0xff]
    %v354 = vld [vmem:[%s5 + $0x1a0] sm:$0xff]
    %v355 = vld [vmem:[%s5 + $0x1a8] sm:$0xff]
    %v356 = vld [vmem:[%s5 + $0x1b0] sm:$0xff]
    %v357 = vld [vmem:[%s5 + $0x1b8] sm:$0xff]
    %v358 = vld [vmem:[%s5 + $0x1c0] sm:$0xff]
    %v359 = vld [vmem:[%s5 + $0x1c8] sm:$0xff]
    %v360 = vld [vmem:[%s5 + $0x1d0] sm:$0xff]
    %v361 = vld [vmem:[%s5 + $0x1d8] sm:$0xff]
    %v362 = vld [vmem:[%s5 + $0x1e0] sm:$0xff]
    %v363 = vld [vmem:[%s5 + $0x1e8] sm:$0xff]
    %v364 = vld [vmem:[%s5 + $0x1f0] sm:$0xff]
    %v365 = vld [vmem:[%s5 + $0x1f8] sm:$0xff]
    %v366 = vld [vmem:[%s5 + $0x200] sm:$0xff]
    %v367 = vld [vmem:[%s5 + $0x208] sm:$0xff]
    %v368 = vld [vmem:[%s5 + $0x210] sm:$0xff]
    %v369 = vld [vmem:[%s5 + $0x218] sm:$0xff]
    %v370 = vld [vmem:[%s5 + $0x220] sm:$0xff]
    %v371 = vld [vmem:[%s5 + $0x228] sm:$0xff]
    %v372 = vld [vmem:[%s5 + $0x230] sm:$0xff]
    %v373 = vld [vmem:[%s5 + $0x238] sm:$0xff]
    %v374 = vld [vmem:[%s5 + $0x240] sm:$0xff]
    %v375 = vld [vmem:[%s5 + $0x248] sm:$0xff]
    %v376 = vld [vmem:[%s5 + $0x250] sm:$0xff]
    %v377 = vld [vmem:[%s5 + $0x258] sm:$0xff]
    %v378 = vld [vmem:[%s5 + $0x260] sm:$0xff]
    %v379 = vld [vmem:[%s5 + $0x268] sm:$0xff]
    %v380 = vld [vmem:[%s5 + $0x270] sm:$0xff]
    %v381 = vld [vmem:[%s5 + $0x278] sm:$0xff]
    %v382 = vld [vmem:[%s5 + $0x280] sm:$0xff]
    %v383 = vld [vmem:[%s5 + $0x288] sm:$0xff]
    %v384 = vld [vmem:[%s5 + $0x290] sm:$0xff]
    %v385 = vld [vmem:[%s5 + $0x298] sm:$0xff]
    %v386 = vld [vmem:[%s5 + $0x2a0] sm:$0xff]
    %v387 = vld [vmem:[%s5 + $0x2a8] sm:$0xff]
    %v388 = vld [vmem:[%s5 + $0x2b0] sm:$0xff]
    %v389 = vld [vmem:[%s5 + $0x2b8] sm:$0xff]
    %v390 = vld [vmem:[%s5 + $0x2c0] sm:$0xff]
    %v391 = vld [vmem:[%s5 + $0x2c8] sm:$0xff]
    %v392 = vld [vmem:[%s5 + $0x2d0] sm:$0xff]
    %v393 = vld [vmem:[%s5 + $0x2d8] sm:$0xff]
    %v394 = vld [vmem:[%s5 + $0x2e0] sm:$0xff]
    %v395 = vld [vmem:[%s5 + $0x2e8] sm:$0xff]
    %v396 = vld [vmem:[%s5 + $0x2f0] sm:$0xff]
    %v397 = vld [vmem:[%s5 + $0x2f8] sm:$0xff]
    %v398 = vld [vmem:[%s5 + $0x300] sm:$0xff]
    %v399 = vld [vmem:[%s5 + $0x308] sm:$0xff]
    %v400 = vld [vmem:[%s5 + $0x310] sm:$0xff]
    %v401 = vld [vmem:[%s5 + $0x318] sm:$0xff]
    %v402 = vld [vmem:[%s5 + $0x320] sm:$0xff]
    %v403 = vld [vmem:[%s5 + $0x328] sm:$0xff]
    %v404 = vld [vmem:[%s5 + $0x330] sm:$0xff]
    %v405 = vld [vmem:[%s5 + $0x338] sm:$0xff]
    %v406 = vld [vmem:[%s5 + $0x340] sm:$0xff]
    %v407 = vld [vmem:[%s5 + $0x348] sm:$0xff]
    %v408 = vld [vmem:[%s5 + $0x350] sm:$0xff]
    %v409 = vld [vmem:[%s5 + $0x358] sm:$0xff]
    %v410 = vld [vmem:[%s5 + $0x360] sm:$0xff]
    %v411 = vld [vmem:[%s5 + $0x368] sm:$0xff]
    %v412 = vld [vmem:[%s5 + $0x370] sm:$0xff]
    %v413 = vld [vmem:[%s5 + $0x378] sm:$0xff]
    %v414 = vld [vmem:[%s5 + $0x380] sm:$0xff]
    %v415 = vld [vmem:[%s5 + $0x388] sm:$0xff]
    %v416 = vld [vmem:[%s5 + $0x390] sm:$0xff]
    %v417 = vld [vmem:[%s5 + $0x398] sm:$0xff]
    %v418 = vld [vmem:[%s5 + $0x3a0] sm:$0xff]
    %v419 = vld [vmem:[%s5 + $0x3a8] sm:$0xff]
    %v420 = vld [vmem:[%s5 + $0x3b0] sm:$0xff]
    %v421 = vld [vmem:[%s5 + $0x3b8] sm:$0xff]
    %v422 = vld [vmem:[%s5 + $0x3c0] sm:$0xff]
    %v423 = vld [vmem:[%s5 + $0x3c8] sm:$0xff]
    %v424 = vld [vmem:[%s5 + $0x3d0] sm:$0xff]
    %v425 = vld [vmem:[%s5 + $0x3d8] sm:$0xff]
    %v426 = vld [vmem:[%s5 + $0x3e0] sm:$0xff]
    %v427 = vld [vmem:[%s5 + $0x3e8] sm:$0xff]
    %v428 = vld [vmem:[%s5 + $0x3f0] sm:$0xff]
    %v429 = vld [vmem:[%s5 + $0x3f8] sm:$0xff]
    %v430 = vld [vmem:[%s5 + $0x400] sm:$0xff]
    %v431 = vld [vmem:[%s5 + $0x408] sm:$0xff]
    %v432 = vld [vmem:[%s5 + $0x410] sm:$0xff]
    %v433 = vld [vmem:[%s5 + $0x418] sm:$0xff]
    %v434 = vld [vmem:[%s5 + $0x420] sm:$0xff]
    %v435 = vld [vmem:[%s5 + $0x428] sm:$0xff]
    %v436 = vld [vmem:[%s5 + $0x430] sm:$0xff]
    %v437 = vld [vmem:[%s5 + $0x438] sm:$0xff]
    %v438 = vld [vmem:[%s5 + $0x440] sm:$0xff]
    %v439 = vld [vmem:[%s5 + $0x448] sm:$0xff]
    %v440 = vld [vmem:[%s5 + $0x450] sm:$0xff]
    %v441 = vld [vmem:[%s5 + $0x458] sm:$0xff]
    %v442 = vld [vmem:[%s5 + $0x460] sm:$0xff]
    %v443 = vld [vmem:[%s5 + $0x468] sm:$0xff]
    %v444 = vld [vmem:[%s5 + $0x470] sm:$0xff]
    %v445 = vld [vmem:[%s5 + $0x478] sm:$0xff]
    %v446 = vld [vmem:[%s5 + $0x480] sm:$0xff]
    %v447 = vld [vmem:[%s5 + $0x488] sm:$0xff]
    %v448 = vld [vmem:[%s5 + $0x490] sm:$0xff]
    %v449 = vld [vmem:[%s5 + $0x498] sm:$0xff]
    %v450 = vld [vmem:[%s5 + $0x4a0] sm:$0xff]
    %v451 = vld [vmem:[%s5 + $0x4a8] sm:$0xff]
    %v452 = vld [vmem:[%s5 + $0x4b0] sm:$0xff]
    %v453 = vld [vmem:[%s5 + $0x4b8] sm:$0xff]
    %v454 = vld [vmem:[%s5 + $0x4c0] sm:$0xff]
    %v455 = vld [vmem:[%s5 + $0x4c8] sm:$0xff]
    %v456 = vld [vmem:[%s5 + $0x4d0] sm:$0xff]
    %v457 = vld [vmem:[%s5 + $0x4d8] sm:$0xff]
    %v458 = vld [vmem:[%s5 + $0x4e0] sm:$0xff]
    %v459 = vld [vmem:[%s5 + $0x4e8] sm:$0xff]
    %v460 = vld [vmem:[%s5 + $0x4f0] sm:$0xff]
    %v461 = vld [vmem:[%s5 + $0x4f8] sm:$0xff]
    %v462 = vld [vmem:[%s5 + $0x500] sm:$0xff]
    %v463 = vld [vmem:[%s5 + $0x508] sm:$0xff]
    %v464 = vld [vmem:[%s5 + $0x510] sm:$0xff]
    %v465 = vld [vmem:[%s5 + $0x518] sm:$0xff]
    %v466 = vld [vmem:[%s5 + $0x520] sm:$0xff]
    %v467 = vld [vmem:[%s5 + $0x528] sm:$0xff]
    %v468 = vld [vmem:[%s5 + $0x530] sm:$0xff]
    %v469 = vld [vmem:[%s5 + $0x538] sm:$0xff]
    %v470 = vld [vmem:[%s5 + $0x540] sm:$0xff]
    %v471 = vld [vmem:[%s5 + $0x548] sm:$0xff]
    %v472 = vld [vmem:[%s5 + $0x550] sm:$0xff]
    %v473 = vld [vmem:[%s5 + $0x558] sm:$0xff]
    %v474 = vld [vmem:[%s5 + $0x560] sm:$0xff]
    %v475 = vld [vmem:[%s5 + $0x568] sm:$0xff]
    %v476 = vld [vmem:[%s5 + $0x570] sm:$0xff]
    %v477 = vld [vmem:[%s5 + $0x578] sm:$0xff]
    %v478 = vld [vmem:[%s5 + $0x580] sm:$0xff]
    %v479 = vld [vmem:[%s5 + $0x588] sm:$0xff]
    %v480 = vld [vmem:[%s5 + $0x590] sm:$0xff]
    %v481 = vld [vmem:[%s5 + $0x598] sm:$0xff]
    %v482 = vld [vmem:[%s5 + $0x5a0] sm:$0xff]
    %v483 = vld [vmem:[%s5 + $0x5a8] sm:$0xff]
    %v484 = vld [vmem:[%s5 + $0x5b0] sm:$0xff]
    %v485 = vld [vmem:[%s5 + $0x5b8] sm:$0xff]
    %v486 = vld [vmem:[%s5 + $0x5c0] sm:$0xff]
    %v487 = vld [vmem:[%s5 + $0x5c8] sm:$0xff]
    %v488 = vld [vmem:[%s5 + $0x5d0] sm:$0xff]
    %v489 = vld [vmem:[%s5 + $0x5d8] sm:$0xff]
    %v490 = vld [vmem:[%s5 + $0x5e0] sm:$0xff]
    %v491 = vld [vmem:[%s5 + $0x5e8] sm:$0xff]
    %v492 = vld [vmem:[%s5 + $0x5f0] sm:$0xff]
    %v493 = vld [vmem:[%s5 + $0x5f8] sm:$0xff]
    %v494 = vld [vmem:[%s5 + $0x600] sm:$0xff]
    %v495 = vld [vmem:[%s5 + $0x608] sm:$0xff]
    %v496 = vld [vmem:[%s5 + $0x610] sm:$0xff]
    %v497 = vld [vmem:[%s5 + $0x618] sm:$0xff]
    %v498 = vld [vmem:[%s5 + $0x620] sm:$0xff]
    %v499 = vld [vmem:[%s5 + $0x628] sm:$0xff]
    %v500 = vld [vmem:[%s5 + $0x630] sm:$0xff]
    %v501 = vld [vmem:[%s5 + $0x638] sm:$0xff]
    %v502 = vld [vmem:[%s5 + $0x640] sm:$0xff]
    %v503 = vld [vmem:[%s5 + $0x648] sm:$0xff]
    %v504 = vld [vmem:[%s5 + $0x650] sm:$0xff]
    %v505 = vld [vmem:[%s5 + $0x658] sm:$0xff]
    %v506 = vld [vmem:[%s5 + $0x660] sm:$0xff]
    %v507 = vld [vmem:[%s5 + $0x668] sm:$0xff]
    %v508 = vld [vmem:[%s5 + $0x670] sm:$0xff]
    %v509 = vld [vmem:[%s5 + $0x678] sm:$0xff]
    %v510 = vld [vmem:[%s5 + $0x680] sm:$0xff]
    %v511 = vld [vmem:[%s5 + $0x688] sm:$0xff]
    %v512 = vld [vmem:[%s5 + $0x690] sm:$0xff]
    %v513 = vld [vmem:[%s5 + $0x698] sm:$0xff]
    %v514 = vld [vmem:[%s5 + $0x6a0] sm:$0xff]
    %v515 = vld [vmem:[%s5 + $0x6a8] sm:$0xff]
    %v516 = vld [vmem:[%s5 + $0x6b0] sm:$0xff]
    %v517 = vld [vmem:[%s5 + $0x6b8] sm:$0xff]
    %v518 = vld [vmem:[%s5 + $0x6c0] sm:$0xff]
    %v519 = vld [vmem:[%s5 + $0x6c8] sm:$0xff]
    %v520 = vld [vmem:[%s5 + $0x6d0] sm:$0xff]
    %v521 = vld [vmem:[%s5 + $0x6d8] sm:$0xff]
    %v522 = vld [vmem:[%s5 + $0x6e0] sm:$0xff]
    %v523 = vld [vmem:[%s5 + $0x6e8] sm:$0xff]
    %v524 = vld [vmem:[%s5 + $0x6f0] sm:$0xff]
    %v525 = vld [vmem:[%s5 + $0x6f8] sm:$0xff]
    %v526 = vld [vmem:[%s5 + $0x700] sm:$0xff]
    %v527 = vld [vmem:[%s5 + $0x708] sm:$0xff]
    %v528 = vld [vmem:[%s5 + $0x710] sm:$0xff]
    %v529 = vld [vmem:[%s5 + $0x718] sm:$0xff]
    %v530 = vld [vmem:[%s5 + $0x720] sm:$0xff]
    %v531 = vld [vmem:[%s5 + $0x728] sm:$0xff]
    %v532 = vld [vmem:[%s5 + $0x730] sm:$0xff]
    %v533 = vld [vmem:[%s5 + $0x738] sm:$0xff]
    %v534 = vld [vmem:[%s5 + $0x740] sm:$0xff]
    %v535 = vld [vmem:[%s5 + $0x748] sm:$0xff]
    %v536 = vld [vmem:[%s5 + $0x750] sm:$0xff]
    %v537 = vld [vmem:[%s5 + $0x758] sm:$0xff]
    %v538 = vld [vmem:[%s5 + $0x760] sm:$0xff]
    %v539 = vld [vmem:[%s5 + $0x768] sm:$0xff]
    %v540 = vld [vmem:[%s5 + $0x770] sm:$0xff]
    %v541 = vld [vmem:[%s5 + $0x778] sm:$0xff]
    %v542 = vld [vmem:[%s5 + $0x780] sm:$0xff]
    %v543 = vld [vmem:[%s5 + $0x788] sm:$0xff]
    %v544 = vld [vmem:[%s5 + $0x790] sm:$0xff]
    %v545 = vld [vmem:[%s5 + $0x798] sm:$0xff]
    %v546 = vld [vmem:[%s5 + $0x7a0] sm:$0xff]
    %v547 = vld [vmem:[%s5 + $0x7a8] sm:$0xff]
    %v548 = vld [vmem:[%s5 + $0x7b0] sm:$0xff]
    %v549 = vld [vmem:[%s5 + $0x7b8] sm:$0xff]
    %v550 = vld [vmem:[%s5 + $0x7c0] sm:$0xff]
    %v551 = vld [vmem:[%s5 + $0x7c8] sm:$0xff]
    %v552 = vld [vmem:[%s5 + $0x7d0] sm:$0xff]
    %v553 = vld [vmem:[%s5 + $0x7d8] sm:$0xff]
    %v554 = vld [vmem:[%s5 + $0x7e0] sm:$0xff]
    %v555 = vld [vmem:[%s5 + $0x7e8] sm:$0xff]
    %v556 = vld [vmem:[%s5 + $0x7f0] sm:$0xff]
    %v557 = vld [vmem:[%s5 + $0x7f8] sm:$0xff]
    %v558 = vld [vmem:[%s5 + $0x800] sm:$0xff]
    %v559 = vld [vmem:[%s5 + $0x808] sm:$0xff]
    %v560 = vld [vmem:[%s5 + $0x810] sm:$0xff]
    %v561 = vld [vmem:[%s5 + $0x818] sm:$0xff]
    %v562 = vld [vmem:[%s5 + $0x820] sm:$0xff]
    %v563 = vld [vmem:[%s5 + $0x828] sm:$0xff]
    %v564 = vld [vmem:[%s5 + $0x830] sm:$0xff]
    %v565 = vld [vmem:[%s5 + $0x838] sm:$0xff]
    %v566 = vld [vmem:[%s5 + $0x840] sm:$0xff]
    %v567 = vld [vmem:[%s5 + $0x848] sm:$0xff]
    %v568 = vld [vmem:[%s5 + $0x850] sm:$0xff]
    %v569 = vld [vmem:[%s5 + $0x858] sm:$0xff]
    %v570 = vld [vmem:[%s5 + $0x860] sm:$0xff]
    %v571 = vld [vmem:[%s5 + $0x868] sm:$0xff]
    %v572 = vld [vmem:[%s5 + $0x870] sm:$0xff]
    %v573 = vld [vmem:[%s5 + $0x878] sm:$0xff]
    %v574 = vld [vmem:[%s5 + $0x880] sm:$0xff]
    %v575 = vld [vmem:[%s5 + $0x888] sm:$0xff]
    %v576 = vld [vmem:[%s5 + $0x890] sm:$0xff]
    %v577 = vld [vmem:[%s5 + $0x898] sm:$0xff]
    %v578 = vld [vmem:[%s5 + $0x8a0] sm:$0xff]
    %v579 = vld [vmem:[%s5 + $0x8a8] sm:$0xff]
    %v580 = vld [vmem:[%s5 + $0x8b0] sm:$0xff]
    %v581 = vld [vmem:[%s5 + $0x8b8] sm:$0xff]
    %v582 = vld [vmem:[%s5 + $0x8c0] sm:$0xff]
    %v583 = vld [vmem:[%s5 + $0x8c8] sm:$0xff]
    %v584 = vld [vmem:[%s5 + $0x8d0] sm:$0xff]
    %v585 = vld [vmem:[%s5 + $0x8d8] sm:$0xff]
    %v586 = vld [vmem:[%s5 + $0x8e0] sm:$0xff]
    %v587 = vld [vmem:[%s5 + $0x8e8] sm:$0xff]
    %v588 = vld [vmem:[%s5 + $0x8f0] sm:$0xff]
    %v589 = vld [vmem:[%s5 + $0x8f8] sm:$0xff]
    %v590 = vld [vmem:[%s5 + $0x900] sm:$0xff]
    %v591 = vld [vmem:[%s5 + $0x908] sm:$0xff]
    %v592 = vld [vmem:[%s5 + $0x910] sm:$0xff]
    %v593 = vld [vmem:[%s5 + $0x918] sm:$0xff]
    %v594 = vld [vmem:[%s5 + $0x920] sm:$0xff]
    %v595 = vld [vmem:[%s5 + $0x928] sm:$0xff]
    %v596 = vld [vmem:[%s5 + $0x930] sm:$0xff]
    %v597 = vld [vmem:[%s5 + $0x938] sm:$0xff]
    %v598 = vld [vmem:[%s5 + $0x940] sm:$0xff]
    %v599 = vld [vmem:[%s5 + $0x948] sm:$0xff]
    %v600 = vld [vmem:[%s5 + $0x950] sm:$0xff]
    %v601 = vld [vmem:[%s5 + $0x958] sm:$0xff]
    %v602 = vld [vmem:[%s5 + $0x960] sm:$0xff]
    %v603 = vld [vmem:[%s5 + $0x968] sm:$0xff]
    %v604 = vld [vmem:[%s5 + $0x970] sm:$0xff]
    %v605 = vld [vmem:[%s5 + $0x978] sm:$0xff]
    %v606 = vld [vmem:[%s5 + $0x980] sm:$0xff]
    %v607 = vld [vmem:[%s5 + $0x988] sm:$0xff]
    %v608 = vld [vmem:[%s5 + $0x990] sm:$0xff]
    %v609 = vld [vmem:[%s5 + $0x998] sm:$0xff]
    %v610 = vld [vmem:[%s5 + $0x9a0] sm:$0xff]
    %v611 = vld [vmem:[%s5 + $0x9a8] sm:$0xff]
    %v612 = vld [vmem:[%s5 + $0x9b0] sm:$0xff]
    %v613 = vld [vmem:[%s5 + $0x9b8] sm:$0xff]
    %v614 = vld [vmem:[%s5 + $0x9c0] sm:$0xff]
    %v615 = vld [vmem:[%s5 + $0x9c8] sm:$0xff]
    %v616 = vld [vmem:[%s5 + $0x9d0] sm:$0xff]
    %v617 = vld [vmem:[%s5 + $0x9d8] sm:$0xff]
    %v618 = vld [vmem:[%s5 + $0x9e0] sm:$0xff]
    %v619 = vld [vmem:[%s5 + $0x9e8] sm:$0xff]
    %v620 = vld [vmem:[%s5 + $0x9f0] sm:$0xff]
    %v621 = vld [vmem:[%s5 + $0x9f8] sm:$0xff]
    %v622 = vld [vmem:[%s5 + $0xa00] sm:$0xff]
    %v623 = vld [vmem:[%s5 + $0xa08] sm:$0xff]
    %v624 = vld [vmem:[%s5 + $0xa10] sm:$0xff]
    %v625 = vld [vmem:[%s5 + $0xa18] sm:$0xff]
    %v626 = vld [vmem:[%s5 + $0xa20] sm:$0xff]
    %v627 = vld [vmem:[%s5 + $0xa28] sm:$0xff]
    %v628 = vld [vmem:[%s5 + $0xa30] sm:$0xff]
    %v629 = vld [vmem:[%s5 + $0xa38] sm:$0x1f]
    %v630 = vld [vmem:[%s5 + $0xa40] sm:$0x1f]
    %v631 = vld [vmem:[%s5 + $0xa48] sm:$0x1f]
    %vm632 = vcmask 891904
    %v634 = vsel %vm632, %v301, 0
    %vm636 = vcmask 1044480
    %v638 = vsel %vm636, %v629, 0
    %v641 = vsel %vm636, %v630, 0
    %v644 = vsel %vm636, %v631, 0
    %646 = vmatprep.subr.mxu0 %v303
    %647 = vmatpush1.msra.mxu0 %v302
    %648 = vmatprep.subr.mxu0 %v306
    %649 = vmatpush1.msra.mxu0 %v305
    %650 = vmatprep.subr.mxu0 %v309
    %651 = vmatpush1.msra.mxu0 %v308
    %652 = vmatprep.subr.mxu0 %v312
    %653 = vmatpush1.msra.mxu0 %v311
    %654 = vmatprep.subr.mxu0 %v315
    %655 = vmatpush1.msra.mxu0 %v314
    %656 = vmatprep.subr.mxu0 %v318
    %657 = vmatpush1.msra.mxu0 %v317
    %658 = vmatprep.subr.mxu0 %v321
    %659 = vmatpush1.msra.mxu0 %v320
    %660 = vmatprep.subr.mxu0 %v324
    %661 = vmatpush1.msra.mxu0 %v323
    %662 = vmatprep.subr.mxu0 %v327
    %663 = vmatpush1.msra.mxu0 %v326
    %664 = vmatprep.subr.mxu0 %v330
    %665 = vmatpush1.msra.mxu0 %v329
    %666 = vmatprep.subr.mxu0 %v333
    %667 = vmatpush1.msra.mxu0 %v332
    %668 = vmatprep.subr.mxu0 %v336
    %669 = vmatpush1.msra.mxu0 %v335
    %670 = vmatprep.subr.mxu0 %v339
    %671 = vmatpush1.msra.mxu0 %v338
    %672 = vmatprep.subr.mxu0 %v342
    %673 = vmatpush1.msra.mxu0 %v341
    %674 = vmatprep.subr.mxu0 %v345
    %675 = vmatpush1.msra.mxu0 %v344
    %676 = vmatprep.subr.mxu0 %v348
    %677 = vmatpush1.msra.mxu0 %v347
    %678 = vmatprep.subr.mxu0 %v351
    %679 = vmatpush1.msra.mxu0 %v350
    %680 = vmatprep.subr.mxu0 %v354
    %681 = vmatpush1.msra.mxu0 %v353
    %682 = vmatprep.subr.mxu0 %v357
    %683 = vmatpush1.msra.mxu0 %v356
    %684 = vmatprep.subr.mxu0 %v360
    %685 = vmatpush1.msra.mxu0 %v359
    %686 = vmatprep.subr.mxu0 %v363
    %687 = vmatpush1.msra.mxu0 %v362
    %688 = vmatprep.subr.mxu0 %v366
    %689 = vmatpush1.msra.mxu0 %v365
    %690 = vmatprep.subr.mxu0 %v369
    %691 = vmatpush1.msra.mxu0 %v368
    %692 = vmatprep.subr.mxu0 %v372
    %693 = vmatpush1.msra.mxu0 %v371
    %694 = vmatprep.subr.mxu0 %v375
    %695 = vmatpush1.msra.mxu0 %v374
    %696 = vmatprep.subr.mxu0 %v378
    %697 = vmatpush1.msra.mxu0 %v377
    %698 = vmatprep.subr.mxu0 %v381
    %699 = vmatpush1.msra.mxu0 %v380
    %700 = vmatprep.subr.mxu0 %v384
    %701 = vmatpush1.msra.mxu0 %v383
    %702 = vmatprep.subr.mxu0 %v387
    %703 = vmatpush1.msra.mxu0 %v386
    %704 = vmatprep.subr.mxu0 %v390
    %705 = vmatpush1.msra.mxu0 %v389
    %706 = vmatprep.subr.mxu0 %v393
    %707 = vmatpush1.msra.mxu0 %v392
    %708 = vmatprep.subr.mxu0 %v396
    %709 = vmatpush1.msra.mxu0 %v395
    %710 = vmatprep.mubr.f32.mxu0 %v296
    %711 = vmatmul.mubr.f32.gmra.mrb[0].mxu0 %v295
    %v712 = vpop.f32.mrb[0].mxu0
    %v713 = vadd.f32 0.0, %v712
    %v714 = vpop.f32.mrb[0].mxu0
    %v715 = vadd.f32 0.0, %v714
    %716 = vdwg.mxu0
    %717 = vmatprep.subr.mxu0 %v399
    %718 = vmatpush1.msra.mxu0 %v398
    %719 = vmatprep.subr.mxu0 %v402
    %720 = vmatpush1.msra.mxu0 %v401
    %721 = vmatprep.subr.mxu0 %v405
    %722 = vmatpush1.msra.mxu0 %v404
    %723 = vmatprep.subr.mxu0 %v408
    %724 = vmatpush1.msra.mxu0 %v407
    %725 = vmatprep.subr.mxu0 %v411
    %726 = vmatpush1.msra.mxu0 %v410
    %727 = vmatprep.subr.mxu0 %v414
    %728 = vmatpush1.msra.mxu0 %v413
    %729 = vmatprep.subr.mxu0 %v417
    %730 = vmatpush1.msra.mxu0 %v416
    %731 = vmatprep.subr.mxu0 %v420
    %732 = vmatpush1.msra.mxu0 %v419
    %733 = vmatprep.subr.mxu0 %v423
    %734 = vmatpush1.msra.mxu0 %v422
    %735 = vmatprep.subr.mxu0 %v426
    %736 = vmatpush1.msra.mxu0 %v425
    %737 = vmatprep.subr.mxu0 %v429
    %738 = vmatpush1.msra.mxu0 %v428
    %739 = vmatprep.subr.mxu0 %v432
    %740 = vmatpush1.msra.mxu0 %v431
    %741 = vmatprep.subr.mxu0 %v435
    %742 = vmatpush1.msra.mxu0 %v434
    %743 = vmatprep.subr.mxu0 %v438
    %744 = vmatpush1.msra.mxu0 %v437
    %745 = vmatprep.subr.mxu0 %v441
    %746 = vmatpush1.msra.mxu0 %v440
    %747 = vmatprep.subr.mxu0 %v444
    %748 = vmatpush1.msra.mxu0 %v443
    %749 = vmatprep.subr.mxu0 %v447
    %750 = vmatpush1.msra.mxu0 %v446
    %751 = vmatprep.subr.mxu0 %v450
    %752 = vmatpush1.msra.mxu0 %v449
    %753 = vmatprep.subr.mxu0 %v453
    %754 = vmatpush1.msra.mxu0 %v452
    %755 = vmatprep.subr.mxu0 %v456
    %756 = vmatpush1.msra.mxu0 %v455
    %757 = vmatprep.subr.mxu0 %v459
    %758 = vmatpush1.msra.mxu0 %v458
    %759 = vmatprep.subr.mxu0 %v462
    %760 = vmatpush1.msra.mxu0 %v461
    %761 = vmatprep.subr.mxu0 %v465
    %762 = vmatpush1.msra.mxu0 %v464
    %763 = vmatprep.subr.mxu0 %v468
    %764 = vmatpush1.msra.mxu0 %v467
    %765 = vmatprep.subr.mxu0 %v471
    %766 = vmatpush1.msra.mxu0 %v470
    %767 = vmatprep.subr.mxu0 %v474
    %768 = vmatpush1.msra.mxu0 %v473
    %769 = vmatprep.subr.mxu0 %v477
    %770 = vmatpush1.msra.mxu0 %v476
    %771 = vmatprep.subr.mxu0 %v480
    %772 = vmatpush1.msra.mxu0 %v479
    %773 = vmatprep.subr.mxu0 %v483
    %774 = vmatpush1.msra.mxu0 %v482
    %775 = vmatprep.subr.mxu0 %v486
    %776 = vmatpush1.msra.mxu0 %v485
    %777 = vmatprep.subr.mxu0 %v489
    %778 = vmatpush1.msra.mxu0 %v488
    %779 = vmatprep.subr.mxu0 %v492
    %780 = vmatpush1.msra.mxu0 %v491
    %781 = vmatprep.mubr.f32.mxu0 %v298
    %782 = vmatmul.mubr.f32.gmra.mrb[0].mxu0 %v297
    %v783 = vpop.f32.mrb[0].mxu0
    %v784 = vadd.f32 %v713, %v783
    %v785 = vpop.f32.mrb[0].mxu0
    %v786 = vadd.f32 %v715, %v785
    %787 = vdwg.mxu0
    %788 = vmatprep.subr.mxu0 %v495
    %789 = vmatpush1.msra.mxu0 %v494
    %790 = vmatprep.subr.mxu0 %v498
    %791 = vmatpush1.msra.mxu0 %v497
    %792 = vmatprep.subr.mxu0 %v501
    %793 = vmatpush1.msra.mxu0 %v500
    %794 = vmatprep.subr.mxu0 %v504
    %795 = vmatpush1.msra.mxu0 %v503
    %796 = vmatprep.subr.mxu0 %v507
    %797 = vmatpush1.msra.mxu0 %v506
    %798 = vmatprep.subr.mxu0 %v510
    %799 = vmatpush1.msra.mxu0 %v509
    %800 = vmatprep.subr.mxu0 %v513
    %801 = vmatpush1.msra.mxu0 %v512
    %802 = vmatprep.subr.mxu0 %v516
    %803 = vmatpush1.msra.mxu0 %v515
    %804 = vmatprep.subr.mxu0 %v519
    %805 = vmatpush1.msra.mxu0 %v518
    %806 = vmatprep.subr.mxu0 %v522
    %807 = vmatpush1.msra.mxu0 %v521
    %808 = vmatprep.subr.mxu0 %v525
    %809 = vmatpush1.msra.mxu0 %v524
    %810 = vmatprep.subr.mxu0 %v528
    %811 = vmatpush1.msra.mxu0 %v527
    %812 = vmatprep.subr.mxu0 %v531
    %813 = vmatpush1.msra.mxu0 %v530
    %814 = vmatprep.subr.mxu0 %v534
    %815 = vmatpush1.msra.mxu0 %v533
    %816 = vmatprep.subr.mxu0 %v537
    %817 = vmatpush1.msra.mxu0 %v536
    %818 = vmatprep.subr.mxu0 %v540
    %819 = vmatpush1.msra.mxu0 %v539
    %820 = vmatprep.subr.mxu0 %v543
    %821 = vmatpush1.msra.mxu0 %v542
    %822 = vmatprep.subr.mxu0 %v546
    %823 = vmatpush1.msra.mxu0 %v545
    %824 = vmatprep.subr.mxu0 %v549
    %825 = vmatpush1.msra.mxu0 %v548
    %826 = vmatprep.subr.mxu0 %v552
    %827 = vmatpush1.msra.mxu0 %v551
    %828 = vmatprep.subr.mxu0 %v555
    %829 = vmatpush1.msra.mxu0 %v554
    %830 = vmatprep.subr.mxu0 %v558
    %831 = vmatpush1.msra.mxu0 %v557
    %832 = vmatprep.subr.mxu0 %v561
    %833 = vmatpush1.msra.mxu0 %v560
    %834 = vmatprep.subr.mxu0 %v564
    %835 = vmatpush1.msra.mxu0 %v563
    %836 = vmatprep.subr.mxu0 %v567
    %837 = vmatpush1.msra.mxu0 %v566
    %838 = vmatprep.subr.mxu0 %v570
    %839 = vmatpush1.msra.mxu0 %v569
    %840 = vmatprep.subr.mxu0 %v573
    %841 = vmatpush1.msra.mxu0 %v572
    %842 = vmatprep.subr.mxu0 %v576
    %843 = vmatpush1.msra.mxu0 %v575
    %844 = vmatprep.subr.mxu0 %v579
    %845 = vmatpush1.msra.mxu0 %v578
    %846 = vmatprep.subr.mxu0 %v582
    %847 = vmatpush1.msra.mxu0 %v581
    %848 = vmatprep.subr.mxu0 %v585
    %849 = vmatpush1.msra.mxu0 %v584
    %850 = vmatprep.subr.mxu0 %v588
    %851 = vmatpush1.msra.mxu0 %v587
    %852 = vmatprep.mubr.f32.mxu0 %v300
    %853 = vmatmul.mubr.f32.gmra.mrb[0].mxu0 %v299
    %v854 = vpop.f32.mrb[0].mxu0
    %v855 = vadd.f32 %v784, %v854
    %v856 = vpop.f32.mrb[0].mxu0
    %v857 = vadd.f32 %v786, %v856
    %858 = vdwg.mxu0
    %859 = vmatprep.subr.mxu0 %v591
    %860 = vmatpush1.msra.mxu0 %v590
    %861 = vmatprep.subr.mxu0 %v594
    %862 = vmatpush1.msra.mxu0 %v593
    %863 = vmatprep.subr.mxu0 %v597
    %864 = vmatpush1.msra.mxu0 %v596
    %865 = vmatprep.subr.mxu0 %v600
    %866 = vmatpush1.msra.mxu0 %v599
    %867 = vmatprep.subr.mxu0 %v603
    %868 = vmatpush1.msra.mxu0 %v602
    %869 = vmatprep.subr.mxu0 %v606
    %870 = vmatpush1.msra.mxu0 %v605
    %871 = vmatprep.subr.mxu0 %v609
    %872 = vmatpush1.msra.mxu0 %v608
    %873 = vmatprep.subr.mxu0 %v612
    %874 = vmatpush1.msra.mxu0 %v611
    %875 = vmatprep.subr.mxu0 %v615
    %876 = vmatpush1.msra.mxu0 %v614
    %877 = vmatprep.subr.mxu0 %v618
    %878 = vmatpush1.msra.mxu0 %v617
    %879 = vmatprep.subr.mxu0 %v621
    %880 = vmatpush1.msra.mxu0 %v620
    %881 = vmatprep.subr.mxu0 %v624
    %882 = vmatpush1.msra.mxu0 %v623
    %883 = vmatprep.subr.mxu0 %v627
    %884 = vmatpush1.msra.mxu0 %v626
    %885 = vmatprep.subr.mxu0 %v641
    %886 = vmatpush1.msra.mxu0 %v638
    %887 = vmatprep.subr.mxu0 0.0
    %888 = vmatpush1.msra.mxu0 0.0
    %889 = vmatprep.subr.mxu0 0.0
    %890 = vmatpush1.msra.mxu0 0.0
    %891 = vmatprep.subr.mxu0 0.0
    %892 = vmatpush1.msra.mxu0 0.0
    %893 = vmatprep.subr.mxu0 0.0
    %894 = vmatpush1.msra.mxu0 0.0
    %895 = vmatprep.subr.mxu0 0.0
    %896 = vmatpush1.msra.mxu0 0.0
    %897 = vmatprep.subr.mxu0 0.0
    %898 = vmatpush1.msra.mxu0 0.0
    %899 = vmatprep.subr.mxu0 0.0
    %900 = vmatpush1.msra.mxu0 0.0
    %901 = vmatprep.subr.mxu0 0.0
    %902 = vmatpush1.msra.mxu0 0.0
    %903 = vmatprep.subr.mxu0 0.0
    %904 = vmatpush1.msra.mxu0 0.0
    %905 = vmatprep.subr.mxu0 0.0
    %906 = vmatpush1.msra.mxu0 0.0
    %907 = vmatprep.subr.mxu0 0.0
    %908 = vmatpush1.msra.mxu0 0.0
    %909 = vmatprep.subr.mxu0 0.0
    %910 = vmatpush1.msra.mxu0 0.0
    %911 = vmatprep.subr.mxu0 0.0
    %912 = vmatpush1.msra.mxu0 0.0
    %913 = vmatprep.subr.mxu0 0.0
    %914 = vmatpush1.msra.mxu0 0.0
    %915 = vmatprep.subr.mxu0 0.0
    %916 = vmatpush1.msra.mxu0 0.0
    %917 = vmatprep.subr.mxu0 0.0
    %918 = vmatpush1.msra.mxu0 0.0
    %919 = vmatprep.subr.mxu0 0.0
    %920 = vmatpush1.msra.mxu0 0.0
    %921 = vmatprep.subr.mxu0 0.0
    %922 = vmatpush1.msra.mxu0 0.0
    %923 = vmatprep.mubr.f32.mxu0 0.0
    %924 = vmatmul.mubr.f32.gmra.mrb[0].mxu0 %v634
    %v925 = vpop.f32.mrb[0].mxu0
    %v926 = vadd.f32 %v855, %v925
    %v927 = vpop.f32.mrb[0].mxu0
    %v928 = vadd.f32 %v857, %v927
    %929 = vdwg.mxu0
    %930 = vmatprep.subr.mxu0 0.0
    %931 = vmatpush1.msra.mxu0 %v304
    %932 = vmatprep.subr.mxu0 0.0
    %933 = vmatpush1.msra.mxu0 %v307
    %934 = vmatprep.subr.mxu0 0.0
    %935 = vmatpush1.msra.mxu0 %v310
    %936 = vmatprep.subr.mxu0 0.0
    %937 = vmatpush1.msra.mxu0 %v313
    %938 = vmatprep.subr.mxu0 0.0
    %939 = vmatpush1.msra.mxu0 %v316
    %940 = vmatprep.subr.mxu0 0.0
    %941 = vmatpush1.msra.mxu0 %v319
    %942 = vmatprep.subr.mxu0 0.0
    %943 = vmatpush1.msra.mxu0 %v322
    %944 = vmatprep.subr.mxu0 0.0
    %945 = vmatpush1.msra.mxu0 %v325
    %946 = vmatprep.subr.mxu0 0.0
    %947 = vmatpush1.msra.mxu0 %v328
    %948 = vmatprep.subr.mxu0 0.0
    %949 = vmatpush1.msra.mxu0 %v331
    %950 = vmatprep.subr.mxu0 0.0
    %951 = vmatpush1.msra.mxu0 %v334
    %952 = vmatprep.subr.mxu0 0.0
    %953 = vmatpush1.msra.mxu0 %v337
    %954 = vmatprep.subr.mxu0 0.0
    %955 = vmatpush1.msra.mxu0 %v340
    %956 = vmatprep.subr.mxu0 0.0
    %957 = vmatpush1.msra.mxu0 %v343
    %958 = vmatprep.subr.mxu0 0.0
    %959 = vmatpush1.msra.mxu0 %v346
    %960 = vmatprep.subr.mxu0 0.0
    %961 = vmatpush1.msra.mxu0 %v349
    %962 = vmatprep.subr.mxu0 0.0
    %963 = vmatpush1.msra.mxu0 %v352
    %964 = vmatprep.subr.mxu0 0.0
    %965 = vmatpush1.msra.mxu0 %v355
    %966 = vmatprep.subr.mxu0 0.0
    %967 = vmatpush1.msra.mxu0 %v358
    %968 = vmatprep.subr.mxu0 0.0
    %969 = vmatpush1.msra.mxu0 %v361
    %970 = vmatprep.subr.mxu0 0.0
    %971 = vmatpush1.msra.mxu0 %v364
    %972 = vmatprep.subr.mxu0 0.0
    %973 = vmatpush1.msra.mxu0 %v367
    %974 = vmatprep.subr.mxu0 0.0
    %975 = vmatpush1.msra.mxu0 %v370
    %976 = vmatprep.subr.mxu0 0.0
    %977 = vmatpush1.msra.mxu0 %v373
    %978 = vmatprep.subr.mxu0 0.0
    %979 = vmatpush1.msra.mxu0 %v376
    %980 = vmatprep.subr.mxu0 0.0
    %981 = vmatpush1.msra.mxu0 %v379
    %982 = vmatprep.subr.mxu0 0.0
    %983 = vmatpush1.msra.mxu0 %v382
    %984 = vmatprep.subr.mxu0 0.0
    %985 = vmatpush1.msra.mxu0 %v385
    %986 = vmatprep.subr.mxu0 0.0
    %987 = vmatpush1.msra.mxu0 %v388
    %988 = vmatprep.subr.mxu0 0.0
    %989 = vmatpush1.msra.mxu0 %v391
    %990 = vmatprep.subr.mxu0 0.0
    %991 = vmatpush1.msra.mxu0 %v394
    %992 = vmatprep.subr.mxu0 0.0
    %993 = vmatpush1.msra.mxu0 %v397
    %994 = vmatprep.mubr.f32.mxu0 %v296
    %995 = vmatmul.mubr.f32.gmra.mrb[0].mxu0 %v295
    %v996 = vpop.f32.mrb[0].mxu0
    %v997 = vadd.f32 0.0, %v996
    %v998 = vpop.f32.mrb[0].mxu0
    %999 = vdwg.mxu0
    %1000 = vmatprep.subr.mxu0 0.0
    %1001 = vmatpush1.msra.mxu0 %v400
    %1002 = vmatprep.subr.mxu0 0.0
    %1003 = vmatpush1.msra.mxu0 %v403
    %1004 = vmatprep.subr.mxu0 0.0
    %1005 = vmatpush1.msra.mxu0 %v406
    %1006 = vmatprep.subr.mxu0 0.0
    %1007 = vmatpush1.msra.mxu0 %v409
    %1008 = vmatprep.subr.mxu0 0.0
    %1009 = vmatpush1.msra.mxu0 %v412
    %1010 = vmatprep.subr.mxu0 0.0
    %1011 = vmatpush1.msra.mxu0 %v415
    %1012 = vmatprep.subr.mxu0 0.0
    %1013 = vmatpush1.msra.mxu0 %v418
    %1014 = vmatprep.subr.mxu0 0.0
    %1015 = vmatpush1.msra.mxu0 %v421
    %1016 = vmatprep.subr.mxu0 0.0
    %1017 = vmatpush1.msra.mxu0 %v424
    %1018 = vmatprep.subr.mxu0 0.0
    %1019 = vmatpush1.msra.mxu0 %v427
    %1020 = vmatprep.subr.mxu0 0.0
    %1021 = vmatpush1.msra.mxu0 %v430
    %1022 = vmatprep.subr.mxu0 0.0
    %1023 = vmatpush1.msra.mxu0 %v433
    %1024 = vmatprep.subr.mxu0 0.0
    %1025 = vmatpush1.msra.mxu0 %v436
    %1026 = vmatprep.subr.mxu0 0.0
    %1027 = vmatpush1.msra.mxu0 %v439
    %1028 = vmatprep.subr.mxu0 0.0
    %1029 = vmatpush1.msra.mxu0 %v442
    %1030 = vmatprep.subr.mxu0 0.0
    %1031 = vmatpush1.msra.mxu0 %v445
    %1032 = vmatprep.subr.mxu0 0.0
    %1033 = vmatpush1.msra.mxu0 %v448
    %1034 = vmatprep.subr.mxu0 0.0
    %1035 = vmatpush1.msra.mxu0 %v451
    %1036 = vmatprep.subr.mxu0 0.0
    %1037 = vmatpush1.msra.mxu0 %v454
    %1038 = vmatprep.subr.mxu0 0.0
    %1039 = vmatpush1.msra.mxu0 %v457
    %1040 = vmatprep.subr.mxu0 0.0
    %1041 = vmatpush1.msra.mxu0 %v460
    %1042 = vmatprep.subr.mxu0 0.0
    %1043 = vmatpush1.msra.mxu0 %v463
    %1044 = vmatprep.subr.mxu0 0.0
    %1045 = vmatpush1.msra.mxu0 %v466
    %1046 = vmatprep.subr.mxu0 0.0
    %1047 = vmatpush1.msra.mxu0 %v469
    %1048 = vmatprep.subr.mxu0 0.0
    %1049 = vmatpush1.msra.mxu0 %v472
    %1050 = vmatprep.subr.mxu0 0.0
    %1051 = vmatpush1.msra.mxu0 %v475
    %1052 = vmatprep.subr.mxu0 0.0
    %1053 = vmatpush1.msra.mxu0 %v478
    %1054 = vmatprep.subr.mxu0 0.0
    %1055 = vmatpush1.msra.mxu0 %v481
    %1056 = vmatprep.subr.mxu0 0.0
    %1057 = vmatpush1.msra.mxu0 %v484
    %1058 = vmatprep.subr.mxu0 0.0
    %1059 = vmatpush1.msra.mxu0 %v487
    %1060 = vmatprep.subr.mxu0 0.0
    %1061 = vmatpush1.msra.mxu0 %v490
    %1062 = vmatprep.subr.mxu0 0.0
    %1063 = vmatpush1.msra.mxu0 %v493
    %1064 = vmatprep.mubr.f32.mxu0 %v298
    %1065 = vmatmul.mubr.f32.gmra.mrb[0].mxu0 %v297
    %v1066 = vpop.f32.mrb[0].mxu0
    %v1067 = vadd.f32 %v997, %v1066
    %v1068 = vpop.f32.mrb[0].mxu0
    %1069 = vdwg.mxu0
    %1070 = vmatprep.subr.mxu0 0.0
    %1071 = vmatpush1.msra.mxu0 %v496
    %1072 = vmatprep.subr.mxu0 0.0
    %1073 = vmatpush1.msra.mxu0 %v499
    %1074 = vmatprep.subr.mxu0 0.0
    %1075 = vmatpush1.msra.mxu0 %v502
    %1076 = vmatprep.subr.mxu0 0.0
    %1077 = vmatpush1.msra.mxu0 %v505
    %1078 = vmatprep.subr.mxu0 0.0
    %1079 = vmatpush1.msra.mxu0 %v508
    %1080 = vmatprep.subr.mxu0 0.0
    %1081 = vmatpush1.msra.mxu0 %v511
    %1082 = vmatprep.subr.mxu0 0.0
    %1083 = vmatpush1.msra.mxu0 %v514
    %1084 = vmatprep.subr.mxu0 0.0
    %1085 = vmatpush1.msra.mxu0 %v517
    %1086 = vmatprep.subr.mxu0 0.0
    %1087 = vmatpush1.msra.mxu0 %v520
    %1088 = vmatprep.subr.mxu0 0.0
    %1089 = vmatpush1.msra.mxu0 %v523
    %1090 = vmatprep.subr.mxu0 0.0
    %1091 = vmatpush1.msra.mxu0 %v526
    %1092 = vmatprep.subr.mxu0 0.0
    %1093 = vmatpush1.msra.mxu0 %v529
    %1094 = vmatprep.subr.mxu0 0.0
    %1095 = vmatpush1.msra.mxu0 %v532
    %1096 = vmatprep.subr.mxu0 0.0
    %1097 = vmatpush1.msra.mxu0 %v535
    %1098 = vmatprep.subr.mxu0 0.0
    %1099 = vmatpush1.msra.mxu0 %v538
    %1100 = vmatprep.subr.mxu0 0.0
    %1101 = vmatpush1.msra.mxu0 %v541
    %1102 = vmatprep.subr.mxu0 0.0
    %1103 = vmatpush1.msra.mxu0 %v544
    %1104 = vmatprep.subr.mxu0 0.0
    %1105 = vmatpush1.msra.mxu0 %v547
    %1106 = vmatprep.subr.mxu0 0.0
    %1107 = vmatpush1.msra.mxu0 %v550
    %1108 = vmatprep.subr.mxu0 0.0
    %1109 = vmatpush1.msra.mxu0 %v553
    %1110 = vmatprep.subr.mxu0 0.0
    %1111 = vmatpush1.msra.mxu0 %v556
    %1112 = vmatprep.subr.mxu0 0.0
    %1113 = vmatpush1.msra.mxu0 %v559
    %1114 = vmatprep.subr.mxu0 0.0
    %1115 = vmatpush1.msra.mxu0 %v562
    %1116 = vmatprep.subr.mxu0 0.0
    %1117 = vmatpush1.msra.mxu0 %v565
    %1118 = vmatprep.subr.mxu0 0.0
    %1119 = vmatpush1.msra.mxu0 %v568
    %1120 = vmatprep.subr.mxu0 0.0
    %1121 = vmatpush1.msra.mxu0 %v571
    %1122 = vmatprep.subr.mxu0 0.0
    %1123 = vmatpush1.msra.mxu0 %v574
    %1124 = vmatprep.subr.mxu0 0.0
    %1125 = vmatpush1.msra.mxu0 %v577
    %1126 = vmatprep.subr.mxu0 0.0
    %1127 = vmatpush1.msra.mxu0 %v580
    %1128 = vmatprep.subr.mxu0 0.0
    %1129 = vmatpush1.msra.mxu0 %v583
    %1130 = vmatprep.subr.mxu0 0.0
    %1131 = vmatpush1.msra.mxu0 %v586
    %1132 = vmatprep.subr.mxu0 0.0
    %1133 = vmatpush1.msra.mxu0 %v589
    %1134 = vmatprep.mubr.f32.mxu0 %v300
    %1135 = vmatmul.mubr.f32.gmra.mrb[0].mxu0 %v299
    %v1136 = vpop.f32.mrb[0].mxu0
    %v1137 = vadd.f32 %v1067, %v1136
    %v1138 = vpop.f32.mrb[0].mxu0
    %1139 = vdwg.mxu0
    %1140 = vmatprep.subr.mxu0 0.0
    %1141 = vmatpush1.msra.mxu0 %v592
    %1142 = vmatprep.subr.mxu0 0.0
    %1143 = vmatpush1.msra.mxu0 %v595
    %1144 = vmatprep.subr.mxu0 0.0
    %1145 = vmatpush1.msra.mxu0 %v598
    %1146 = vmatprep.subr.mxu0 0.0
    %1147 = vmatpush1.msra.mxu0 %v601
    %1148 = vmatprep.subr.mxu0 0.0
    %1149 = vmatpush1.msra.mxu0 %v604
    %1150 = vmatprep.subr.mxu0 0.0
    %1151 = vmatpush1.msra.mxu0 %v607
    %1152 = vmatprep.subr.mxu0 0.0
    %1153 = vmatpush1.msra.mxu0 %v610
    %1154 = vmatprep.subr.mxu0 0.0
    %1155 = vmatpush1.msra.mxu0 %v613
    %1156 = vmatprep.subr.mxu0 0.0
    %1157 = vmatpush1.msra.mxu0 %v616
    %1158 = vmatprep.subr.mxu0 0.0
    %1159 = vmatpush1.msra.mxu0 %v619
    %1160 = vmatprep.subr.mxu0 0.0
    %1161 = vmatpush1.msra.mxu0 %v622
    %1162 = vmatprep.subr.mxu0 0.0
    %1163 = vmatpush1.msra.mxu0 %v625
    %1164 = vmatprep.subr.mxu0 0.0
    %1165 = vmatpush1.msra.mxu0 %v628
    %1166 = vmatprep.subr.mxu0 0.0
    %1167 = vmatpush1.msra.mxu0 %v644
    %1168 = vmatprep.subr.mxu0 0.0
    %1169 = vmatpush1.msra.mxu0 0.0
    %1170 = vmatprep.subr.mxu0 0.0
    %1171 = vmatpush1.msra.mxu0 0.0
    %1172 = vmatprep.subr.mxu0 0.0
    %1173 = vmatpush1.msra.mxu0 0.0
    %1174 = vmatprep.subr.mxu0 0.0
    %1175 = vmatpush1.msra.mxu0 0.0
    %1176 = vmatprep.subr.mxu0 0.0
    %1177 = vmatpush1.msra.mxu0 0.0
    %1178 = vmatprep.subr.mxu0 0.0
    %1179 = vmatpush1.msra.mxu0 0.0
    %1180 = vmatprep.subr.mxu0 0.0
    %1181 = vmatpush1.msra.mxu0 0.0
    %1182 = vmatprep.subr.mxu0 0.0
    %1183 = vmatpush1.msra.mxu0 0.0
    %1184 = vmatprep.subr.mxu0 0.0
    %1185 = vmatpush1.msra.mxu0 0.0
    %1186 = vmatprep.subr.mxu0 0.0
    %1187 = vmatpush1.msra.mxu0 0.0
    %1188 = vmatprep.subr.mxu0 0.0
    %1189 = vmatpush1.msra.mxu0 0.0
    %1190 = vmatprep.subr.mxu0 0.0
    %1191 = vmatpush1.msra.mxu0 0.0
    %1192 = vmatprep.subr.mxu0 0.0
    %1193 = vmatpush1.msra.mxu0 0.0
    %1194 = vmatprep.subr.mxu0 0.0
    %1195 = vmatpush1.msra.mxu0 0.0
    %1196 = vmatprep.subr.mxu0 0.0
    %1197 = vmatpush1.msra.mxu0 0.0
    %1198 = vmatprep.subr.mxu0 0.0
    %1199 = vmatpush1.msra.mxu0 0.0
    %1200 = vmatprep.subr.mxu0 0.0
    %1201 = vmatpush1.msra.mxu0 0.0
    %1202 = vmatprep.subr.mxu0 0.0
    %1203 = vmatpush1.msra.mxu0 0.0
    %1204 = vmatprep.mubr.f32.mxu0 0.0
    %1205 = vmatmul.mubr.f32.gmra.mrb[0].mxu0 %v634
    %v1206 = vpop.f32.mrb[0].mxu0
    %v1207 = vadd.f32 %v1137, %v1206
    %v1208 = vpop.f32.mrb[0].mxu0
    %1209 = vdwg.mxu0
    %1210 = vst [vmem:[#allocation3] sm:$0xff] %v926
    %1211 = vst [vmem:[#allocation3 + $0x8] sm:$0xff] %v928
    %vm1212 = vcmask 302080
    %1213 = vst.msk [vmem:[#allocation3 + $0x10] sm:$0xff] %vm1212, %v1207
    %v1214 = vld [vmem:[#allocation3] sm:$0xff]
    %v1215 = vld [vmem:[#allocation3 + $0x8] sm:$0xff]
    %v1216 = vld [vmem:[#allocation3 + $0x10] sm:$0xff]
    %1217 = vst [vmem:[#allocation4] sm:$0xff] %v1214
    %1218 = vst [vmem:[#allocation4 + $0x8] sm:$0xff] %v1215
    %vm1219 = vcmask 285696
    %1220 = vst.msk [vmem:[#allocation4 + $0x10] sm:$0xff] %vm1219, %v1216
    %v1221 = vld [vmem:[#allocation3] sm:$0xff]
    %v1222 = vld [vmem:[#allocation3 + $0x8] sm:$0xff]
    %v1223 = vld [vmem:[#allocation3 + $0x10] sm:$0xff]
    %1227 = vrot.lane.b32.xlu0 %v1221, 127
    %v1228 = vpop.permute.xlu0 %1227
    %1229 = vrot.lane.b32.xlu0 %v1222, 127
    %v1230 = vpop.permute.xlu0 %1229
    %1231 = vrot.lane.b32.xlu0 %v1223, 127
    %v1232 = vpop.permute.xlu0 %1231
    %v1233 = vsel %vm125, %v1228, %v1230
    %v1234 = vsel %vm125, %v1230, %v1232
    %s1238 = scalar_lea.vmem [#allocation4], 24
    %1239 = vst [vmem:[%s1238] sm:$0xff] %v1233
    %1240 = vst [vmem:[%s1238 + $0x8] sm:$0xff] %v1234
    %1241 = vst.msk [vmem:[%s1238 + $0x10] sm:$0xff] %vm1219, %v1232
    %v1242 = vld [vmem:[#allocation3] sm:$0xff]
    %v1243 = vld [vmem:[#allocation3 + $0x8] sm:$0xff]
    %v1244 = vld [vmem:[#allocation3 + $0x10] sm:$0xff]
    %1248 = vrot.lane.b32.xlu0 %v1242, 126
    %v1249 = vpop.permute.xlu0 %1248
    %1250 = vrot.lane.b32.xlu0 %v1243, 126
    %v1251 = vpop.permute.xlu0 %1250
    %1252 = vrot.lane.b32.xlu0 %v1244, 126
    %v1253 = vpop.permute.xlu0 %1252
    %v1254 = vsel %vm175, %v1249, %v1251
    %v1255 = vsel %vm175, %v1251, %v1253
    %s1259 = scalar_lea.vmem [#allocation4], 48
    %1260 = vst [vmem:[%s1259] sm:$0xff] %v1254
    %1261 = vst [vmem:[%s1259 + $0x8] sm:$0xff] %v1255
    %1262 = vst.msk [vmem:[%s1259 + $0x10] sm:$0xff] %vm1219, %v1253
    %s1263 = sld [smem:[#allocation9]]
    %s1264 = sld [smem:[#allocation9 + $0x1]]
    %s1265 = sld [smem:[#allocation9 + $0x2]]
    %s1266 = sld [smem:[#allocation11]]
    %v1267 = vld [vmem:[#allocation4] sm:$0xff]
    %v1268 = vld [vmem:[#allocation4 + $0x8] sm:$0xff]
    %v1269 = vld [vmem:[#allocation4 + $0x10] sm:$0xff]
    %v1270 = vstv %s1263
    %v1271 = vmul.f32 %v1270, %v1267
    %v1272 = vmul.f32 %v1270, %v1268
    %v1273 = vmul.f32 %v1270, %v1269
    %v1274 = vld [vmem:[%s1238] sm:$0xff]
    %v1275 = vld [vmem:[%s1238 + $0x8] sm:$0xff]
    %v1276 = vld [vmem:[%s1238 + $0x10] sm:$0xff]
    %v1277 = vstv %s1264
    %v1278 = vmul.f32 %v1277, %v1274
    %v1279 = vmul.f32 %v1277, %v1275
    %v1280 = vmul.f32 %v1277, %v1276
    %v1281 = vadd.f32 %v1271, %v1278
    %v1282 = vadd.f32 %v1272, %v1279
    %v1283 = vadd.f32 %v1273, %v1280
    %v1284 = vld [vmem:[%s1259] sm:$0xff]
    %v1285 = vld [vmem:[%s1259 + $0x8] sm:$0xff]
    %v1286 = vld [vmem:[%s1259 + $0x10] sm:$0xff]
    %v1287 = vstv %s1265
    %v1288 = vmul.f32 %v1287, %v1284
    %v1289 = vmul.f32 %v1287, %v1285
    %v1290 = vmul.f32 %v1287, %v1286
    %v1291 = vadd.f32 %v1281, %v1288
    %v1292 = vadd.f32 %v1282, %v1289
    %v1293 = vadd.f32 %v1283, %v1290
    %v1294 = vstv %s1266
    %v1295 = vadd.f32 %v1291, %v1294
    %v1296 = vadd.f32 %v1292, %v1294
    %v1297 = vadd.f32 %v1293, %v1294
    %v1298 = vmax.f32 %v1295, 0.0
    %v1299 = vmax.f32 %v1296, 0.0
    %v1300 = vmax.f32 %v1297, 0.0
    %1301 = vst [vmem:[#allocation5] sm:$0xff] %v1298
    %1302 = vst [vmem:[#allocation5 + $0x8] sm:$0xff] %v1299
    %1303 = vst.msk [vmem:[#allocation5 + $0x10] sm:$0xff] %vm1219, %v1300
    %v1304 = vld [vmem:[#allocation5] sm:$0xff]
    %v1305 = vld [vmem:[#allocation5 + $0x8] sm:$0xff]
    %v1306 = vld [vmem:[#allocation5 + $0x10] sm:$0xff]
    %1310 = vrot.lane.b32.xlu0 %v1304, 127
    %v1311 = vpop.permute.xlu0 %1310
    %1312 = vrot.lane.b32.xlu0 %v1305, 127
    %v1313 = vpop.permute.xlu0 %1312
    %1314 = vrot.lane.b32.xlu0 %v1306, 127
    %v1315 = vpop.permute.xlu0 %1314
    %v1316 = vsel %vm125, %v1311, %v1313
    %v1317 = vsel %vm125, %v1313, %v1315
    %v1321 = vmax.f32 %v1304, %v1316
    %v1322 = vmax.f32 %v1305, %v1317
    %v1323 = vmax.f32 %v1306, %v1315
    %1324 = vrot.lane.b32.xlu0 %v1304, 126
    %v1325 = vpop.permute.xlu0 %1324
    %1326 = vrot.lane.b32.xlu0 %v1305, 126
    %v1327 = vpop.permute.xlu0 %1326
    %1328 = vrot.lane.b32.xlu0 %v1306, 126
    %v1329 = vpop.permute.xlu0 %1328
    %v1330 = vsel %vm175, %v1325, %v1327
    %v1331 = vsel %vm175, %v1327, %v1329
    %v1335 = vmax.f32 %v1321, %v1330
    %v1336 = vmax.f32 %v1322, %v1331
    %v1337 = vmax.f32 %v1323, %v1329
    %v1338 = vld [vmem:[%s6] sm:$0xff]
    %v1339 = vld [vmem:[%s6 + $0x8] sm:$0xff]
    %v1340 = vld [vmem:[%s6 + $0x10] sm:$0xff]
    %v1341 = vld [vmem:[%s6 + $0x18] sm:$0xff]
    %v1342 = vld [vmem:[%s6 + $0x20] sm:$0xff]
    %v1343 = vld [vmem:[%s6 + $0x28] sm:$0xff]
    %v1344 = vld [vmem:[%s6 + $0x30] sm:$0xff]
    %v1345 = vld [vmem:[%s6 + $0x38] sm:$0xff]
    %v1346 = vld [vmem:[%s6 + $0x40] sm:$0xff]
    %v1347 = vld [vmem:[%s6 + $0x48] sm:$0xff]
    %v1348 = vld [vmem:[%s6 + $0x50] sm:$0xff]
    %v1349 = vld [vmem:[%s6 + $0x58] sm:$0xff]
    %v1350 = vld [vmem:[%s6 + $0x60] sm:$0xff]
    %v1351 = vld [vmem:[%s6 + $0x68] sm:$0xff]
    %v1352 = vld [vmem:[%s6 + $0x70] sm:$0xff]
    %v1353 = vld [vmem:[%s6 + $0x78] sm:$0xff]
    %v1354 = vld [vmem:[%s6 + $0x80] sm:$0xff]
    %v1355 = vld [vmem:[%s6 + $0x88] sm:$0xff]
    %v1356 = vld [vmem:[%s6 + $0x90] sm:$0xff]
    %v1357 = vld [vmem:[%s6 + $0x98] sm:$0xff]
    %v1358 = vld [vmem:[%s6 + $0xa0] sm:$0xff]
    %v1359 = vld [vmem:[%s6 + $0xa8] sm:$0xff]
    %v1360 = vld [vmem:[%s6 + $0xb0] sm:$0xff]
    %v1361 = vld [vmem:[%s6 + $0xb8] sm:$0xff]
    %v1362 = vld [vmem:[%s6 + $0xc0] sm:$0xff]
    %v1363 = vld [vmem:[%s6 + $0xc8] sm:$0xff]
    %v1364 = vld [vmem:[%s6 + $0xd0] sm:$0xff]
    %v1365 = vld [vmem:[%s6 + $0xd8] sm:$0xff]
    %v1366 = vld [vmem:[%s6 + $0xe0] sm:$0xff]
    %v1367 = vld [vmem:[%s6 + $0xe8] sm:$0xff]
    %v1368 = vld [vmem:[%s6 + $0xf0] sm:$0xff]
    %v1369 = vld [vmem:[%s6 + $0xf8] sm:$0xff]
    %v1370 = vld [vmem:[%s6 + $0x100] sm:$0xff]
    %v1371 = vld [vmem:[%s6 + $0x108] sm:$0xff]
    %v1372 = vld [vmem:[%s6 + $0x110] sm:$0xff]
    %v1373 = vld [vmem:[%s6 + $0x118] sm:$0xff]
    %v1374 = vld [vmem:[%s6 + $0x120] sm:$0x1]
    %s1375 = sld [smem:[#allocation9 + $0x80]]
    %s1376 = sld [smem:[#allocation9 + $0x81]]
    %s1377 = sld [smem:[#allocation9 + $0x82]]
    %s1378 = sld [smem:[#allocation11 + $0x1]]
    %v1379 = vld [vmem:[#allocation4] sm:$0xff]
    %v1380 = vld [vmem:[#allocation4 + $0x8] sm:$0xff]
    %v1381 = vld [vmem:[#allocation4 + $0x10] sm:$0xff]
    %v1382 = vstv %s1375
    %v1383 = vmul.f32 %v1382, %v1379
    %v1384 = vmul.f32 %v1382, %v1380
    %v1385 = vmul.f32 %v1382, %v1381
    %v1386 = vld [vmem:[%s1238] sm:$0xff]
    %v1387 = vld [vmem:[%s1238 + $0x8] sm:$0xff]
    %v1388 = vld [vmem:[%s1238 + $0x10] sm:$0xff]
    %v1389 = vstv %s1376
    %v1390 = vmul.f32 %v1389, %v1386
    %v1391 = vmul.f32 %v1389, %v1387
    %v1392 = vmul.f32 %v1389, %v1388
    %v1393 = vadd.f32 %v1383, %v1390
    %v1394 = vadd.f32 %v1384, %v1391
    %v1395 = vadd.f32 %v1385, %v1392
    %v1396 = vld [vmem:[%s1259] sm:$0xff]
    %v1397 = vld [vmem:[%s1259 + $0x8] sm:$0xff]
    %v1398 = vld [vmem:[%s1259 + $0x10] sm:$0xff]
    %v1399 = vstv %s1377
    %v1400 = vmul.f32 %v1399, %v1396
    %v1401 = vmul.f32 %v1399, %v1397
    %v1402 = vmul.f32 %v1399, %v1398
    %v1403 = vadd.f32 %v1393, %v1400
    %v1404 = vadd.f32 %v1394, %v1401
    %v1405 = vadd.f32 %v1395, %v1402
    %v1406 = vstv %s1378
    %v1407 = vadd.f32 %v1403, %v1406
    %v1408 = vadd.f32 %v1404, %v1406
    %v1409 = vadd.f32 %v1405, %v1406
    %v1410 = vmax.f32 %v1407, 0.0
    %v1411 = vmax.f32 %v1408, 0.0
    %v1412 = vmax.f32 %v1409, 0.0
    %1413 = vst [vmem:[#allocation5] sm:$0xff] %v1410
    %1414 = vst [vmem:[#allocation5 + $0x8] sm:$0xff] %v1411
    %1415 = vst.msk [vmem:[#allocation5 + $0x10] sm:$0xff] %vm1219, %v1412
    %v1416 = vld [vmem:[#allocation5] sm:$0xff]
    %v1417 = vld [vmem:[#allocation5 + $0x8] sm:$0xff]
    %v1418 = vld [vmem:[#allocation5 + $0x10] sm:$0xff]
    %1422 = vrot.lane.b32.xlu0 %v1416, 127
    %v1423 = vpop.permute.xlu0 %1422
    %1424 = vrot.lane.b32.xlu0 %v1417, 127
    %v1425 = vpop.permute.xlu0 %1424
    %1426 = vrot.lane.b32.xlu0 %v1418, 127
    %v1427 = vpop.permute.xlu0 %1426
    %v1428 = vsel %vm125, %v1423, %v1425
    %v1429 = vsel %vm125, %v1425, %v1427
    %v1433 = vmax.f32 %v1416, %v1428
    %v1434 = vmax.f32 %v1417, %v1429
    %v1435 = vmax.f32 %v1418, %v1427
    %1436 = vrot.lane.b32.xlu0 %v1416, 126
    %v1437 = vpop.permute.xlu0 %1436
    %1438 = vrot.lane.b32.xlu0 %v1417, 126
    %v1439 = vpop.permute.xlu0 %1438
    %1440 = vrot.lane.b32.xlu0 %v1418, 126
    %v1441 = vpop.permute.xlu0 %1440
    %v1442 = vsel %vm175, %v1437, %v1439
    %v1443 = vsel %vm175, %v1439, %v1441
    %v1447 = vmax.f32 %v1433, %v1442
    %v1448 = vmax.f32 %v1434, %v1443
    %v1449 = vmax.f32 %v1435, %v1441
    %s1450 = scalar_lea.vmem %s6, 296
    %v1451 = vld [vmem:[%s1450] sm:$0xff]
    %v1452 = vld [vmem:[%s1450 + $0x8] sm:$0xff]
    %v1453 = vld [vmem:[%s1450 + $0x10] sm:$0xff]
    %v1454 = vld [vmem:[%s1450 + $0x18] sm:$0xff]
    %v1455 = vld [vmem:[%s1450 + $0x20] sm:$0xff]
    %v1456 = vld [vmem:[%s1450 + $0x28] sm:$0xff]
    %v1457 = vld [vmem:[%s1450 + $0x30] sm:$0xff]
    %v1458 = vld [vmem:[%s1450 + $0x38] sm:$0xff]
    %v1459 = vld [vmem:[%s1450 + $0x40] sm:$0xff]
    %v1460 = vld [vmem:[%s1450 + $0x48] sm:$0xff]
    %v1461 = vld [vmem:[%s1450 + $0x50] sm:$0xff]
    %v1462 = vld [vmem:[%s1450 + $0x58] sm:$0xff]
    %v1463 = vld [vmem:[%s1450 + $0x60] sm:$0xff]
    %v1464 = vld [vmem:[%s1450 + $0x68] sm:$0xff]
    %v1465 = vld [vmem:[%s1450 + $0x70] sm:$0xff]
    %v1466 = vld [vmem:[%s1450 + $0x78] sm:$0xff]
    %v1467 = vld [vmem:[%s1450 + $0x80] sm:$0xff]
    %v1468 = vld [vmem:[%s1450 + $0x88] sm:$0xff]
    %v1469 = vld [vmem:[%s1450 + $0x90] sm:$0xff]
    %v1470 = vld [vmem:[%s1450 + $0x98] sm:$0xff]
    %v1471 = vld [vmem:[%s1450 + $0xa0] sm:$0xff]
    %v1472 = vld [vmem:[%s1450 + $0xa8] sm:$0xff]
    %v1473 = vld [vmem:[%s1450 + $0xb0] sm:$0xff]
    %v1474 = vld [vmem:[%s1450 + $0xb8] sm:$0xff]
    %v1475 = vld [vmem:[%s1450 + $0xc0] sm:$0xff]
    %v1476 = vld [vmem:[%s1450 + $0xc8] sm:$0xff]
    %v1477 = vld [vmem:[%s1450 + $0xd0] sm:$0xff]
    %v1478 = vld [vmem:[%s1450 + $0xd8] sm:$0xff]
    %v1479 = vld [vmem:[%s1450 + $0xe0] sm:$0xff]
    %v1480 = vld [vmem:[%s1450 + $0xe8] sm:$0xff]
    %v1481 = vld [vmem:[%s1450 + $0xf0] sm:$0xff]
    %v1482 = vld [vmem:[%s1450 + $0xf8] sm:$0xff]
    %v1483 = vld [vmem:[%s1450 + $0x100] sm:$0xff]
    %v1484 = vld [vmem:[%s1450 + $0x108] sm:$0xff]
    %v1485 = vld [vmem:[%s1450 + $0x110] sm:$0xff]
    %v1486 = vld [vmem:[%s1450 + $0x118] sm:$0xff]
    %v1487 = vld [vmem:[%s1450 + $0x120] sm:$0x1]
    %vm1488 = vcmask 269312
    %v1490 = vsel %vm1488, %v1449, 0
    %vm1492 = vcmask 1040384
    %v1494 = vsel %vm1492, %v1487, 0
    %1496 = vmatprep.subr.mxu0 0.0
    %1497 = vmatpush1.msra.mxu0 %v1451
    %1498 = vmatprep.subr.mxu0 0.0
    %1499 = vmatpush1.msra.mxu0 %v1452
    %1500 = vmatprep.subr.mxu0 0.0
    %1501 = vmatpush1.msra.mxu0 %v1453
    %1502 = vmatprep.subr.mxu0 0.0
    %1503 = vmatpush1.msra.mxu0 %v1454
    %1504 = vmatprep.subr.mxu0 0.0
    %1505 = vmatpush1.msra.mxu0 %v1455
    %1506 = vmatprep.subr.mxu0 0.0
    %1507 = vmatpush1.msra.mxu0 %v1456
    %1508 = vmatprep.subr.mxu0 0.0
    %1509 = vmatpush1.msra.mxu0 %v1457
    %1510 = vmatprep.subr.mxu0 0.0
    %1511 = vmatpush1.msra.mxu0 %v1458
    %1512 = vmatprep.subr.mxu0 0.0
    %1513 = vmatpush1.msra.mxu0 %v1459
    %1514 = vmatprep.subr.mxu0 0.0
    %1515 = vmatpush1.msra.mxu0 %v1460
    %1516 = vmatprep.subr.mxu0 0.0
    %1517 = vmatpush1.msra.mxu0 %v1461
    %1518 = vmatprep.subr.mxu0 0.0
    %1519 = vmatpush1.msra.mxu0 %v1462
    %1520 = vmatprep.subr.mxu0 0.0
    %1521 = vmatpush1.msra.mxu0 %v1463
    %1522 = vmatprep.subr.mxu0 0.0
    %1523 = vmatpush1.msra.mxu0 %v1464
    %1524 = vmatprep.subr.mxu0 0.0
    %1525 = vmatpush1.msra.mxu0 %v1465
    %1526 = vmatprep.subr.mxu0 0.0
    %1527 = vmatpush1.msra.mxu0 %v1466
    %1528 = vmatprep.subr.mxu0 0.0
    %1529 = vmatpush1.msra.mxu0 %v1467
    %1530 = vmatprep.subr.mxu0 0.0
    %1531 = vmatpush1.msra.mxu0 %v1468
    %1532 = vmatprep.subr.mxu0 0.0
    %1533 = vmatpush1.msra.mxu0 %v1469
    %1534 = vmatprep.subr.mxu0 0.0
    %1535 = vmatpush1.msra.mxu0 %v1470
    %1536 = vmatprep.subr.mxu0 0.0
    %1537 = vmatpush1.msra.mxu0 %v1471
    %1538 = vmatprep.subr.mxu0 0.0
    %1539 = vmatpush1.msra.mxu0 %v1472
    %1540 = vmatprep.subr.mxu0 0.0
    %1541 = vmatpush1.msra.mxu0 %v1473
    %1542 = vmatprep.subr.mxu0 0.0
    %1543 = vmatpush1.msra.mxu0 %v1474
    %1544 = vmatprep.subr.mxu0 0.0
    %1545 = vmatpush1.msra.mxu0 %v1475
    %1546 = vmatprep.subr.mxu0 0.0
    %1547 = vmatpush1.msra.mxu0 %v1476
    %1548 = vmatprep.subr.mxu0 0.0
    %1549 = vmatpush1.msra.mxu0 %v1477
    %1550 = vmatprep.subr.mxu0 0.0
    %1551 = vmatpush1.msra.mxu0 %v1478
    %1552 = vmatprep.subr.mxu0 0.0
    %1553 = vmatpush1.msra.mxu0 %v1479
    %1554 = vmatprep.subr.mxu0 0.0
    %1555 = vmatpush1.msra.mxu0 %v1480
    %1556 = vmatprep.subr.mxu0 0.0
    %1557 = vmatpush1.msra.mxu0 %v1481
    %1558 = vmatprep.subr.mxu0 0.0
    %1559 = vmatpush1.msra.mxu0 %v1482
    %1560 = vmatprep.mubr.f32.mxu0 %v1448
    %1561 = vmatmul.mubr.f32.gmra.mrb[0].mxu0 %v1447
    %v1562 = vpop.f32.mrb[0].mxu0
    %v1563 = vadd.f32 0.0, %v1562
    %v1564 = vpop.f32.mrb[0].mxu0
    %1565 = vdwg.mxu0
    %1566 = vmatprep.subr.mxu0 0.0
    %1567 = vmatpush1.msra.mxu0 %v1483
    %1568 = vmatprep.subr.mxu0 0.0
    %1569 = vmatpush1.msra.mxu0 %v1484
    %1570 = vmatprep.subr.mxu0 0.0
    %1571 = vmatpush1.msra.mxu0 %v1485
    %1572 = vmatprep.subr.mxu0 0.0
    %1573 = vmatpush1.msra.mxu0 %v1486
    %1574 = vmatprep.subr.mxu0 0.0
    %1575 = vmatpush1.msra.mxu0 %v1494
    %1576 = vmatprep.subr.mxu0 0.0
    %1577 = vmatpush1.msra.mxu0 0.0
    %1578 = vmatprep.subr.mxu0 0.0
    %1579 = vmatpush1.msra.mxu0 0.0
    %1580 = vmatprep.subr.mxu0 0.0
    %1581 = vmatpush1.msra.mxu0 0.0
    %1582 = vmatprep.subr.mxu0 0.0
    %1583 = vmatpush1.msra.mxu0 0.0
    %1584 = vmatprep.subr.mxu0 0.0
    %1585 = vmatpush1.msra.mxu0 0.0
    %1586 = vmatprep.subr.mxu0 0.0
    %1587 = vmatpush1.msra.mxu0 0.0
    %1588 = vmatprep.subr.mxu0 0.0
    %1589 = vmatpush1.msra.mxu0 0.0
    %1590 = vmatprep.subr.mxu0 0.0
    %1591 = vmatpush1.msra.mxu0 0.0
    %1592 = vmatprep.subr.mxu0 0.0
    %1593 = vmatpush1.msra.mxu0 0.0
    %1594 = vmatprep.subr.mxu0 0.0
    %1595 = vmatpush1.msra.mxu0 0.0
    %1596 = vmatprep.subr.mxu0 0.0
    %1597 = vmatpush1.msra.mxu0 0.0
    %1598 = vmatprep.subr.mxu0 0.0
    %1599 = vmatpush1.msra.mxu0 0.0
    %1600 = vmatprep.subr.mxu0 0.0
    %1601 = vmatpush1.msra.mxu0 0.0
    %1602 = vmatprep.subr.mxu0 0.0
    %1603 = vmatpush1.msra.mxu0 0.0
    %1604 = vmatprep.subr.mxu0 0.0
    %1605 = vmatpush1.msra.mxu0 0.0
    %1606 = vmatprep.subr.mxu0 0.0
    %1607 = vmatpush1.msra.mxu0 0.0
    %1608 = vmatprep.subr.mxu0 0.0
    %1609 = vmatpush1.msra.mxu0 0.0
    %1610 = vmatprep.subr.mxu0 0.0
    %1611 = vmatpush1.msra.mxu0 0.0
    %1612 = vmatprep.subr.mxu0 0.0
    %1613 = vmatpush1.msra.mxu0 0.0
    %1614 = vmatprep.subr.mxu0 0.0
    %1615 = vmatpush1.msra.mxu0 0.0
    %1616 = vmatprep.subr.mxu0 0.0
    %1617 = vmatpush1.msra.mxu0 0.0
    %1618 = vmatprep.subr.mxu0 0.0
    %1619 = vmatpush1.msra.mxu0 0.0
    %1620 = vmatprep.subr.mxu0 0.0
    %1621 = vmatpush1.msra.mxu0 0.0
    %1622 = vmatprep.subr.mxu0 0.0
    %1623 = vmatpush1.msra.mxu0 0.0
    %1624 = vmatprep.subr.mxu0 0.0
    %1625 = vmatpush1.msra.mxu0 0.0
    %1626 = vmatprep.subr.mxu0 0.0
    %1627 = vmatpush1.msra.mxu0 0.0
    %1628 = vmatprep.subr.mxu0 0.0
    %1629 = vmatpush1.msra.mxu0 0.0
    %1630 = vmatprep.mubr.f32.mxu0 0.0
    %1631 = vmatmul.mubr.f32.gmra.mrb[0].mxu0 %v1490
    %v1632 = vpop.f32.mrb[0].mxu0
    %v1633 = vadd.f32 %v1563, %v1632
    %v1634 = vpop.f32.mrb[0].mxu0
    %1635 = vdwg.mxu0
    %v1637 = vsel %vm1488, %v1337, 0
    %v1640 = vsel %vm1492, %v1374, 0
    %1642 = vmatprep.subr.mxu0 0.0
    %1643 = vmatpush1.msra.mxu0 %v1338
    %1644 = vmatprep.subr.mxu0 0.0
    %1645 = vmatpush1.msra.mxu0 %v1339
    %1646 = vmatprep.subr.mxu0 0.0
    %1647 = vmatpush1.msra.mxu0 %v1340
    %1648 = vmatprep.subr.mxu0 0.0
    %1649 = vmatpush1.msra.mxu0 %v1341
    %1650 = vmatprep.subr.mxu0 0.0
    %1651 = vmatpush1.msra.mxu0 %v1342
    %1652 = vmatprep.subr.mxu0 0.0
    %1653 = vmatpush1.msra.mxu0 %v1343
    %1654 = vmatprep.subr.mxu0 0.0
    %1655 = vmatpush1.msra.mxu0 %v1344
    %1656 = vmatprep.subr.mxu0 0.0
    %1657 = vmatpush1.msra.mxu0 %v1345
    %1658 = vmatprep.subr.mxu0 0.0
    %1659 = vmatpush1.msra.mxu0 %v1346
    %1660 = vmatprep.subr.mxu0 0.0
    %1661 = vmatpush1.msra.mxu0 %v1347
    %1662 = vmatprep.subr.mxu0 0.0
    %1663 = vmatpush1.msra.mxu0 %v1348
    %1664 = vmatprep.subr.mxu0 0.0
    %1665 = vmatpush1.msra.mxu0 %v1349
    %1666 = vmatprep.subr.mxu0 0.0
    %1667 = vmatpush1.msra.mxu0 %v1350
    %1668 = vmatprep.subr.mxu0 0.0
    %1669 = vmatpush1.msra.mxu0 %v1351
    %1670 = vmatprep.subr.mxu0 0.0
    %1671 = vmatpush1.msra.mxu0 %v1352
    %1672 = vmatprep.subr.mxu0 0.0
    %1673 = vmatpush1.msra.mxu0 %v1353
    %1674 = vmatprep.subr.mxu0 0.0
    %1675 = vmatpush1.msra.mxu0 %v1354
    %1676 = vmatprep.subr.mxu0 0.0
    %1677 = vmatpush1.msra.mxu0 %v1355
    %1678 = vmatprep.subr.mxu0 0.0
    %1679 = vmatpush1.msra.mxu0 %v1356
    %1680 = vmatprep.subr.mxu0 0.0
    %1681 = vmatpush1.msra.mxu0 %v1357
    %1682 = vmatprep.subr.mxu0 0.0
    %1683 = vmatpush1.msra.mxu0 %v1358
    %1684 = vmatprep.subr.mxu0 0.0
    %1685 = vmatpush1.msra.mxu0 %v1359
    %1686 = vmatprep.subr.mxu0 0.0
    %1687 = vmatpush1.msra.mxu0 %v1360
    %1688 = vmatprep.subr.mxu0 0.0
    %1689 = vmatpush1.msra.mxu0 %v1361
    %1690 = vmatprep.subr.mxu0 0.0
    %1691 = vmatpush1.msra.mxu0 %v1362
    %1692 = vmatprep.subr.mxu0 0.0
    %1693 = vmatpush1.msra.mxu0 %v1363
    %1694 = vmatprep.subr.mxu0 0.0
    %1695 = vmatpush1.msra.mxu0 %v1364
    %1696 = vmatprep.subr.mxu0 0.0
    %1697 = vmatpush1.msra.mxu0 %v1365
    %1698 = vmatprep.subr.mxu0 0.0
    %1699 = vmatpush1.msra.mxu0 %v1366
    %1700 = vmatprep.subr.mxu0 0.0
    %1701 = vmatpush1.msra.mxu0 %v1367
    %1702 = vmatprep.subr.mxu0 0.0
    %1703 = vmatpush1.msra.mxu0 %v1368
    %1704 = vmatprep.subr.mxu0 0.0
    %1705 = vmatpush1.msra.mxu0 %v1369
    %1706 = vmatprep.mubr.f32.mxu0 %v1336
    %1707 = vmatmul.mubr.f32.gmra.mrb[0].mxu0 %v1335
    %v1708 = vpop.f32.mrb[0].mxu0
    %v1709 = vadd.f32 %v1633, %v1708
    %v1710 = vpop.f32.mrb[0].mxu0
    %1711 = vdwg.mxu0
    %1712 = vmatprep.subr.mxu0 0.0
    %1713 = vmatpush1.msra.mxu0 %v1370
    %1714 = vmatprep.subr.mxu0 0.0
    %1715 = vmatpush1.msra.mxu0 %v1371
    %1716 = vmatprep.subr.mxu0 0.0
    %1717 = vmatpush1.msra.mxu0 %v1372
    %1718 = vmatprep.subr.mxu0 0.0
    %1719 = vmatpush1.msra.mxu0 %v1373
    %1720 = vmatprep.subr.mxu0 0.0
    %1721 = vmatpush1.msra.mxu0 %v1640
    %1722 = vmatprep.subr.mxu0 0.0
    %1723 = vmatpush1.msra.mxu0 0.0
    %1724 = vmatprep.subr.mxu0 0.0
    %1725 = vmatpush1.msra.mxu0 0.0
    %1726 = vmatprep.subr.mxu0 0.0
    %1727 = vmatpush1.msra.mxu0 0.0
    %1728 = vmatprep.subr.mxu0 0.0
    %1729 = vmatpush1.msra.mxu0 0.0
    %1730 = vmatprep.subr.mxu0 0.0
    %1731 = vmatpush1.msra.mxu0 0.0
    %1732 = vmatprep.subr.mxu0 0.0
    %1733 = vmatpush1.msra.mxu0 0.0
    %1734 = vmatprep.subr.mxu0 0.0
    %1735 = vmatpush1.msra.mxu0 0.0
    %1736 = vmatprep.subr.mxu0 0.0
    %1737 = vmatpush1.msra.mxu0 0.0
    %1738 = vmatprep.subr.mxu0 0.0
    %1739 = vmatpush1.msra.mxu0 0.0
    %1740 = vmatprep.subr.mxu0 0.0
    %1741 = vmatpush1.msra.mxu0 0.0
    %1742 = vmatprep.subr.mxu0 0.0
    %1743 = vmatpush1.msra.mxu0 0.0
    %1744 = vmatprep.subr.mxu0 0.0
    %1745 = vmatpush1.msra.mxu0 0.0
    %1746 = vmatprep.subr.mxu0 0.0
    %1747 = vmatpush1.msra.mxu0 0.0
    %1748 = vmatprep.subr.mxu0 0.0
    %1749 = vmatpush1.msra.mxu0 0.0
    %1750 = vmatprep.subr.mxu0 0.0
    %1751 = vmatpush1.msra.mxu0 0.0
    %1752 = vmatprep.subr.mxu0 0.0
    %1753 = vmatpush1.msra.mxu0 0.0
    %1754 = vmatprep.subr.mxu0 0.0
    %1755 = vmatpush1.msra.mxu0 0.0
    %1756 = vmatprep.subr.mxu0 0.0
    %1757 = vmatpush1.msra.mxu0 0.0
    %1758 = vmatprep.subr.mxu0 0.0
    %1759 = vmatpush1.msra.mxu0 0.0
    %1760 = vmatprep.subr.mxu0 0.0
    %1761 = vmatpush1.msra.mxu0 0.0
    %1762 = vmatprep.subr.mxu0 0.0
    %1763 = vmatpush1.msra.mxu0 0.0
    %1764 = vmatprep.subr.mxu0 0.0
    %1765 = vmatpush1.msra.mxu0 0.0
    %1766 = vmatprep.subr.mxu0 0.0
    %1767 = vmatpush1.msra.mxu0 0.0
    %1768 = vmatprep.subr.mxu0 0.0
    %1769 = vmatpush1.msra.mxu0 0.0
    %1770 = vmatprep.subr.mxu0 0.0
    %1771 = vmatpush1.msra.mxu0 0.0
    %1772 = vmatprep.subr.mxu0 0.0
    %1773 = vmatpush1.msra.mxu0 0.0
    %1774 = vmatprep.subr.mxu0 0.0
    %1775 = vmatpush1.msra.mxu0 0.0
    %1776 = vmatprep.mubr.f32.mxu0 0.0
    %1777 = vmatmul.mubr.f32.gmra.mrb[0].mxu0 %v1637
    %v1778 = vpop.f32.mrb[0].mxu0
    %v1779 = vadd.f32 %v1709, %v1778
    %v1780 = vpop.f32.mrb[0].mxu0
    %1781 = vdwg.mxu0
    %s1782 = sld [smem:[#allocation9 + $0x100]]
    %s1783 = sld [smem:[#allocation9 + $0x101]]
    %s1784 = sld [smem:[#allocation9 + $0x102]]
    %s1785 = sld [smem:[#allocation11 + $0x2]]
    %v1786 = vld [vmem:[#allocation4] sm:$0xff]
    %v1787 = vld [vmem:[#allocation4 + $0x8] sm:$0xff]
    %v1788 = vld [vmem:[#allocation4 + $0x10] sm:$0xff]
    %v1789 = vstv %s1782
    %v1790 = vmul.f32 %v1789, %v1786
    %v1791 = vmul.f32 %v1789, %v1787
    %v1792 = vmul.f32 %v1789, %v1788
    %v1793 = vld [vmem:[%s1238] sm:$0xff]
    %v1794 = vld [vmem:[%s1238 + $0x8] sm:$0xff]
    %v1795 = vld [vmem:[%s1238 + $0x10] sm:$0xff]
    %v1796 = vstv %s1783
    %v1797 = vmul.f32 %v1796, %v1793
    %v1798 = vmul.f32 %v1796, %v1794
    %v1799 = vmul.f32 %v1796, %v1795
    %v1800 = vadd.f32 %v1790, %v1797
    %v1801 = vadd.f32 %v1791, %v1798
    %v1802 = vadd.f32 %v1792, %v1799
    %v1803 = vld [vmem:[%s1259] sm:$0xff]
    %v1804 = vld [vmem:[%s1259 + $0x8] sm:$0xff]
    %v1805 = vld [vmem:[%s1259 + $0x10] sm:$0xff]
    %v1806 = vstv %s1784
    %v1807 = vmul.f32 %v1806, %v1803
    %v1808 = vmul.f32 %v1806, %v1804
    %v1809 = vmul.f32 %v1806, %v1805
    %v1810 = vadd.f32 %v1800, %v1807
    %v1811 = vadd.f32 %v1801, %v1808
    %v1812 = vadd.f32 %v1802, %v1809
    %v1813 = vstv %s1785
    %v1814 = vadd.f32 %v1810, %v1813
    %v1815 = vadd.f32 %v1811, %v1813
    %v1816 = vadd.f32 %v1812, %v1813
    %v1817 = vmax.f32 %v1814, 0.0
    %v1818 = vmax.f32 %v1815, 0.0
    %v1819 = vmax.f32 %v1816, 0.0
    %1820 = vst [vmem:[#allocation5] sm:$0xff] %v1817
    %1821 = vst [vmem:[#allocation5 + $0x8] sm:$0xff] %v1818
    %1822 = vst.msk [vmem:[#allocation5 + $0x10] sm:$0xff] %vm1219, %v1819
    %v1823 = vld [vmem:[#allocation5] sm:$0xff]
    %v1824 = vld [vmem:[#allocation5 + $0x8] sm:$0xff]
    %v1825 = vld [vmem:[#allocation5 + $0x10] sm:$0xff]
    %1829 = vrot.lane.b32.xlu0 %v1823, 127
    %v1830 = vpop.permute.xlu0 %1829
    %1831 = vrot.lane.b32.xlu0 %v1824, 127
    %v1832 = vpop.permute.xlu0 %1831
    %1833 = vrot.lane.b32.xlu0 %v1825, 127
    %v1834 = vpop.permute.xlu0 %1833
    %v1835 = vsel %vm125, %v1830, %v1832
    %v1836 = vsel %vm125, %v1832, %v1834
    %v1840 = vmax.f32 %v1823, %v1835
    %v1841 = vmax.f32 %v1824, %v1836
    %v1842 = vmax.f32 %v1825, %v1834
    %1843 = vrot.lane.b32.xlu0 %v1823, 126
    %v1844 = vpop.permute.xlu0 %1843
    %1845 = vrot.lane.b32.xlu0 %v1824, 126
    %v1846 = vpop.permute.xlu0 %1845
    %1847 = vrot.lane.b32.xlu0 %v1825, 126
    %v1848 = vpop.permute.xlu0 %1847
    %v1849 = vsel %vm175, %v1844, %v1846
    %v1850 = vsel %vm175, %v1846, %v1848
    %v1854 = vmax.f32 %v1840, %v1849
    %v1855 = vmax.f32 %v1841, %v1850
    %v1856 = vmax.f32 %v1842, %v1848
    %s1857 = scalar_lea.vmem %s6, 592
    %v1858 = vld [vmem:[%s1857] sm:$0xff]
    %v1859 = vld [vmem:[%s1857 + $0x8] sm:$0xff]
    %v1860 = vld [vmem:[%s1857 + $0x10] sm:$0xff]
    %v1861 = vld [vmem:[%s1857 + $0x18] sm:$0xff]
    %v1862 = vld [vmem:[%s1857 + $0x20] sm:$0xff]
    %v1863 = vld [vmem:[%s1857 + $0x28] sm:$0xff]
    %v1864 = vld [vmem:[%s1857 + $0x30] sm:$0xff]
    %v1865 = vld [vmem:[%s1857 + $0x38] sm:$0xff]
    %v1866 = vld [vmem:[%s1857 + $0x40] sm:$0xff]
    %v1867 = vld [vmem:[%s1857 + $0x48] sm:$0xff]
    %v1868 = vld [vmem:[%s1857 + $0x50] sm:$0xff]
    %v1869 = vld [vmem:[%s1857 + $0x58] sm:$0xff]
    %v1870 = vld [vmem:[%s1857 + $0x60] sm:$0xff]
    %v1871 = vld [vmem:[%s1857 + $0x68] sm:$0xff]
    %v1872 = vld [vmem:[%s1857 + $0x70] sm:$0xff]
    %v1873 = vld [vmem:[%s1857 + $0x78] sm:$0xff]
    %v1874 = vld [vmem:[%s1857 + $0x80] sm:$0xff]
    %v1875 = vld [vmem:[%s1857 + $0x88] sm:$0xff]
    %v1876 = vld [vmem:[%s1857 + $0x90] sm:$0xff]
    %v1877 = vld [vmem:[%s1857 + $0x98] sm:$0xff]
    %v1878 = vld [vmem:[%s1857 + $0xa0] sm:$0xff]
    %v1879 = vld [vmem:[%s1857 + $0xa8] sm:$0xff]
    %v1880 = vld [vmem:[%s1857 + $0xb0] sm:$0xff]
    %v1881 = vld [vmem:[%s1857 + $0xb8] sm:$0xff]
    %v1882 = vld [vmem:[%s1857 + $0xc0] sm:$0xff]
    %v1883 = vld [vmem:[%s1857 + $0xc8] sm:$0xff]
    %v1884 = vld [vmem:[%s1857 + $0xd0] sm:$0xff]
    %v1885 = vld [vmem:[%s1857 + $0xd8] sm:$0xff]
    %v1886 = vld [vmem:[%s1857 + $0xe0] sm:$0xff]
    %v1887 = vld [vmem:[%s1857 + $0xe8] sm:$0xff]
    %v1888 = vld [vmem:[%s1857 + $0xf0] sm:$0xff]
    %v1889 = vld [vmem:[%s1857 + $0xf8] sm:$0xff]
    %v1890 = vld [vmem:[%s1857 + $0x100] sm:$0xff]
    %v1891 = vld [vmem:[%s1857 + $0x108] sm:$0xff]
    %v1892 = vld [vmem:[%s1857 + $0x110] sm:$0xff]
    %v1893 = vld [vmem:[%s1857 + $0x118] sm:$0xff]
    %v1894 = vld [vmem:[%s1857 + $0x120] sm:$0x1]
    %v1896 = vsel %vm1488, %v1856, 0
    %v1899 = vsel %vm1492, %v1894, 0
    %1901 = vmatprep.subr.mxu0 0.0
    %1902 = vmatpush1.msra.mxu0 %v1858
    %1903 = vmatprep.subr.mxu0 0.0
    %1904 = vmatpush1.msra.mxu0 %v1859
    %1905 = vmatprep.subr.mxu0 0.0
    %1906 = vmatpush1.msra.mxu0 %v1860
    %1907 = vmatprep.subr.mxu0 0.0
    %1908 = vmatpush1.msra.mxu0 %v1861
    %1909 = vmatprep.subr.mxu0 0.0
    %1910 = vmatpush1.msra.mxu0 %v1862
    %1911 = vmatprep.subr.mxu0 0.0
    %1912 = vmatpush1.msra.mxu0 %v1863
    %1913 = vmatprep.subr.mxu0 0.0
    %1914 = vmatpush1.msra.mxu0 %v1864
    %1915 = vmatprep.subr.mxu0 0.0
    %1916 = vmatpush1.msra.mxu0 %v1865
    %1917 = vmatprep.subr.mxu0 0.0
    %1918 = vmatpush1.msra.mxu0 %v1866
    %1919 = vmatprep.subr.mxu0 0.0
    %1920 = vmatpush1.msra.mxu0 %v1867
    %1921 = vmatprep.subr.mxu0 0.0
    %1922 = vmatpush1.msra.mxu0 %v1868
    %1923 = vmatprep.subr.mxu0 0.0
    %1924 = vmatpush1.msra.mxu0 %v1869
    %1925 = vmatprep.subr.mxu0 0.0
    %1926 = vmatpush1.msra.mxu0 %v1870
    %1927 = vmatprep.subr.mxu0 0.0
    %1928 = vmatpush1.msra.mxu0 %v1871
    %1929 = vmatprep.subr.mxu0 0.0
    %1930 = vmatpush1.msra.mxu0 %v1872
    %1931 = vmatprep.subr.mxu0 0.0
    %1932 = vmatpush1.msra.mxu0 %v1873
    %1933 = vmatprep.subr.mxu0 0.0
    %1934 = vmatpush1.msra.mxu0 %v1874
    %1935 = vmatprep.subr.mxu0 0.0
    %1936 = vmatpush1.msra.mxu0 %v1875
    %1937 = vmatprep.subr.mxu0 0.0
    %1938 = vmatpush1.msra.mxu0 %v1876
    %1939 = vmatprep.subr.mxu0 0.0
    %1940 = vmatpush1.msra.mxu0 %v1877
    %1941 = vmatprep.subr.mxu0 0.0
    %1942 = vmatpush1.msra.mxu0 %v1878
    %1943 = vmatprep.subr.mxu0 0.0
    %1944 = vmatpush1.msra.mxu0 %v1879
    %1945 = vmatprep.subr.mxu0 0.0
    %1946 = vmatpush1.msra.mxu0 %v1880
    %1947 = vmatprep.subr.mxu0 0.0
    %1948 = vmatpush1.msra.mxu0 %v1881
    %1949 = vmatprep.subr.mxu0 0.0
    %1950 = vmatpush1.msra.mxu0 %v1882
    %1951 = vmatprep.subr.mxu0 0.0
    %1952 = vmatpush1.msra.mxu0 %v1883
    %1953 = vmatprep.subr.mxu0 0.0
    %1954 = vmatpush1.msra.mxu0 %v1884
    %1955 = vmatprep.subr.mxu0 0.0
    %1956 = vmatpush1.msra.mxu0 %v1885
    %1957 = vmatprep.subr.mxu0 0.0
    %1958 = vmatpush1.msra.mxu0 %v1886
    %1959 = vmatprep.subr.mxu0 0.0
    %1960 = vmatpush1.msra.mxu0 %v1887
    %1961 = vmatprep.subr.mxu0 0.0
    %1962 = vmatpush1.msra.mxu0 %v1888
    %1963 = vmatprep.subr.mxu0 0.0
    %1964 = vmatpush1.msra.mxu0 %v1889
    %1965 = vmatprep.mubr.f32.mxu0 %v1855
    %1966 = vmatmul.mubr.f32.gmra.mrb[0].mxu0 %v1854
    %v1967 = vpop.f32.mrb[0].mxu0
    %v1968 = vadd.f32 0.0, %v1967
    %v1969 = vpop.f32.mrb[0].mxu0
    %1970 = vdwg.mxu0
    %1971 = vmatprep.subr.mxu0 0.0
    %1972 = vmatpush1.msra.mxu0 %v1890
    %1973 = vmatprep.subr.mxu0 0.0
    %1974 = vmatpush1.msra.mxu0 %v1891
    %1975 = vmatprep.subr.mxu0 0.0
    %1976 = vmatpush1.msra.mxu0 %v1892
    %1977 = vmatprep.subr.mxu0 0.0
    %1978 = vmatpush1.msra.mxu0 %v1893
    %1979 = vmatprep.subr.mxu0 0.0
    %1980 = vmatpush1.msra.mxu0 %v1899
    %1981 = vmatprep.subr.mxu0 0.0
    %1982 = vmatpush1.msra.mxu0 0.0
    %1983 = vmatprep.subr.mxu0 0.0
    %1984 = vmatpush1.msra.mxu0 0.0
    %1985 = vmatprep.subr.mxu0 0.0
    %1986 = vmatpush1.msra.mxu0 0.0
    %1987 = vmatprep.subr.mxu0 0.0
    %1988 = vmatpush1.msra.mxu0 0.0
    %1989 = vmatprep.subr.mxu0 0.0
    %1990 = vmatpush1.msra.mxu0 0.0
    %1991 = vmatprep.subr.mxu0 0.0
    %1992 = vmatpush1.msra.mxu0 0.0
    %1993 = vmatprep.subr.mxu0 0.0
    %1994 = vmatpush1.msra.mxu0 0.0
    %1995 = vmatprep.subr.mxu0 0.0
    %1996 = vmatpush1.msra.mxu0 0.0
    %1997 = vmatprep.subr.mxu0 0.0
    %1998 = vmatpush1.msra.mxu0 0.0
    %1999 = vmatprep.subr.mxu0 0.0
    %2000 = vmatpush1.msra.mxu0 0.0
    %2001 = vmatprep.subr.mxu0 0.0
    %2002 = vmatpush1.msra.mxu0 0.0
    %2003 = vmatprep.subr.mxu0 0.0
    %2004 = vmatpush1.msra.mxu0 0.0
    %2005 = vmatprep.subr.mxu0 0.0
    %2006 = vmatpush1.msra.mxu0 0.0
    %2007 = vmatprep.subr.mxu0 0.0
    %2008 = vmatpush1.msra.mxu0 0.0
    %2009 = vmatprep.subr.mxu0 0.0
    %2010 = vmatpush1.msra.mxu0 0.0
    %2011 = vmatprep.subr.mxu0 0.0
    %2012 = vmatpush1.msra.mxu0 0.0
    %2013 = vmatprep.subr.mxu0 0.0
    %2014 = vmatpush1.msra.mxu0 0.0
    %2015 = vmatprep.subr.mxu0 0.0
    %2016 = vmatpush1.msra.mxu0 0.0
    %2017 = vmatprep.subr.mxu0 0.0
    %2018 = vmatpush1.msra.mxu0 0.0
    %2019 = vmatprep.subr.mxu0 0.0
    %2020 = vmatpush1.msra.mxu0 0.0
    %2021 = vmatprep.subr.mxu0 0.0
    %2022 = vmatpush1.msra.mxu0 0.0
    %2023 = vmatprep.subr.mxu0 0.0
    %2024 = vmatpush1.msra.mxu0 0.0
    %2025 = vmatprep.subr.mxu0 0.0
    %2026 = vmatpush1.msra.mxu0 0.0
    %2027 = vmatprep.subr.mxu0 0.0
    %2028 = vmatpush1.msra.mxu0 0.0
    %2029 = vmatprep.subr.mxu0 0.0
    %2030 = vmatpush1.msra.mxu0 0.0
    %2031 = vmatprep.subr.mxu0 0.0
    %2032 = vmatpush1.msra.mxu0 0.0
    %2033 = vmatprep.subr.mxu0 0.0
    %2034 = vmatpush1.msra.mxu0 0.0
    %2035 = vmatprep.mubr.f32.mxu0 0.0
    %2036 = vmatmul.mubr.f32.gmra.mrb[0].mxu0 %v1896
    %v2037 = vpop.f32.mrb[0].mxu0
    %v2038 = vadd.f32 %v1968, %v2037
    %v2039 = vpop.f32.mrb[0].mxu0
    %2040 = vdwg.mxu0
    %v2041 = vadd.f32 %v1779, %v2038
    %s2042 = sld [smem:[#allocation9 + $0x180]]
    %s2043 = sld [smem:[#allocation9 + $0x181]]
    %s2044 = sld [smem:[#allocation9 + $0x182]]
    %s2045 = sld [smem:[#allocation11 + $0x3]]
    %v2046 = vld [vmem:[#allocation4] sm:$0xff]
    %v2047 = vld [vmem:[#allocation4 + $0x8] sm:$0xff]
    %v2048 = vld [vmem:[#allocation4 + $0x10] sm:$0xff]
    %v2049 = vstv %s2042
    %v2050 = vmul.f32 %v2049, %v2046
    %v2051 = vmul.f32 %v2049, %v2047
    %v2052 = vmul.f32 %v2049, %v2048
    %v2053 = vld [vmem:[%s1238] sm:$0xff]
    %v2054 = vld [vmem:[%s1238 + $0x8] sm:$0xff]
    %v2055 = vld [vmem:[%s1238 + $0x10] sm:$0xff]
    %v2056 = vstv %s2043
    %v2057 = vmul.f32 %v2056, %v2053
    %v2058 = vmul.f32 %v2056, %v2054
    %v2059 = vmul.f32 %v2056, %v2055
    %v2060 = vadd.f32 %v2050, %v2057
    %v2061 = vadd.f32 %v2051, %v2058
    %v2062 = vadd.f32 %v2052, %v2059
    %v2063 = vld [vmem:[%s1259] sm:$0xff]
    %v2064 = vld [vmem:[%s1259 + $0x8] sm:$0xff]
    %v2065 = vld [vmem:[%s1259 + $0x10] sm:$0xff]
    %v2066 = vstv %s2044
    %v2067 = vmul.f32 %v2066, %v2063
    %v2068 = vmul.f32 %v2066, %v2064
    %v2069 = vmul.f32 %v2066, %v2065
    %v2070 = vadd.f32 %v2060, %v2067
    %v2071 = vadd.f32 %v2061, %v2068
    %v2072 = vadd.f32 %v2062, %v2069
    %v2073 = vstv %s2045
    %v2074 = vadd.f32 %v2070, %v2073
    %v2075 = vadd.f32 %v2071, %v2073
    %v2076 = vadd.f32 %v2072, %v2073
    %v2077 = vmax.f32 %v2074, 0.0
    %v2078 = vmax.f32 %v2075, 0.0
    %v2079 = vmax.f32 %v2076, 0.0
    %2080 = vst [vmem:[#allocation5] sm:$0xff] %v2077
    %2081 = vst [vmem:[#allocation5 + $0x8] sm:$0xff] %v2078
    %2082 = vst.msk [vmem:[#allocation5 + $0x10] sm:$0xff] %vm1219, %v2079
    %v2083 = vld [vmem:[#allocation5] sm:$0xff]
    %v2084 = vld [vmem:[#allocation5 + $0x8] sm:$0xff]
    %v2085 = vld [vmem:[#allocation5 + $0x10] sm:$0xff]
    %2089 = vrot.lane.b32.xlu0 %v2083, 127
    %v2090 = vpop.permute.xlu0 %2089
    %2091 = vrot.lane.b32.xlu0 %v2084, 127
    %v2092 = vpop.permute.xlu0 %2091
    %2093 = vrot.lane.b32.xlu0 %v2085, 127
    %v2094 = vpop.permute.xlu0 %2093
    %v2095 = vsel %vm125, %v2090, %v2092
    %v2096 = vsel %vm125, %v2092, %v2094
    %v2100 = vmax.f32 %v2083, %v2095
    %v2101 = vmax.f32 %v2084, %v2096
    %v2102 = vmax.f32 %v2085, %v2094
    %2103 = vrot.lane.b32.xlu0 %v2083, 126
    %v2104 = vpop.permute.xlu0 %2103
    %2105 = vrot.lane.b32.xlu0 %v2084, 126
    %v2106 = vpop.permute.xlu0 %2105
    %2107 = vrot.lane.b32.xlu0 %v2085, 126
    %v2108 = vpop.permute.xlu0 %2107
    %v2109 = vsel %vm175, %v2104, %v2106
    %v2110 = vsel %vm175, %v2106, %v2108
    %v2114 = vmax.f32 %v2100, %v2109
    %v2115 = vmax.f32 %v2101, %v2110
    %v2116 = vmax.f32 %v2102, %v2108
    %s2117 = scalar_lea.vmem %s6, 888
    %v2118 = vld [vmem:[%s2117] sm:$0xff]
    %v2119 = vld [vmem:[%s2117 + $0x8] sm:$0xff]
    %v2120 = vld [vmem:[%s2117 + $0x10] sm:$0xff]
    %v2121 = vld [vmem:[%s2117 + $0x18] sm:$0xff]
    %v2122 = vld [vmem:[%s2117 + $0x20] sm:$0xff]
    %v2123 = vld [vmem:[%s2117 + $0x28] sm:$0xff]
    %v2124 = vld [vmem:[%s2117 + $0x30] sm:$0xff]
    %v2125 = vld [vmem:[%s2117 + $0x38] sm:$0xff]
    %v2126 = vld [vmem:[%s2117 + $0x40] sm:$0xff]
    %v2127 = vld [vmem:[%s2117 + $0x48] sm:$0xff]
    %v2128 = vld [vmem:[%s2117 + $0x50] sm:$0xff]
    %v2129 = vld [vmem:[%s2117 + $0x58] sm:$0xff]
    %v2130 = vld [vmem:[%s2117 + $0x60] sm:$0xff]
    %v2131 = vld [vmem:[%s2117 + $0x68] sm:$0xff]
    %v2132 = vld [vmem:[%s2117 + $0x70] sm:$0xff]
    %v2133 = vld [vmem:[%s2117 + $0x78] sm:$0xff]
    %v2134 = vld [vmem:[%s2117 + $0x80] sm:$0xff]
    %v2135 = vld [vmem:[%s2117 + $0x88] sm:$0xff]
    %v2136 = vld [vmem:[%s2117 + $0x90] sm:$0xff]
    %v2137 = vld [vmem:[%s2117 + $0x98] sm:$0xff]
    %v2138 = vld [vmem:[%s2117 + $0xa0] sm:$0xff]
    %v2139 = vld [vmem:[%s2117 + $0xa8] sm:$0xff]
    %v2140 = vld [vmem:[%s2117 + $0xb0] sm:$0xff]
    %v2141 = vld [vmem:[%s2117 + $0xb8] sm:$0xff]
    %v2142 = vld [vmem:[%s2117 + $0xc0] sm:$0xff]
    %v2143 = vld [vmem:[%s2117 + $0xc8] sm:$0xff]
    %v2144 = vld [vmem:[%s2117 + $0xd0] sm:$0xff]
    %v2145 = vld [vmem:[%s2117 + $0xd8] sm:$0xff]
    %v2146 = vld [vmem:[%s2117 + $0xe0] sm:$0xff]
    %v2147 = vld [vmem:[%s2117 + $0xe8] sm:$0xff]
    %v2148 = vld [vmem:[%s2117 + $0xf0] sm:$0xff]
    %v2149 = vld [vmem:[%s2117 + $0xf8] sm:$0xff]
    %v2150 = vld [vmem:[%s2117 + $0x100] sm:$0xff]
    %v2151 = vld [vmem:[%s2117 + $0x108] sm:$0xff]
    %v2152 = vld [vmem:[%s2117 + $0x110] sm:$0xff]
    %v2153 = vld [vmem:[%s2117 + $0x118] sm:$0xff]
    %v2154 = vld [vmem:[%s2117 + $0x120] sm:$0x1]
    %v2156 = vsel %vm1488, %v2116, 0
    %v2159 = vsel %vm1492, %v2154, 0
    %2161 = vmatprep.subr.mxu0 0.0
    %2162 = vmatpush1.msra.mxu0 %v2118
    %2163 = vmatprep.subr.mxu0 0.0
    %2164 = vmatpush1.msra.mxu0 %v2119
    %2165 = vmatprep.subr.mxu0 0.0
    %2166 = vmatpush1.msra.mxu0 %v2120
    %2167 = vmatprep.subr.mxu0 0.0
    %2168 = vmatpush1.msra.mxu0 %v2121
    %2169 = vmatprep.subr.mxu0 0.0
    %2170 = vmatpush1.msra.mxu0 %v2122
    %2171 = vmatprep.subr.mxu0 0.0
    %2172 = vmatpush1.msra.mxu0 %v2123
    %2173 = vmatprep.subr.mxu0 0.0
    %2174 = vmatpush1.msra.mxu0 %v2124
    %2175 = vmatprep.subr.mxu0 0.0
    %2176 = vmatpush1.msra.mxu0 %v2125
    %2177 = vmatprep.subr.mxu0 0.0
    %2178 = vmatpush1.msra.mxu0 %v2126
    %2179 = vmatprep.subr.mxu0 0.0
    %2180 = vmatpush1.msra.mxu0 %v2127
    %2181 = vmatprep.subr.mxu0 0.0
    %2182 = vmatpush1.msra.mxu0 %v2128
    %2183 = vmatprep.subr.mxu0 0.0
    %2184 = vmatpush1.msra.mxu0 %v2129
    %2185 = vmatprep.subr.mxu0 0.0
    %2186 = vmatpush1.msra.mxu0 %v2130
    %2187 = vmatprep.subr.mxu0 0.0
    %2188 = vmatpush1.msra.mxu0 %v2131
    %2189 = vmatprep.subr.mxu0 0.0
    %2190 = vmatpush1.msra.mxu0 %v2132
    %2191 = vmatprep.subr.mxu0 0.0
    %2192 = vmatpush1.msra.mxu0 %v2133
    %2193 = vmatprep.subr.mxu0 0.0
    %2194 = vmatpush1.msra.mxu0 %v2134
    %2195 = vmatprep.subr.mxu0 0.0
    %2196 = vmatpush1.msra.mxu0 %v2135
    %2197 = vmatprep.subr.mxu0 0.0
    %2198 = vmatpush1.msra.mxu0 %v2136
    %2199 = vmatprep.subr.mxu0 0.0
    %2200 = vmatpush1.msra.mxu0 %v2137
    %2201 = vmatprep.subr.mxu0 0.0
    %2202 = vmatpush1.msra.mxu0 %v2138
    %2203 = vmatprep.subr.mxu0 0.0
    %2204 = vmatpush1.msra.mxu0 %v2139
    %2205 = vmatprep.subr.mxu0 0.0
    %2206 = vmatpush1.msra.mxu0 %v2140
    %2207 = vmatprep.subr.mxu0 0.0
    %2208 = vmatpush1.msra.mxu0 %v2141
    %2209 = vmatprep.subr.mxu0 0.0
    %2210 = vmatpush1.msra.mxu0 %v2142
    %2211 = vmatprep.subr.mxu0 0.0
    %2212 = vmatpush1.msra.mxu0 %v2143
    %2213 = vmatprep.subr.mxu0 0.0
    %2214 = vmatpush1.msra.mxu0 %v2144
    %2215 = vmatprep.subr.mxu0 0.0
    %2216 = vmatpush1.msra.mxu0 %v2145
    %2217 = vmatprep.subr.mxu0 0.0
    %2218 = vmatpush1.msra.mxu0 %v2146
    %2219 = vmatprep.subr.mxu0 0.0
    %2220 = vmatpush1.msra.mxu0 %v2147
    %2221 = vmatprep.subr.mxu0 0.0
    %2222 = vmatpush1.msra.mxu0 %v2148
    %2223 = vmatprep.subr.mxu0 0.0
    %2224 = vmatpush1.msra.mxu0 %v2149
    %2225 = vmatprep.mubr.f32.mxu0 %v2115
    %2226 = vmatmul.mubr.f32.gmra.mrb[0].mxu0 %v2114
    %v2227 = vpop.f32.mrb[0].mxu0
    %v2228 = vadd.f32 0.0, %v2227
    %v2229 = vpop.f32.mrb[0].mxu0
    %2230 = vdwg.mxu0
    %2231 = vmatprep.subr.mxu0 0.0
    %2232 = vmatpush1.msra.mxu0 %v2150
    %2233 = vmatprep.subr.mxu0 0.0
    %2234 = vmatpush1.msra.mxu0 %v2151
    %2235 = vmatprep.subr.mxu0 0.0
    %2236 = vmatpush1.msra.mxu0 %v2152
    %2237 = vmatprep.subr.mxu0 0.0
    %2238 = vmatpush1.msra.mxu0 %v2153
    %2239 = vmatprep.subr.mxu0 0.0
    %2240 = vmatpush1.msra.mxu0 %v2159
    %2241 = vmatprep.subr.mxu0 0.0
    %2242 = vmatpush1.msra.mxu0 0.0
    %2243 = vmatprep.subr.mxu0 0.0
    %2244 = vmatpush1.msra.mxu0 0.0
    %2245 = vmatprep.subr.mxu0 0.0
    %2246 = vmatpush1.msra.mxu0 0.0
    %2247 = vmatprep.subr.mxu0 0.0
    %2248 = vmatpush1.msra.mxu0 0.0
    %2249 = vmatprep.subr.mxu0 0.0
    %2250 = vmatpush1.msra.mxu0 0.0
    %2251 = vmatprep.subr.mxu0 0.0
    %2252 = vmatpush1.msra.mxu0 0.0
    %2253 = vmatprep.subr.mxu0 0.0
    %2254 = vmatpush1.msra.mxu0 0.0
    %2255 = vmatprep.subr.mxu0 0.0
    %2256 = vmatpush1.msra.mxu0 0.0
    %2257 = vmatprep.subr.mxu0 0.0
    %2258 = vmatpush1.msra.mxu0 0.0
    %2259 = vmatprep.subr.mxu0 0.0
    %2260 = vmatpush1.msra.mxu0 0.0
    %2261 = vmatprep.subr.mxu0 0.0
    %2262 = vmatpush1.msra.mxu0 0.0
    %2263 = vmatprep.subr.mxu0 0.0
    %2264 = vmatpush1.msra.mxu0 0.0
    %2265 = vmatprep.subr.mxu0 0.0
    %2266 = vmatpush1.msra.mxu0 0.0
    %2267 = vmatprep.subr.mxu0 0.0
    %2268 = vmatpush1.msra.mxu0 0.0
    %2269 = vmatprep.subr.mxu0 0.0
    %2270 = vmatpush1.msra.mxu0 0.0
    %2271 = vmatprep.subr.mxu0 0.0
    %2272 = vmatpush1.msra.mxu0 0.0
    %2273 = vmatprep.subr.mxu0 0.0
    %2274 = vmatpush1.msra.mxu0 0.0
    %2275 = vmatprep.subr.mxu0 0.0
    %2276 = vmatpush1.msra.mxu0 0.0
    %2277 = vmatprep.subr.mxu0 0.0
    %2278 = vmatpush1.msra.mxu0 0.0
    %2279 = vmatprep.subr.mxu0 0.0
    %2280 = vmatpush1.msra.mxu0 0.0
    %2281 = vmatprep.subr.mxu0 0.0
    %2282 = vmatpush1.msra.mxu0 0.0
    %2283 = vmatprep.subr.mxu0 0.0
    %2284 = vmatpush1.msra.mxu0 0.0
    %2285 = vmatprep.subr.mxu0 0.0
    %2286 = vmatpush1.msra.mxu0 0.0
    %2287 = vmatprep.subr.mxu0 0.0
    %2288 = vmatpush1.msra.mxu0 0.0
    %2289 = vmatprep.subr.mxu0 0.0
    %2290 = vmatpush1.msra.mxu0 0.0
    %2291 = vmatprep.subr.mxu0 0.0
    %2292 = vmatpush1.msra.mxu0 0.0
    %2293 = vmatprep.subr.mxu0 0.0
    %2294 = vmatpush1.msra.mxu0 0.0
    %2295 = vmatprep.mubr.f32.mxu0 0.0
    %2296 = vmatmul.mubr.f32.gmra.mrb[0].mxu0 %v2156
    %v2297 = vpop.f32.mrb[0].mxu0
    %v2298 = vadd.f32 %v2228, %v2297
    %v2299 = vpop.f32.mrb[0].mxu0
    %2300 = vdwg.mxu0
    %v2301 = vadd.f32 %v2041, %v2298
    %s2302 = sld [smem:[#allocation9 + $0x200]]
    %s2303 = sld [smem:[#allocation9 + $0x201]]
    %s2304 = sld [smem:[#allocation9 + $0x202]]
    %s2305 = sld [smem:[#allocation11 + $0x4]]
    %v2306 = vld [vmem:[#allocation4] sm:$0xff]
    %v2307 = vld [vmem:[#allocation4 + $0x8] sm:$0xff]
    %v2308 = vld [vmem:[#allocation4 + $0x10] sm:$0xff]
    %v2309 = vstv %s2302
    %v2310 = vmul.f32 %v2309, %v2306
    %v2311 = vmul.f32 %v2309, %v2307
    %v2312 = vmul.f32 %v2309, %v2308
    %v2313 = vld [vmem:[%s1238] sm:$0xff]
    %v2314 = vld [vmem:[%s1238 + $0x8] sm:$0xff]
    %v2315 = vld [vmem:[%s1238 + $0x10] sm:$0xff]
    %v2316 = vstv %s2303
    %v2317 = vmul.f32 %v2316, %v2313
    %v2318 = vmul.f32 %v2316, %v2314
    %v2319 = vmul.f32 %v2316, %v2315
    %v2320 = vadd.f32 %v2310, %v2317
    %v2321 = vadd.f32 %v2311, %v2318
    %v2322 = vadd.f32 %v2312, %v2319
    %v2323 = vld [vmem:[%s1259] sm:$0xff]
    %v2324 = vld [vmem:[%s1259 + $0x8] sm:$0xff]
    %v2325 = vld [vmem:[%s1259 + $0x10] sm:$0xff]
    %v2326 = vstv %s2304
    %v2327 = vmul.f32 %v2326, %v2323
    %v2328 = vmul.f32 %v2326, %v2324
    %v2329 = vmul.f32 %v2326, %v2325
    %v2330 = vadd.f32 %v2320, %v2327
    %v2331 = vadd.f32 %v2321, %v2328
    %v2332 = vadd.f32 %v2322, %v2329
    %v2333 = vstv %s2305
    %v2334 = vadd.f32 %v2330, %v2333
    %v2335 = vadd.f32 %v2331, %v2333
    %v2336 = vadd.f32 %v2332, %v2333
    %v2337 = vmax.f32 %v2334, 0.0
    %v2338 = vmax.f32 %v2335, 0.0
    %v2339 = vmax.f32 %v2336, 0.0
    %2340 = vst [vmem:[#allocation5] sm:$0xff] %v2337
    %2341 = vst [vmem:[#allocation5 + $0x8] sm:$0xff] %v2338
    %2342 = vst.msk [vmem:[#allocation5 + $0x10] sm:$0xff] %vm1219, %v2339
    %v2343 = vld [vmem:[#allocation5] sm:$0xff]
    %v2344 = vld [vmem:[#allocation5 + $0x8] sm:$0xff]
    %v2345 = vld [vmem:[#allocation5 + $0x10] sm:$0xff]
    %2349 = vrot.lane.b32.xlu0 %v2343, 127
    %v2350 = vpop.permute.xlu0 %2349
    %2351 = vrot.lane.b32.xlu0 %v2344, 127
    %v2352 = vpop.permute.xlu0 %2351
    %2353 = vrot.lane.b32.xlu0 %v2345, 127
    %v2354 = vpop.permute.xlu0 %2353
    %v2355 = vsel %vm125, %v2350, %v2352
    %v2356 = vsel %vm125, %v2352, %v2354
    %v2360 = vmax.f32 %v2343, %v2355
    %v2361 = vmax.f32 %v2344, %v2356
    %v2362 = vmax.f32 %v2345, %v2354
    %2363 = vrot.lane.b32.xlu0 %v2343, 126
    %v2364 = vpop.permute.xlu0 %2363
    %2365 = vrot.lane.b32.xlu0 %v2344, 126
    %v2366 = vpop.permute.xlu0 %2365
    %2367 = vrot.lane.b32.xlu0 %v2345, 126
    %v2368 = vpop.permute.xlu0 %2367
    %v2369 = vsel %vm175, %v2364, %v2366
    %v2370 = vsel %vm175, %v2366, %v2368
    %v2374 = vmax.f32 %v2360, %v2369
    %v2375 = vmax.f32 %v2361, %v2370
    %v2376 = vmax.f32 %v2362, %v2368
    %s2377 = scalar_lea.vmem %s6, 1184
    %v2378 = vld [vmem:[%s2377] sm:$0xff]
    %v2379 = vld [vmem:[%s2377 + $0x8] sm:$0xff]
    %v2380 = vld [vmem:[%s2377 + $0x10] sm:$0xff]
    %v2381 = vld [vmem:[%s2377 + $0x18] sm:$0xff]
    %v2382 = vld [vmem:[%s2377 + $0x20] sm:$0xff]
    %v2383 = vld [vmem:[%s2377 + $0x28] sm:$0xff]
    %v2384 = vld [vmem:[%s2377 + $0x30] sm:$0xff]
    %v2385 = vld [vmem:[%s2377 + $0x38] sm:$0xff]
    %v2386 = vld [vmem:[%s2377 + $0x40] sm:$0xff]
    %v2387 = vld [vmem:[%s2377 + $0x48] sm:$0xff]
    %v2388 = vld [vmem:[%s2377 + $0x50] sm:$0xff]
    %v2389 = vld [vmem:[%s2377 + $0x58] sm:$0xff]
    %v2390 = vld [vmem:[%s2377 + $0x60] sm:$0xff]
    %v2391 = vld [vmem:[%s2377 + $0x68] sm:$0xff]
    %v2392 = vld [vmem:[%s2377 + $0x70] sm:$0xff]
    %v2393 = vld [vmem:[%s2377 + $0x78] sm:$0xff]
    %v2394 = vld [vmem:[%s2377 + $0x80] sm:$0xff]
    %v2395 = vld [vmem:[%s2377 + $0x88] sm:$0xff]
    %v2396 = vld [vmem:[%s2377 + $0x90] sm:$0xff]
    %v2397 = vld [vmem:[%s2377 + $0x98] sm:$0xff]
    %v2398 = vld [vmem:[%s2377 + $0xa0] sm:$0xff]
    %v2399 = vld [vmem:[%s2377 + $0xa8] sm:$0xff]
    %v2400 = vld [vmem:[%s2377 + $0xb0] sm:$0xff]
    %v2401 = vld [vmem:[%s2377 + $0xb8] sm:$0xff]
    %v2402 = vld [vmem:[%s2377 + $0xc0] sm:$0xff]
    %v2403 = vld [vmem:[%s2377 + $0xc8] sm:$0xff]
    %v2404 = vld [vmem:[%s2377 + $0xd0] sm:$0xff]
    %v2405 = vld [vmem:[%s2377 + $0xd8] sm:$0xff]
    %v2406 = vld [vmem:[%s2377 + $0xe0] sm:$0xff]
    %v2407 = vld [vmem:[%s2377 + $0xe8] sm:$0xff]
    %v2408 = vld [vmem:[%s2377 + $0xf0] sm:$0xff]
    %v2409 = vld [vmem:[%s2377 + $0xf8] sm:$0xff]
    %v2410 = vld [vmem:[%s2377 + $0x100] sm:$0xff]
    %v2411 = vld [vmem:[%s2377 + $0x108] sm:$0xff]
    %v2412 = vld [vmem:[%s2377 + $0x110] sm:$0xff]
    %v2413 = vld [vmem:[%s2377 + $0x118] sm:$0xff]
    %v2414 = vld [vmem:[%s2377 + $0x120] sm:$0x1]
    %v2416 = vsel %vm1488, %v2376, 0
    %v2419 = vsel %vm1492, %v2414, 0
    %2421 = vmatprep.subr.mxu0 0.0
    %2422 = vmatpush1.msra.mxu0 %v2378
    %2423 = vmatprep.subr.mxu0 0.0
    %2424 = vmatpush1.msra.mxu0 %v2379
    %2425 = vmatprep.subr.mxu0 0.0
    %2426 = vmatpush1.msra.mxu0 %v2380
    %2427 = vmatprep.subr.mxu0 0.0
    %2428 = vmatpush1.msra.mxu0 %v2381
    %2429 = vmatprep.subr.mxu0 0.0
    %2430 = vmatpush1.msra.mxu0 %v2382
    %2431 = vmatprep.subr.mxu0 0.0
    %2432 = vmatpush1.msra.mxu0 %v2383
    %2433 = vmatprep.subr.mxu0 0.0
    %2434 = vmatpush1.msra.mxu0 %v2384
    %2435 = vmatprep.subr.mxu0 0.0
    %2436 = vmatpush1.msra.mxu0 %v2385
    %2437 = vmatprep.subr.mxu0 0.0
    %2438 = vmatpush1.msra.mxu0 %v2386
    %2439 = vmatprep.subr.mxu0 0.0
    %2440 = vmatpush1.msra.mxu0 %v2387
    %2441 = vmatprep.subr.mxu0 0.0
    %2442 = vmatpush1.msra.mxu0 %v2388
    %2443 = vmatprep.subr.mxu0 0.0
    %2444 = vmatpush1.msra.mxu0 %v2389
    %2445 = vmatprep.subr.mxu0 0.0
    %2446 = vmatpush1.msra.mxu0 %v2390
    %2447 = vmatprep.subr.mxu0 0.0
    %2448 = vmatpush1.msra.mxu0 %v2391
    %2449 = vmatprep.subr.mxu0 0.0
    %2450 = vmatpush1.msra.mxu0 %v2392
    %2451 = vmatprep.subr.mxu0 0.0
    %2452 = vmatpush1.msra.mxu0 %v2393
    %2453 = vmatprep.subr.mxu0 0.0
    %2454 = vmatpush1.msra.mxu0 %v2394
    %2455 = vmatprep.subr.mxu0 0.0
    %2456 = vmatpush1.msra.mxu0 %v2395
    %2457 = vmatprep.subr.mxu0 0.0
    %2458 = vmatpush1.msra.mxu0 %v2396
    %2459 = vmatprep.subr.mxu0 0.0
    %2460 = vmatpush1.msra.mxu0 %v2397
    %2461 = vmatprep.subr.mxu0 0.0
    %2462 = vmatpush1.msra.mxu0 %v2398
    %2463 = vmatprep.subr.mxu0 0.0
    %2464 = vmatpush1.msra.mxu0 %v2399
    %2465 = vmatprep.subr.mxu0 0.0
    %2466 = vmatpush1.msra.mxu0 %v2400
    %2467 = vmatprep.subr.mxu0 0.0
    %2468 = vmatpush1.msra.mxu0 %v2401
    %2469 = vmatprep.subr.mxu0 0.0
    %2470 = vmatpush1.msra.mxu0 %v2402
    %2471 = vmatprep.subr.mxu0 0.0
    %2472 = vmatpush1.msra.mxu0 %v2403
    %2473 = vmatprep.subr.mxu0 0.0
    %2474 = vmatpush1.msra.mxu0 %v2404
    %2475 = vmatprep.subr.mxu0 0.0
    %2476 = vmatpush1.msra.mxu0 %v2405
    %2477 = vmatprep.subr.mxu0 0.0
    %2478 = vmatpush1.msra.mxu0 %v2406
    %2479 = vmatprep.subr.mxu0 0.0
    %2480 = vmatpush1.msra.mxu0 %v2407
    %2481 = vmatprep.subr.mxu0 0.0
    %2482 = vmatpush1.msra.mxu0 %v2408
    %2483 = vmatprep.subr.mxu0 0.0
    %2484 = vmatpush1.msra.mxu0 %v2409
    %2485 = vmatprep.mubr.f32.mxu0 %v2375
    %2486 = vmatmul.mubr.f32.gmra.mrb[0].mxu0 %v2374
    %v2487 = vpop.f32.mrb[0].mxu0
    %v2488 = vadd.f32 0.0, %v2487
    %v2489 = vpop.f32.mrb[0].mxu0
    %2490 = vdwg.mxu0
    %2491 = vmatprep.subr.mxu0 0.0
    %2492 = vmatpush1.msra.mxu0 %v2410
    %2493 = vmatprep.subr.mxu0 0.0
    %2494 = vmatpush1.msra.mxu0 %v2411
    %2495 = vmatprep.subr.mxu0 0.0
    %2496 = vmatpush1.msra.mxu0 %v2412
    %2497 = vmatprep.subr.mxu0 0.0
    %2498 = vmatpush1.msra.mxu0 %v2413
    %2499 = vmatprep.subr.mxu0 0.0
    %2500 = vmatpush1.msra.mxu0 %v2419
    %2501 = vmatprep.subr.mxu0 0.0
    %2502 = vmatpush1.msra.mxu0 0.0
    %2503 = vmatprep.subr.mxu0 0.0
    %2504 = vmatpush1.msra.mxu0 0.0
    %2505 = vmatprep.subr.mxu0 0.0
    %2506 = vmatpush1.msra.mxu0 0.0
    %2507 = vmatprep.subr.mxu0 0.0
    %2508 = vmatpush1.msra.mxu0 0.0
    %2509 = vmatprep.subr.mxu0 0.0
    %2510 = vmatpush1.msra.mxu0 0.0
    %2511 = vmatprep.subr.mxu0 0.0
    %2512 = vmatpush1.msra.mxu0 0.0
    %2513 = vmatprep.subr.mxu0 0.0
    %2514 = vmatpush1.msra.mxu0 0.0
    %2515 = vmatprep.subr.mxu0 0.0
    %2516 = vmatpush1.msra.mxu0 0.0
    %2517 = vmatprep.subr.mxu0 0.0
    %2518 = vmatpush1.msra.mxu0 0.0
    %2519 = vmatprep.subr.mxu0 0.0
    %2520 = vmatpush1.msra.mxu0 0.0
    %2521 = vmatprep.subr.mxu0 0.0
    %2522 = vmatpush1.msra.mxu0 0.0
    %2523 = vmatprep.subr.mxu0 0.0
    %2524 = vmatpush1.msra.mxu0 0.0
    %2525 = vmatprep.subr.mxu0 0.0
    %2526 = vmatpush1.msra.mxu0 0.0
    %2527 = vmatprep.subr.mxu0 0.0
    %2528 = vmatpush1.msra.mxu0 0.0
    %2529 = vmatprep.subr.mxu0 0.0
    %2530 = vmatpush1.msra.mxu0 0.0
    %2531 = vmatprep.subr.mxu0 0.0
    %2532 = vmatpush1.msra.mxu0 0.0
    %2533 = vmatprep.subr.mxu0 0.0
    %2534 = vmatpush1.msra.mxu0 0.0
    %2535 = vmatprep.subr.mxu0 0.0
    %2536 = vmatpush1.msra.mxu0 0.0
    %2537 = vmatprep.subr.mxu0 0.0
    %2538 = vmatpush1.msra.mxu0 0.0
    %2539 = vmatprep.subr.mxu0 0.0
    %2540 = vmatpush1.msra.mxu0 0.0
    %2541 = vmatprep.subr.mxu0 0.0
    %2542 = vmatpush1.msra.mxu0 0.0
    %2543 = vmatprep.subr.mxu0 0.0
    %2544 = vmatpush1.msra.mxu0 0.0
    %2545 = vmatprep.subr.mxu0 0.0
    %2546 = vmatpush1.msra.mxu0 0.0
    %2547 = vmatprep.subr.mxu0 0.0
    %2548 = vmatpush1.msra.mxu0 0.0
    %2549 = vmatprep.subr.mxu0 0.0
    %2550 = vmatpush1.msra.mxu0 0.0
    %2551 = vmatprep.subr.mxu0 0.0
    %2552 = vmatpush1.msra.mxu0 0.0
    %2553 = vmatprep.subr.mxu0 0.0
    %2554 = vmatpush1.msra.mxu0 0.0
    %2555 = vmatprep.mubr.f32.mxu0 0.0
    %2556 = vmatmul.mubr.f32.gmra.mrb[0].mxu0 %v2416
    %v2557 = vpop.f32.mrb[0].mxu0
    %v2558 = vadd.f32 %v2488, %v2557
    %v2559 = vpop.f32.mrb[0].mxu0
    %2560 = vdwg.mxu0
    %v2561 = vadd.f32 %v2301, %v2558
    %s2562 = sld [smem:[#allocation9 + $0x280]]
    %s2563 = sld [smem:[#allocation9 + $0x281]]
    %s2564 = sld [smem:[#allocation9 + $0x282]]
    %s2565 = sld [smem:[#allocation11 + $0x5]]
    %v2566 = vld [vmem:[#allocation4] sm:$0xff]
    %v2567 = vld [vmem:[#allocation4 + $0x8] sm:$0xff]
    %v2568 = vld [vmem:[#allocation4 + $0x10] sm:$0xff]
    %v2569 = vstv %s2562
    %v2570 = vmul.f32 %v2569, %v2566
    %v2571 = vmul.f32 %v2569, %v2567
    %v2572 = vmul.f32 %v2569, %v2568
    %v2573 = vld [vmem:[%s1238] sm:$0xff]
    %v2574 = vld [vmem:[%s1238 + $0x8] sm:$0xff]
    %v2575 = vld [vmem:[%s1238 + $0x10] sm:$0xff]
    %v2576 = vstv %s2563
    %v2577 = vmul.f32 %v2576, %v2573
    %v2578 = vmul.f32 %v2576, %v2574
    %v2579 = vmul.f32 %v2576, %v2575
    %v2580 = vadd.f32 %v2570, %v2577
    %v2581 = vadd.f32 %v2571, %v2578
    %v2582 = vadd.f32 %v2572, %v2579
    %v2583 = vld [vmem:[%s1259] sm:$0xff]
    %v2584 = vld [vmem:[%s1259 + $0x8] sm:$0xff]
    %v2585 = vld [vmem:[%s1259 + $0x10] sm:$0xff]
    %v2586 = vstv %s2564
    %v2587 = vmul.f32 %v2586, %v2583
    %v2588 = vmul.f32 %v2586, %v2584
    %v2589 = vmul.f32 %v2586, %v2585
    %v2590 = vadd.f32 %v2580, %v2587
    %v2591 = vadd.f32 %v2581, %v2588
    %v2592 = vadd.f32 %v2582, %v2589
    %v2593 = vstv %s2565
    %v2594 = vadd.f32 %v2590, %v2593
    %v2595 = vadd.f32 %v2591, %v2593
    %v2596 = vadd.f32 %v2592, %v2593
    %v2597 = vmax.f32 %v2594, 0.0
    %v2598 = vmax.f32 %v2595, 0.0
    %v2599 = vmax.f32 %v2596, 0.0
    %2600 = vst [vmem:[#allocation5] sm:$0xff] %v2597
    %2601 = vst [vmem:[#allocation5 + $0x8] sm:$0xff] %v2598
    %2602 = vst.msk [vmem:[#allocation5 + $0x10] sm:$0xff] %vm1219, %v2599
    %v2603 = vld [vmem:[#allocation5] sm:$0xff]
    %v2604 = vld [vmem:[#allocation5 + $0x8] sm:$0xff]
    %v2605 = vld [vmem:[#allocation5 + $0x10] sm:$0xff]
    %2609 = vrot.lane.b32.xlu0 %v2603, 127
    %v2610 = vpop.permute.xlu0 %2609
    %2611 = vrot.lane.b32.xlu0 %v2604, 127
    %v2612 = vpop.permute.xlu0 %2611
    %2613 = vrot.lane.b32.xlu0 %v2605, 127
    %v2614 = vpop.permute.xlu0 %2613
    %v2615 = vsel %vm125, %v2610, %v2612
    %v2616 = vsel %vm125, %v2612, %v2614
    %v2620 = vmax.f32 %v2603, %v2615
    %v2621 = vmax.f32 %v2604, %v2616
    %v2622 = vmax.f32 %v2605, %v2614
    %2623 = vrot.lane.b32.xlu0 %v2603, 126
    %v2624 = vpop.permute.xlu0 %2623
    %2625 = vrot.lane.b32.xlu0 %v2604, 126
    %v2626 = vpop.permute.xlu0 %2625
    %2627 = vrot.lane.b32.xlu0 %v2605, 126
    %v2628 = vpop.permute.xlu0 %2627
    %v2629 = vsel %vm175, %v2624, %v2626
    %v2630 = vsel %vm175, %v2626, %v2628
    %v2634 = vmax.f32 %v2620, %v2629
    %v2635 = vmax.f32 %v2621, %v2630
    %v2636 = vmax.f32 %v2622, %v2628
    %s2637 = scalar_lea.vmem %s6, 1480
    %v2638 = vld [vmem:[%s2637] sm:$0xff]
    %v2639 = vld [vmem:[%s2637 + $0x8] sm:$0xff]
    %v2640 = vld [vmem:[%s2637 + $0x10] sm:$0xff]
    %v2641 = vld [vmem:[%s2637 + $0x18] sm:$0xff]
    %v2642 = vld [vmem:[%s2637 + $0x20] sm:$0xff]
    %v2643 = vld [vmem:[%s2637 + $0x28] sm:$0xff]
    %v2644 = vld [vmem:[%s2637 + $0x30] sm:$0xff]
    %v2645 = vld [vmem:[%s2637 + $0x38] sm:$0xff]
    %v2646 = vld [vmem:[%s2637 + $0x40] sm:$0xff]
    %v2647 = vld [vmem:[%s2637 + $0x48] sm:$0xff]
    %v2648 = vld [vmem:[%s2637 + $0x50] sm:$0xff]
    %v2649 = vld [vmem:[%s2637 + $0x58] sm:$0xff]
    %v2650 = vld [vmem:[%s2637 + $0x60] sm:$0xff]
    %v2651 = vld [vmem:[%s2637 + $0x68] sm:$0xff]
    %v2652 = vld [vmem:[%s2637 + $0x70] sm:$0xff]
    %v2653 = vld [vmem:[%s2637 + $0x78] sm:$0xff]
    %v2654 = vld [vmem:[%s2637 + $0x80] sm:$0xff]
    %v2655 = vld [vmem:[%s2637 + $0x88] sm:$0xff]
    %v2656 = vld [vmem:[%s2637 + $0x90] sm:$0xff]
    %v2657 = vld [vmem:[%s2637 + $0x98] sm:$0xff]
    %v2658 = vld [vmem:[%s2637 + $0xa0] sm:$0xff]
    %v2659 = vld [vmem:[%s2637 + $0xa8] sm:$0xff]
    %v2660 = vld [vmem:[%s2637 + $0xb0] sm:$0xff]
    %v2661 = vld [vmem:[%s2637 + $0xb8] sm:$0xff]
    %v2662 = vld [vmem:[%s2637 + $0xc0] sm:$0xff]
    %v2663 = vld [vmem:[%s2637 + $0xc8] sm:$0xff]
    %v2664 = vld [vmem:[%s2637 + $0xd0] sm:$0xff]
    %v2665 = vld [vmem:[%s2637 + $0xd8] sm:$0xff]
    %v2666 = vld [vmem:[%s2637 + $0xe0] sm:$0xff]
    %v2667 = vld [vmem:[%s2637 + $0xe8] sm:$0xff]
    %v2668 = vld [vmem:[%s2637 + $0xf0] sm:$0xff]
    %v2669 = vld [vmem:[%s2637 + $0xf8] sm:$0xff]
    %v2670 = vld [vmem:[%s2637 + $0x100] sm:$0xff]
    %v2671 = vld [vmem:[%s2637 + $0x108] sm:$0xff]
    %v2672 = vld [vmem:[%s2637 + $0x110] sm:$0xff]
    %v2673 = vld [vmem:[%s2637 + $0x118] sm:$0xff]
    %v2674 = vld [vmem:[%s2637 + $0x120] sm:$0x1]
    %v2676 = vsel %vm1488, %v2636, 0
    %v2679 = vsel %vm1492, %v2674, 0
    %2681 = vmatprep.subr.mxu0 0.0
    %2682 = vmatpush1.msra.mxu0 %v2638
    %2683 = vmatprep.subr.mxu0 0.0
    %2684 = vmatpush1.msra.mxu0 %v2639
    %2685 = vmatprep.subr.mxu0 0.0
    %2686 = vmatpush1.msra.mxu0 %v2640
    %2687 = vmatprep.subr.mxu0 0.0
    %2688 = vmatpush1.msra.mxu0 %v2641
    %2689 = vmatprep.subr.mxu0 0.0
    %2690 = vmatpush1.msra.mxu0 %v2642
    %2691 = vmatprep.subr.mxu0 0.0
    %2692 = vmatpush1.msra.mxu0 %v2643
    %2693 = vmatprep.subr.mxu0 0.0
    %2694 = vmatpush1.msra.mxu0 %v2644
    %2695 = vmatprep.subr.mxu0 0.0
    %2696 = vmatpush1.msra.mxu0 %v2645
    %2697 = vmatprep.subr.mxu0 0.0
    %2698 = vmatpush1.msra.mxu0 %v2646
    %2699 = vmatprep.subr.mxu0 0.0
    %2700 = vmatpush1.msra.mxu0 %v2647
    %2701 = vmatprep.subr.mxu0 0.0
    %2702 = vmatpush1.msra.mxu0 %v2648
    %2703 = vmatprep.subr.mxu0 0.0
    %2704 = vmatpush1.msra.mxu0 %v2649
    %2705 = vmatprep.subr.mxu0 0.0
    %2706 = vmatpush1.msra.mxu0 %v2650
    %2707 = vmatprep.subr.mxu0 0.0
    %2708 = vmatpush1.msra.mxu0 %v2651
    %2709 = vmatprep.subr.mxu0 0.0
    %2710 = vmatpush1.msra.mxu0 %v2652
    %2711 = vmatprep.subr.mxu0 0.0
    %2712 = vmatpush1.msra.mxu0 %v2653
    %2713 = vmatprep.subr.mxu0 0.0
    %2714 = vmatpush1.msra.mxu0 %v2654
    %2715 = vmatprep.subr.mxu0 0.0
    %2716 = vmatpush1.msra.mxu0 %v2655
    %2717 = vmatprep.subr.mxu0 0.0
    %2718 = vmatpush1.msra.mxu0 %v2656
    %2719 = vmatprep.subr.mxu0 0.0
    %2720 = vmatpush1.msra.mxu0 %v2657
    %2721 = vmatprep.subr.mxu0 0.0
    %2722 = vmatpush1.msra.mxu0 %v2658
    %2723 = vmatprep.subr.mxu0 0.0
    %2724 = vmatpush1.msra.mxu0 %v2659
    %2725 = vmatprep.subr.mxu0 0.0
    %2726 = vmatpush1.msra.mxu0 %v2660
    %2727 = vmatprep.subr.mxu0 0.0
    %2728 = vmatpush1.msra.mxu0 %v2661
    %2729 = vmatprep.subr.mxu0 0.0
    %2730 = vmatpush1.msra.mxu0 %v2662
    %2731 = vmatprep.subr.mxu0 0.0
    %2732 = vmatpush1.msra.mxu0 %v2663
    %2733 = vmatprep.subr.mxu0 0.0
    %2734 = vmatpush1.msra.mxu0 %v2664
    %2735 = vmatprep.subr.mxu0 0.0
    %2736 = vmatpush1.msra.mxu0 %v2665
    %2737 = vmatprep.subr.mxu0 0.0
    %2738 = vmatpush1.msra.mxu0 %v2666
    %2739 = vmatprep.subr.mxu0 0.0
    %2740 = vmatpush1.msra.mxu0 %v2667
    %2741 = vmatprep.subr.mxu0 0.0
    %2742 = vmatpush1.msra.mxu0 %v2668
    %2743 = vmatprep.subr.mxu0 0.0
    %2744 = vmatpush1.msra.mxu0 %v2669
    %2745 = vmatprep.mubr.f32.mxu0 %v2635
    %2746 = vmatmul.mubr.f32.gmra.mrb[0].mxu0 %v2634
    %v2747 = vpop.f32.mrb[0].mxu0
    %v2748 = vadd.f32 0.0, %v2747
    %v2749 = vpop.f32.mrb[0].mxu0
    %2750 = vdwg.mxu0
    %2751 = vmatprep.subr.mxu0 0.0
    %2752 = vmatpush1.msra.mxu0 %v2670
    %2753 = vmatprep.subr.mxu0 0.0
    %2754 = vmatpush1.msra.mxu0 %v2671
    %2755 = vmatprep.subr.mxu0 0.0
    %2756 = vmatpush1.msra.mxu0 %v2672
    %2757 = vmatprep.subr.mxu0 0.0
    %2758 = vmatpush1.msra.mxu0 %v2673
    %2759 = vmatprep.subr.mxu0 0.0
    %2760 = vmatpush1.msra.mxu0 %v2679
    %2761 = vmatprep.subr.mxu0 0.0
    %2762 = vmatpush1.msra.mxu0 0.0
    %2763 = vmatprep.subr.mxu0 0.0
    %2764 = vmatpush1.msra.mxu0 0.0
    %2765 = vmatprep.subr.mxu0 0.0
    %2766 = vmatpush1.msra.mxu0 0.0
    %2767 = vmatprep.subr.mxu0 0.0
    %2768 = vmatpush1.msra.mxu0 0.0
    %2769 = vmatprep.subr.mxu0 0.0
    %2770 = vmatpush1.msra.mxu0 0.0
    %2771 = vmatprep.subr.mxu0 0.0
    %2772 = vmatpush1.msra.mxu0 0.0
    %2773 = vmatprep.subr.mxu0 0.0
    %2774 = vmatpush1.msra.mxu0 0.0
    %2775 = vmatprep.subr.mxu0 0.0
    %2776 = vmatpush1.msra.mxu0 0.0
    %2777 = vmatprep.subr.mxu0 0.0
    %2778 = vmatpush1.msra.mxu0 0.0
    %2779 = vmatprep.subr.mxu0 0.0
    %2780 = vmatpush1.msra.mxu0 0.0
    %2781 = vmatprep.subr.mxu0 0.0
    %2782 = vmatpush1.msra.mxu0 0.0
    %2783 = vmatprep.subr.mxu0 0.0
    %2784 = vmatpush1.msra.mxu0 0.0
    %2785 = vmatprep.subr.mxu0 0.0
    %2786 = vmatpush1.msra.mxu0 0.0
    %2787 = vmatprep.subr.mxu0 0.0
    %2788 = vmatpush1.msra.mxu0 0.0
    %2789 = vmatprep.subr.mxu0 0.0
    %2790 = vmatpush1.msra.mxu0 0.0
    %2791 = vmatprep.subr.mxu0 0.0
    %2792 = vmatpush1.msra.mxu0 0.0
    %2793 = vmatprep.subr.mxu0 0.0
    %2794 = vmatpush1.msra.mxu0 0.0
    %2795 = vmatprep.subr.mxu0 0.0
    %2796 = vmatpush1.msra.mxu0 0.0
    %2797 = vmatprep.subr.mxu0 0.0
    %2798 = vmatpush1.msra.mxu0 0.0
    %2799 = vmatprep.subr.mxu0 0.0
    %2800 = vmatpush1.msra.mxu0 0.0
    %2801 = vmatprep.subr.mxu0 0.0
    %2802 = vmatpush1.msra.mxu0 0.0
    %2803 = vmatprep.subr.mxu0 0.0
    %2804 = vmatpush1.msra.mxu0 0.0
    %2805 = vmatprep.subr.mxu0 0.0
    %2806 = vmatpush1.msra.mxu0 0.0
    %2807 = vmatprep.subr.mxu0 0.0
    %2808 = vmatpush1.msra.mxu0 0.0
    %2809 = vmatprep.subr.mxu0 0.0
    %2810 = vmatpush1.msra.mxu0 0.0
    %2811 = vmatprep.subr.mxu0 0.0
    %2812 = vmatpush1.msra.mxu0 0.0
    %2813 = vmatprep.subr.mxu0 0.0
    %2814 = vmatpush1.msra.mxu0 0.0
    %2815 = vmatprep.mubr.f32.mxu0 0.0
    %2816 = vmatmul.mubr.f32.gmra.mrb[0].mxu0 %v2676
    %v2817 = vpop.f32.mrb[0].mxu0
    %v2818 = vadd.f32 %v2748, %v2817
    %v2819 = vpop.f32.mrb[0].mxu0
    %2820 = vdwg.mxu0
    %v2821 = vadd.f32 %v2561, %v2818
    %s2822 = sld [smem:[#allocation9 + $0x300]]
    %s2823 = sld [smem:[#allocation9 + $0x301]]
    %s2824 = sld [smem:[#allocation9 + $0x302]]
    %s2825 = sld [smem:[#allocation11 + $0x6]]
    %v2826 = vld [vmem:[#allocation4] sm:$0xff]
    %v2827 = vld [vmem:[#allocation4 + $0x8] sm:$0xff]
    %v2828 = vld [vmem:[#allocation4 + $0x10] sm:$0xff]
    %v2829 = vstv %s2822
    %v2830 = vmul.f32 %v2829, %v2826
    %v2831 = vmul.f32 %v2829, %v2827
    %v2832 = vmul.f32 %v2829, %v2828
    %v2833 = vld [vmem:[%s1238] sm:$0xff]
    %v2834 = vld [vmem:[%s1238 + $0x8] sm:$0xff]
    %v2835 = vld [vmem:[%s1238 + $0x10] sm:$0xff]
    %v2836 = vstv %s2823
    %v2837 = vmul.f32 %v2836, %v2833
    %v2838 = vmul.f32 %v2836, %v2834
    %v2839 = vmul.f32 %v2836, %v2835
    %v2840 = vadd.f32 %v2830, %v2837
    %v2841 = vadd.f32 %v2831, %v2838
    %v2842 = vadd.f32 %v2832, %v2839
    %v2843 = vld [vmem:[%s1259] sm:$0xff]
    %v2844 = vld [vmem:[%s1259 + $0x8] sm:$0xff]
    %v2845 = vld [vmem:[%s1259 + $0x10] sm:$0xff]
    %v2846 = vstv %s2824
    %v2847 = vmul.f32 %v2846, %v2843
    %v2848 = vmul.f32 %v2846, %v2844
    %v2849 = vmul.f32 %v2846, %v2845
    %v2850 = vadd.f32 %v2840, %v2847
    %v2851 = vadd.f32 %v2841, %v2848
    %v2852 = vadd.f32 %v2842, %v2849
    %v2853 = vstv %s2825
    %v2854 = vadd.f32 %v2850, %v2853
    %v2855 = vadd.f32 %v2851, %v2853
    %v2856 = vadd.f32 %v2852, %v2853
    %v2857 = vmax.f32 %v2854, 0.0
    %v2858 = vmax.f32 %v2855, 0.0
    %v2859 = vmax.f32 %v2856, 0.0
    %2860 = vst [vmem:[#allocation5] sm:$0xff] %v2857
    %2861 = vst [vmem:[#allocation5 + $0x8] sm:$0xff] %v2858
    %2862 = vst.msk [vmem:[#allocation5 + $0x10] sm:$0xff] %vm1219, %v2859
    %v2863 = vld [vmem:[#allocation5] sm:$0xff]
    %v2864 = vld [vmem:[#allocation5 + $0x8] sm:$0xff]
    %v2865 = vld [vmem:[#allocation5 + $0x10] sm:$0xff]
    %2869 = vrot.lane.b32.xlu0 %v2863, 127
    %v2870 = vpop.permute.xlu0 %2869
    %2871 = vrot.lane.b32.xlu0 %v2864, 127
    %v2872 = vpop.permute.xlu0 %2871
    %2873 = vrot.lane.b32.xlu0 %v2865, 127
    %v2874 = vpop.permute.xlu0 %2873
    %v2875 = vsel %vm125, %v2870, %v2872
    %v2876 = vsel %vm125, %v2872, %v2874
    %v2880 = vmax.f32 %v2863, %v2875
    %v2881 = vmax.f32 %v2864, %v2876
    %v2882 = vmax.f32 %v2865, %v2874
    %2883 = vrot.lane.b32.xlu0 %v2863, 126
    %v2884 = vpop.permute.xlu0 %2883
    %2885 = vrot.lane.b32.xlu0 %v2864, 126
    %v2886 = vpop.permute.xlu0 %2885
    %2887 = vrot.lane.b32.xlu0 %v2865, 126
    %v2888 = vpop.permute.xlu0 %2887
    %v2889 = vsel %vm175, %v2884, %v2886
    %v2890 = vsel %vm175, %v2886, %v2888
    %v2894 = vmax.f32 %v2880, %v2889
    %v2895 = vmax.f32 %v2881, %v2890
    %v2896 = vmax.f32 %v2882, %v2888
    %s2897 = scalar_lea.vmem %s6, 1776
    %v2898 = vld [vmem:[%s2897] sm:$0xff]
    %v2899 = vld [vmem:[%s2897 + $0x8] sm:$0xff]
    %v2900 = vld [vmem:[%s2897 + $0x10] sm:$0xff]
    %v2901 = vld [vmem:[%s2897 + $0x18] sm:$0xff]
    %v2902 = vld [vmem:[%s2897 + $0x20] sm:$0xff]
    %v2903 = vld [vmem:[%s2897 + $0x28] sm:$0xff]
    %v2904 = vld [vmem:[%s2897 + $0x30] sm:$0xff]
    %v2905 = vld [vmem:[%s2897 + $0x38] sm:$0xff]
    %v2906 = vld [vmem:[%s2897 + $0x40] sm:$0xff]
    %v2907 = vld [vmem:[%s2897 + $0x48] sm:$0xff]
    %v2908 = vld [vmem:[%s2897 + $0x50] sm:$0xff]
    %v2909 = vld [vmem:[%s2897 + $0x58] sm:$0xff]
    %v2910 = vld [vmem:[%s2897 + $0x60] sm:$0xff]
    %v2911 = vld [vmem:[%s2897 + $0x68] sm:$0xff]
    %v2912 = vld [vmem:[%s2897 + $0x70] sm:$0xff]
    %v2913 = vld [vmem:[%s2897 + $0x78] sm:$0xff]
    %v2914 = vld [vmem:[%s2897 + $0x80] sm:$0xff]
    %v2915 = vld [vmem:[%s2897 + $0x88] sm:$0xff]
    %v2916 = vld [vmem:[%s2897 + $0x90] sm:$0xff]
    %v2917 = vld [vmem:[%s2897 + $0x98] sm:$0xff]
    %v2918 = vld [vmem:[%s2897 + $0xa0] sm:$0xff]
    %v2919 = vld [vmem:[%s2897 + $0xa8] sm:$0xff]
    %v2920 = vld [vmem:[%s2897 + $0xb0] sm:$0xff]
    %v2921 = vld [vmem:[%s2897 + $0xb8] sm:$0xff]
    %v2922 = vld [vmem:[%s2897 + $0xc0] sm:$0xff]
    %v2923 = vld [vmem:[%s2897 + $0xc8] sm:$0xff]
    %v2924 = vld [vmem:[%s2897 + $0xd0] sm:$0xff]
    %v2925 = vld [vmem:[%s2897 + $0xd8] sm:$0xff]
    %v2926 = vld [vmem:[%s2897 + $0xe0] sm:$0xff]
    %v2927 = vld [vmem:[%s2897 + $0xe8] sm:$0xff]
    %v2928 = vld [vmem:[%s2897 + $0xf0] sm:$0xff]
    %v2929 = vld [vmem:[%s2897 + $0xf8] sm:$0xff]
    %v2930 = vld [vmem:[%s2897 + $0x100] sm:$0xff]
    %v2931 = vld [vmem:[%s2897 + $0x108] sm:$0xff]
    %v2932 = vld [vmem:[%s2897 + $0x110] sm:$0xff]
    %v2933 = vld [vmem:[%s2897 + $0x118] sm:$0xff]
    %v2934 = vld [vmem:[%s2897 + $0x120] sm:$0x1]
    %v2936 = vsel %vm1488, %v2896, 0
    %v2939 = vsel %vm1492, %v2934, 0
    %2941 = vmatprep.subr.mxu0 0.0
    %2942 = vmatpush1.msra.mxu0 %v2898
    %2943 = vmatprep.subr.mxu0 0.0
    %2944 = vmatpush1.msra.mxu0 %v2899
    %2945 = vmatprep.subr.mxu0 0.0
    %2946 = vmatpush1.msra.mxu0 %v2900
    %2947 = vmatprep.subr.mxu0 0.0
    %2948 = vmatpush1.msra.mxu0 %v2901
    %2949 = vmatprep.subr.mxu0 0.0
    %2950 = vmatpush1.msra.mxu0 %v2902
    %2951 = vmatprep.subr.mxu0 0.0
    %2952 = vmatpush1.msra.mxu0 %v2903
    %2953 = vmatprep.subr.mxu0 0.0
    %2954 = vmatpush1.msra.mxu0 %v2904
    %2955 = vmatprep.subr.mxu0 0.0
    %2956 = vmatpush1.msra.mxu0 %v2905
    %2957 = vmatprep.subr.mxu0 0.0
    %2958 = vmatpush1.msra.mxu0 %v2906
    %2959 = vmatprep.subr.mxu0 0.0
    %2960 = vmatpush1.msra.mxu0 %v2907
    %2961 = vmatprep.subr.mxu0 0.0
    %2962 = vmatpush1.msra.mxu0 %v2908
    %2963 = vmatprep.subr.mxu0 0.0
    %2964 = vmatpush1.msra.mxu0 %v2909
    %2965 = vmatprep.subr.mxu0 0.0
    %2966 = vmatpush1.msra.mxu0 %v2910
    %2967 = vmatprep.subr.mxu0 0.0
    %2968 = vmatpush1.msra.mxu0 %v2911
    %2969 = vmatprep.subr.mxu0 0.0
    %2970 = vmatpush1.msra.mxu0 %v2912
    %2971 = vmatprep.subr.mxu0 0.0
    %2972 = vmatpush1.msra.mxu0 %v2913
    %2973 = vmatprep.subr.mxu0 0.0
    %2974 = vmatpush1.msra.mxu0 %v2914
    %2975 = vmatprep.subr.mxu0 0.0
    %2976 = vmatpush1.msra.mxu0 %v2915
    %2977 = vmatprep.subr.mxu0 0.0
    %2978 = vmatpush1.msra.mxu0 %v2916
    %2979 = vmatprep.subr.mxu0 0.0
    %2980 = vmatpush1.msra.mxu0 %v2917
    %2981 = vmatprep.subr.mxu0 0.0
    %2982 = vmatpush1.msra.mxu0 %v2918
    %2983 = vmatprep.subr.mxu0 0.0
    %2984 = vmatpush1.msra.mxu0 %v2919
    %2985 = vmatprep.subr.mxu0 0.0
    %2986 = vmatpush1.msra.mxu0 %v2920
    %2987 = vmatprep.subr.mxu0 0.0
    %2988 = vmatpush1.msra.mxu0 %v2921
    %2989 = vmatprep.subr.mxu0 0.0
    %2990 = vmatpush1.msra.mxu0 %v2922
    %2991 = vmatprep.subr.mxu0 0.0
    %2992 = vmatpush1.msra.mxu0 %v2923
    %2993 = vmatprep.subr.mxu0 0.0
    %2994 = vmatpush1.msra.mxu0 %v2924
    %2995 = vmatprep.subr.mxu0 0.0
    %2996 = vmatpush1.msra.mxu0 %v2925
    %2997 = vmatprep.subr.mxu0 0.0
    %2998 = vmatpush1.msra.mxu0 %v2926
    %2999 = vmatprep.subr.mxu0 0.0
    %3000 = vmatpush1.msra.mxu0 %v2927
    %3001 = vmatprep.subr.mxu0 0.0
    %3002 = vmatpush1.msra.mxu0 %v2928
    %3003 = vmatprep.subr.mxu0 0.0
    %3004 = vmatpush1.msra.mxu0 %v2929
    %3005 = vmatprep.mubr.f32.mxu0 %v2895
    %3006 = vmatmul.mubr.f32.gmra.mrb[0].mxu0 %v2894
    %v3007 = vpop.f32.mrb[0].mxu0
    %v3008 = vadd.f32 0.0, %v3007
    %v3009 = vpop.f32.mrb[0].mxu0
    %3010 = vdwg.mxu0
    %3011 = vmatprep.subr.mxu0 0.0
    %3012 = vmatpush1.msra.mxu0 %v2930
    %3013 = vmatprep.subr.mxu0 0.0
    %3014 = vmatpush1.msra.mxu0 %v2931
    %3015 = vmatprep.subr.mxu0 0.0
    %3016 = vmatpush1.msra.mxu0 %v2932
    %3017 = vmatprep.subr.mxu0 0.0
    %3018 = vmatpush1.msra.mxu0 %v2933
    %3019 = vmatprep.subr.mxu0 0.0
    %3020 = vmatpush1.msra.mxu0 %v2939
    %3021 = vmatprep.subr.mxu0 0.0
    %3022 = vmatpush1.msra.mxu0 0.0
    %3023 = vmatprep.subr.mxu0 0.0
    %3024 = vmatpush1.msra.mxu0 0.0
    %3025 = vmatprep.subr.mxu0 0.0
    %3026 = vmatpush1.msra.mxu0 0.0
    %3027 = vmatprep.subr.mxu0 0.0
    %3028 = vmatpush1.msra.mxu0 0.0
    %3029 = vmatprep.subr.mxu0 0.0
    %3030 = vmatpush1.msra.mxu0 0.0
    %3031 = vmatprep.subr.mxu0 0.0
    %3032 = vmatpush1.msra.mxu0 0.0
    %3033 = vmatprep.subr.mxu0 0.0
    %3034 = vmatpush1.msra.mxu0 0.0
    %3035 = vmatprep.subr.mxu0 0.0
    %3036 = vmatpush1.msra.mxu0 0.0
    %3037 = vmatprep.subr.mxu0 0.0
    %3038 = vmatpush1.msra.mxu0 0.0
    %3039 = vmatprep.subr.mxu0 0.0
    %3040 = vmatpush1.msra.mxu0 0.0
    %3041 = vmatprep.subr.mxu0 0.0
    %3042 = vmatpush1.msra.mxu0 0.0
    %3043 = vmatprep.subr.mxu0 0.0
    %3044 = vmatpush1.msra.mxu0 0.0
    %3045 = vmatprep.subr.mxu0 0.0
    %3046 = vmatpush1.msra.mxu0 0.0
    %3047 = vmatprep.subr.mxu0 0.0
    %3048 = vmatpush1.msra.mxu0 0.0
    %3049 = vmatprep.subr.mxu0 0.0
    %3050 = vmatpush1.msra.mxu0 0.0
    %3051 = vmatprep.subr.mxu0 0.0
    %3052 = vmatpush1.msra.mxu0 0.0
    %3053 = vmatprep.subr.mxu0 0.0
    %3054 = vmatpush1.msra.mxu0 0.0
    %3055 = vmatprep.subr.mxu0 0.0
    %3056 = vmatpush1.msra.mxu0 0.0
    %3057 = vmatprep.subr.mxu0 0.0
    %3058 = vmatpush1.msra.mxu0 0.0
    %3059 = vmatprep.subr.mxu0 0.0
    %3060 = vmatpush1.msra.mxu0 0.0
    %3061 = vmatprep.subr.mxu0 0.0
    %3062 = vmatpush1.msra.mxu0 0.0
    %3063 = vmatprep.subr.mxu0 0.0
    %3064 = vmatpush1.msra.mxu0 0.0
    %3065 = vmatprep.subr.mxu0 0.0
    %3066 = vmatpush1.msra.mxu0 0.0
    %3067 = vmatprep.subr.mxu0 0.0
    %3068 = vmatpush1.msra.mxu0 0.0
    %3069 = vmatprep.subr.mxu0 0.0
    %3070 = vmatpush1.msra.mxu0 0.0
    %3071 = vmatprep.subr.mxu0 0.0
    %3072 = vmatpush1.msra.mxu0 0.0
    %3073 = vmatprep.subr.mxu0 0.0
    %3074 = vmatpush1.msra.mxu0 0.0
    %3075 = vmatprep.mubr.f32.mxu0 0.0
    %3076 = vmatmul.mubr.f32.gmra.mrb[0].mxu0 %v2936
    %v3077 = vpop.f32.mrb[0].mxu0
    %v3078 = vadd.f32 %v3008, %v3077
    %v3079 = vpop.f32.mrb[0].mxu0
    %3080 = vdwg.mxu0
    %v3081 = vadd.f32 %v2821, %v3078
    %s3082 = sld [smem:[#allocation9 + $0x380]]
    %s3083 = sld [smem:[#allocation9 + $0x381]]
    %s3084 = sld [smem:[#allocation9 + $0x382]]
    %s3085 = sld [smem:[#allocation11 + $0x7]]
    %v3086 = vld [vmem:[#allocation4] sm:$0xff]
    %v3087 = vld [vmem:[#allocation4 + $0x8] sm:$0xff]
    %v3088 = vld [vmem:[#allocation4 + $0x10] sm:$0xff]
    %v3089 = vstv %s3082
    %v3090 = vmul.f32 %v3089, %v3086
    %v3091 = vmul.f32 %v3089, %v3087
    %v3092 = vmul.f32 %v3089, %v3088
    %v3093 = vld [vmem:[%s1238] sm:$0xff]
    %v3094 = vld [vmem:[%s1238 + $0x8] sm:$0xff]
    %v3095 = vld [vmem:[%s1238 + $0x10] sm:$0xff]
    %v3096 = vstv %s3083
    %v3097 = vmul.f32 %v3096, %v3093
    %v3098 = vmul.f32 %v3096, %v3094
    %v3099 = vmul.f32 %v3096, %v3095
    %v3100 = vadd.f32 %v3090, %v3097
    %v3101 = vadd.f32 %v3091, %v3098
    %v3102 = vadd.f32 %v3092, %v3099
    %v3103 = vld [vmem:[%s1259] sm:$0xff]
    %v3104 = vld [vmem:[%s1259 + $0x8] sm:$0xff]
    %v3105 = vld [vmem:[%s1259 + $0x10] sm:$0xff]
    %v3106 = vstv %s3084
    %v3107 = vmul.f32 %v3106, %v3103
    %v3108 = vmul.f32 %v3106, %v3104
    %v3109 = vmul.f32 %v3106, %v3105
    %v3110 = vadd.f32 %v3100, %v3107
    %v3111 = vadd.f32 %v3101, %v3108
    %v3112 = vadd.f32 %v3102, %v3109
    %v3113 = vstv %s3085
    %v3114 = vadd.f32 %v3110, %v3113
    %v3115 = vadd.f32 %v3111, %v3113
    %v3116 = vadd.f32 %v3112, %v3113
    %v3117 = vmax.f32 %v3114, 0.0
    %v3118 = vmax.f32 %v3115, 0.0
    %v3119 = vmax.f32 %v3116, 0.0
    %3120 = vst [vmem:[#allocation5] sm:$0xff] %v3117
    %3121 = vst [vmem:[#allocation5 + $0x8] sm:$0xff] %v3118
    %3122 = vst.msk [vmem:[#allocation5 + $0x10] sm:$0xff] %vm1219, %v3119
    %v3123 = vld [vmem:[#allocation5] sm:$0xff]
    %v3124 = vld [vmem:[#allocation5 + $0x8] sm:$0xff]
    %v3125 = vld [vmem:[#allocation5 + $0x10] sm:$0xff]
    %3129 = vrot.lane.b32.xlu0 %v3123, 127
    %v3130 = vpop.permute.xlu0 %3129
    %3131 = vrot.lane.b32.xlu0 %v3124, 127
    %v3132 = vpop.permute.xlu0 %3131
    %3133 = vrot.lane.b32.xlu0 %v3125, 127
    %v3134 = vpop.permute.xlu0 %3133
    %v3135 = vsel %vm125, %v3130, %v3132
    %v3136 = vsel %vm125, %v3132, %v3134
    %v3140 = vmax.f32 %v3123, %v3135
    %v3141 = vmax.f32 %v3124, %v3136
    %v3142 = vmax.f32 %v3125, %v3134
    %3143 = vrot.lane.b32.xlu0 %v3123, 126
    %v3144 = vpop.permute.xlu0 %3143
    %3145 = vrot.lane.b32.xlu0 %v3124, 126
    %v3146 = vpop.permute.xlu0 %3145
    %3147 = vrot.lane.b32.xlu0 %v3125, 126
    %v3148 = vpop.permute.xlu0 %3147
    %v3149 = vsel %vm175, %v3144, %v3146
    %v3150 = vsel %vm175, %v3146, %v3148
    %v3154 = vmax.f32 %v3140, %v3149
    %v3155 = vmax.f32 %v3141, %v3150
    %v3156 = vmax.f32 %v3142, %v3148
    %s3157 = scalar_lea.vmem %s6, 2072
    %v3158 = vld [vmem:[%s3157] sm:$0xff]
    %v3159 = vld [vmem:[%s3157 + $0x8] sm:$0xff]
    %v3160 = vld [vmem:[%s3157 + $0x10] sm:$0xff]
    %v3161 = vld [vmem:[%s3157 + $0x18] sm:$0xff]
    %v3162 = vld [vmem:[%s3157 + $0x20] sm:$0xff]
    %v3163 = vld [vmem:[%s3157 + $0x28] sm:$0xff]
    %v3164 = vld [vmem:[%s3157 + $0x30] sm:$0xff]
    %v3165 = vld [vmem:[%s3157 + $0x38] sm:$0xff]
    %v3166 = vld [vmem:[%s3157 + $0x40] sm:$0xff]
    %v3167 = vld [vmem:[%s3157 + $0x48] sm:$0xff]
    %v3168 = vld [vmem:[%s3157 + $0x50] sm:$0xff]
    %v3169 = vld [vmem:[%s3157 + $0x58] sm:$0xff]
    %v3170 = vld [vmem:[%s3157 + $0x60] sm:$0xff]
    %v3171 = vld [vmem:[%s3157 + $0x68] sm:$0xff]
    %v3172 = vld [vmem:[%s3157 + $0x70] sm:$0xff]
    %v3173 = vld [vmem:[%s3157 + $0x78] sm:$0xff]
    %v3174 = vld [vmem:[%s3157 + $0x80] sm:$0xff]
    %v3175 = vld [vmem:[%s3157 + $0x88] sm:$0xff]
    %v3176 = vld [vmem:[%s3157 + $0x90] sm:$0xff]
    %v3177 = vld [vmem:[%s3157 + $0x98] sm:$0xff]
    %v3178 = vld [vmem:[%s3157 + $0xa0] sm:$0xff]
    %v3179 = vld [vmem:[%s3157 + $0xa8] sm:$0xff]
    %v3180 = vld [vmem:[%s3157 + $0xb0] sm:$0xff]
    %v3181 = vld [vmem:[%s3157 + $0xb8] sm:$0xff]
    %v3182 = vld [vmem:[%s3157 + $0xc0] sm:$0xff]
    %v3183 = vld [vmem:[%s3157 + $0xc8] sm:$0xff]
    %v3184 = vld [vmem:[%s3157 + $0xd0] sm:$0xff]
    %v3185 = vld [vmem:[%s3157 + $0xd8] sm:$0xff]
    %v3186 = vld [vmem:[%s3157 + $0xe0] sm:$0xff]
    %v3187 = vld [vmem:[%s3157 + $0xe8] sm:$0xff]
    %v3188 = vld [vmem:[%s3157 + $0xf0] sm:$0xff]
    %v3189 = vld [vmem:[%s3157 + $0xf8] sm:$0xff]
    %v3190 = vld [vmem:[%s3157 + $0x100] sm:$0xff]
    %v3191 = vld [vmem:[%s3157 + $0x108] sm:$0xff]
    %v3192 = vld [vmem:[%s3157 + $0x110] sm:$0xff]
    %v3193 = vld [vmem:[%s3157 + $0x118] sm:$0xff]
    %v3194 = vld [vmem:[%s3157 + $0x120] sm:$0x1]
    %v3196 = vsel %vm1488, %v3156, 0
    %v3199 = vsel %vm1492, %v3194, 0
    %3201 = vmatprep.subr.mxu0 0.0
    %3202 = vmatpush1.msra.mxu0 %v3158
    %3203 = vmatprep.subr.mxu0 0.0
    %3204 = vmatpush1.msra.mxu0 %v3159
    %3205 = vmatprep.subr.mxu0 0.0
    %3206 = vmatpush1.msra.mxu0 %v3160
    %3207 = vmatprep.subr.mxu0 0.0
    %3208 = vmatpush1.msra.mxu0 %v3161
    %3209 = vmatprep.subr.mxu0 0.0
    %3210 = vmatpush1.msra.mxu0 %v3162
    %3211 = vmatprep.subr.mxu0 0.0
    %3212 = vmatpush1.msra.mxu0 %v3163
    %3213 = vmatprep.subr.mxu0 0.0
    %3214 = vmatpush1.msra.mxu0 %v3164
    %3215 = vmatprep.subr.mxu0 0.0
    %3216 = vmatpush1.msra.mxu0 %v3165
    %3217 = vmatprep.subr.mxu0 0.0
    %3218 = vmatpush1.msra.mxu0 %v3166
    %3219 = vmatprep.subr.mxu0 0.0
    %3220 = vmatpush1.msra.mxu0 %v3167
    %3221 = vmatprep.subr.mxu0 0.0
    %3222 = vmatpush1.msra.mxu0 %v3168
    %3223 = vmatprep.subr.mxu0 0.0
    %3224 = vmatpush1.msra.mxu0 %v3169
    %3225 = vmatprep.subr.mxu0 0.0
    %3226 = vmatpush1.msra.mxu0 %v3170
    %3227 = vmatprep.subr.mxu0 0.0
    %3228 = vmatpush1.msra.mxu0 %v3171
    %3229 = vmatprep.subr.mxu0 0.0
    %3230 = vmatpush1.msra.mxu0 %v3172
    %3231 = vmatprep.subr.mxu0 0.0
    %3232 = vmatpush1.msra.mxu0 %v3173
    %3233 = vmatprep.subr.mxu0 0.0
    %3234 = vmatpush1.msra.mxu0 %v3174
    %3235 = vmatprep.subr.mxu0 0.0
    %3236 = vmatpush1.msra.mxu0 %v3175
    %3237 = vmatprep.subr.mxu0 0.0
    %3238 = vmatpush1.msra.mxu0 %v3176
    %3239 = vmatprep.subr.mxu0 0.0
    %3240 = vmatpush1.msra.mxu0 %v3177
    %3241 = vmatprep.subr.mxu0 0.0
    %3242 = vmatpush1.msra.mxu0 %v3178
    %3243 = vmatprep.subr.mxu0 0.0
    %3244 = vmatpush1.msra.mxu0 %v3179
    %3245 = vmatprep.subr.mxu0 0.0
    %3246 = vmatpush1.msra.mxu0 %v3180
    %3247 = vmatprep.subr.mxu0 0.0
    %3248 = vmatpush1.msra.mxu0 %v3181
    %3249 = vmatprep.subr.mxu0 0.0
    %3250 = vmatpush1.msra.mxu0 %v3182
    %3251 = vmatprep.subr.mxu0 0.0
    %3252 = vmatpush1.msra.mxu0 %v3183
    %3253 = vmatprep.subr.mxu0 0.0
    %3254 = vmatpush1.msra.mxu0 %v3184
    %3255 = vmatprep.subr.mxu0 0.0
    %3256 = vmatpush1.msra.mxu0 %v3185
    %3257 = vmatprep.subr.mxu0 0.0
    %3258 = vmatpush1.msra.mxu0 %v3186
    %3259 = vmatprep.subr.mxu0 0.0
    %3260 = vmatpush1.msra.mxu0 %v3187
    %3261 = vmatprep.subr.mxu0 0.0
    %3262 = vmatpush1.msra.mxu0 %v3188
    %3263 = vmatprep.subr.mxu0 0.0
    %3264 = vmatpush1.msra.mxu0 %v3189
    %3265 = vmatprep.mubr.f32.mxu0 %v3155
    %3266 = vmatmul.mubr.f32.gmra.mrb[0].mxu0 %v3154
    %v3267 = vpop.f32.mrb[0].mxu0
    %v3268 = vadd.f32 0.0, %v3267
    %v3269 = vpop.f32.mrb[0].mxu0
    %3270 = vdwg.mxu0
    %3271 = vmatprep.subr.mxu0 0.0
    %3272 = vmatpush1.msra.mxu0 %v3190
    %3273 = vmatprep.subr.mxu0 0.0
    %3274 = vmatpush1.msra.mxu0 %v3191
    %3275 = vmatprep.subr.mxu0 0.0
    %3276 = vmatpush1.msra.mxu0 %v3192
    %3277 = vmatprep.subr.mxu0 0.0
    %3278 = vmatpush1.msra.mxu0 %v3193
    %3279 = vmatprep.subr.mxu0 0.0
    %3280 = vmatpush1.msra.mxu0 %v3199
    %3281 = vmatprep.subr.mxu0 0.0
    %3282 = vmatpush1.msra.mxu0 0.0
    %3283 = vmatprep.subr.mxu0 0.0
    %3284 = vmatpush1.msra.mxu0 0.0
    %3285 = vmatprep.subr.mxu0 0.0
    %3286 = vmatpush1.msra.mxu0 0.0
    %3287 = vmatprep.subr.mxu0 0.0
    %3288 = vmatpush1.msra.mxu0 0.0
    %3289 = vmatprep.subr.mxu0 0.0
    %3290 = vmatpush1.msra.mxu0 0.0
    %3291 = vmatprep.subr.mxu0 0.0
    %3292 = vmatpush1.msra.mxu0 0.0
    %3293 = vmatprep.subr.mxu0 0.0
    %3294 = vmatpush1.msra.mxu0 0.0
    %3295 = vmatprep.subr.mxu0 0.0
    %3296 = vmatpush1.msra.mxu0 0.0
    %3297 = vmatprep.subr.mxu0 0.0
    %3298 = vmatpush1.msra.mxu0 0.0
    %3299 = vmatprep.subr.mxu0 0.0
    %3300 = vmatpush1.msra.mxu0 0.0
    %3301 = vmatprep.subr.mxu0 0.0
    %3302 = vmatpush1.msra.mxu0 0.0
    %3303 = vmatprep.subr.mxu0 0.0
    %3304 = vmatpush1.msra.mxu0 0.0
    %3305 = vmatprep.subr.mxu0 0.0
    %3306 = vmatpush1.msra.mxu0 0.0
    %3307 = vmatprep.subr.mxu0 0.0
    %3308 = vmatpush1.msra.mxu0 0.0
    %3309 = vmatprep.subr.mxu0 0.0
    %3310 = vmatpush1.msra.mxu0 0.0
    %3311 = vmatprep.subr.mxu0 0.0
    %3312 = vmatpush1.msra.mxu0 0.0
    %3313 = vmatprep.subr.mxu0 0.0
    %3314 = vmatpush1.msra.mxu0 0.0
    %3315 = vmatprep.subr.mxu0 0.0
    %3316 = vmatpush1.msra.mxu0 0.0
    %3317 = vmatprep.subr.mxu0 0.0
    %3318 = vmatpush1.msra.mxu0 0.0
    %3319 = vmatprep.subr.mxu0 0.0
    %3320 = vmatpush1.msra.mxu0 0.0
    %3321 = vmatprep.subr.mxu0 0.0
    %3322 = vmatpush1.msra.mxu0 0.0
    %3323 = vmatprep.subr.mxu0 0.0
    %3324 = vmatpush1.msra.mxu0 0.0
    %3325 = vmatprep.subr.mxu0 0.0
    %3326 = vmatpush1.msra.mxu0 0.0
    %3327 = vmatprep.subr.mxu0 0.0
    %3328 = vmatpush1.msra.mxu0 0.0
    %3329 = vmatprep.subr.mxu0 0.0
    %3330 = vmatpush1.msra.mxu0 0.0
    %3331 = vmatprep.subr.mxu0 0.0
    %3332 = vmatpush1.msra.mxu0 0.0
    %3333 = vmatprep.subr.mxu0 0.0
    %3334 = vmatpush1.msra.mxu0 0.0
    %3335 = vmatprep.mubr.f32.mxu0 0.0
    %3336 = vmatmul.mubr.f32.gmra.mrb[0].mxu0 %v3196
    %v3337 = vpop.f32.mrb[0].mxu0
    %v3338 = vadd.f32 %v3268, %v3337
    %v3339 = vpop.f32.mrb[0].mxu0
    %3340 = vdwg.mxu0
    %v3341 = vadd.f32 %v3081, %v3338
    %v3342 = vld [vmem:[%s7] sm:$0x1]
    %v3344 = vlaneseq
    %v3345 = vshrl.u32 %v3344, 7
    %v3346 = vsub.s32 0, %v3345
    %v3347 = vrot.slane %v3342, %v3346
    %v3349 = vadd.f32 %v3341, %v3347
    %v3350 = vmax.f32 %v3349, 0.0
    %v3351 = vld [vmem:[%s8] sm:$0xff]
    %v3352 = vld [vmem:[%s8 + $0x8] sm:$0xff]
    %v3353 = vld [vmem:[%s8 + $0x10] sm:$0xff]
    %v3354 = vld [vmem:[%s8 + $0x18] sm:$0xff]
    %v3355 = vld [vmem:[%s9] sm:$0x1]
    %v3357 = vlaneseq
    %v3358 = vshrl.u32 %v3357, 7
    %v3359 = vsub.s32 0, %v3358
    %v3360 = vrot.slane %v3355, %v3359
    %vm3362 = vcmask 261120
    %v3364 = vsel %vm3362, %v3350, 0
    %3366 = vmatprep.subr.mxu0 0.0
    %3367 = vmatpush1.msra.mxu0 %v3351
    %3368 = vmatprep.subr.mxu0 0.0
    %3369 = vmatpush1.msra.mxu0 %v3352
    %3370 = vmatprep.subr.mxu0 0.0
    %3371 = vmatpush1.msra.mxu0 %v3353
    %3372 = vmatprep.subr.mxu0 0.0
    %3373 = vmatpush1.msra.mxu0 %v3354
    %3374 = vmatprep.subr.mxu0 0.0
    %3375 = vmatpush1.msra.mxu0 0.0
    %3376 = vmatprep.subr.mxu0 0.0
    %3377 = vmatpush1.msra.mxu0 0.0
    %3378 = vmatprep.subr.mxu0 0.0
    %3379 = vmatpush1.msra.mxu0 0.0
    %3380 = vmatprep.subr.mxu0 0.0
    %3381 = vmatpush1.msra.mxu0 0.0
    %3382 = vmatprep.subr.mxu0 0.0
    %3383 = vmatpush1.msra.mxu0 0.0
    %3384 = vmatprep.subr.mxu0 0.0
    %3385 = vmatpush1.msra.mxu0 0.0
    %3386 = vmatprep.subr.mxu0 0.0
    %3387 = vmatpush1.msra.mxu0 0.0
    %3388 = vmatprep.subr.mxu0 0.0
    %3389 = vmatpush1.msra.mxu0 0.0
    %3390 = vmatprep.subr.mxu0 0.0
    %3391 = vmatpush1.msra.mxu0 0.0
    %3392 = vmatprep.subr.mxu0 0.0
    %3393 = vmatpush1.msra.mxu0 0.0
    %3394 = vmatprep.subr.mxu0 0.0
    %3395 = vmatpush1.msra.mxu0 0.0
    %3396 = vmatprep.subr.mxu0 0.0
    %3397 = vmatpush1.msra.mxu0 0.0
    %3398 = vmatprep.subr.mxu0 0.0
    %3399 = vmatpush1.msra.mxu0 0.0
    %3400 = vmatprep.subr.mxu0 0.0
    %3401 = vmatpush1.msra.mxu0 0.0
    %3402 = vmatprep.subr.mxu0 0.0
    %3403 = vmatpush1.msra.mxu0 0.0
    %3404 = vmatprep.subr.mxu0 0.0
    %3405 = vmatpush1.msra.mxu0 0.0
    %3406 = vmatprep.subr.mxu0 0.0
    %3407 = vmatpush1.msra.mxu0 0.0
    %3408 = vmatprep.subr.mxu0 0.0
    %3409 = vmatpush1.msra.mxu0 0.0
    %3410 = vmatprep.subr.mxu0 0.0
    %3411 = vmatpush1.msra.mxu0 0.0
    %3412 = vmatprep.subr.mxu0 0.0
    %3413 = vmatpush1.msra.mxu0 0.0
    %3414 = vmatprep.subr.mxu0 0.0
    %3415 = vmatpush1.msra.mxu0 0.0
    %3416 = vmatprep.subr.mxu0 0.0
    %3417 = vmatpush1.msra.mxu0 0.0
    %3418 = vmatprep.subr.mxu0 0.0
    %3419 = vmatpush1.msra.mxu0 0.0
    %3420 = vmatprep.subr.mxu0 0.0
    %3421 = vmatpush1.msra.mxu0 0.0
    %3422 = vmatprep.subr.mxu0 0.0
    %3423 = vmatpush1.msra.mxu0 0.0
    %3424 = vmatprep.subr.mxu0 0.0
    %3425 = vmatpush1.msra.mxu0 0.0
    %3426 = vmatprep.subr.mxu0 0.0
    %3427 = vmatpush1.msra.mxu0 0.0
    %3428 = vmatprep.subr.mxu0 0.0
    %3429 = vmatpush1.msra.mxu0 0.0
    %3430 = vmatprep.mubr.f32.mxu0 0.0
    %3431 = vmatmul.mubr.f32.gmra.mrb[0].mxu0 %v3364
    %v3432 = vpop.f32.mrb[0].mxu0
    %v3433 = vadd.f32 %v3360, %v3432
    %v3434 = vpop.f32.mrb[0].mxu0
    %3435 = vdwg.mxu0
    %v3436 = vmax.f32 %v3433, 0.0
    %v3437 = vld [vmem:[%s10] sm:$0xff]
    %v3438 = vld [vmem:[%s11] sm:$0x1]
    %v3440 = vlaneseq
    %v3441 = vshrl.u32 %v3440, 7
    %v3442 = vsub.s32 0, %v3441
    %v3443 = vrot.slane %v3438, %v3442
    %vm3445 = vcmask 64512
    %v3447 = vsel %vm3445, %v3436, 0
    %3449 = vmatprep.subr.mxu0 0.0
    %3450 = vmatpush1.msra.mxu0 %v3437
    %3451 = vmatprep.subr.mxu0 0.0
    %3452 = vmatpush1.msra.mxu0 0.0
    %3453 = vmatprep.subr.mxu0 0.0
    %3454 = vmatpush1.msra.mxu0 0.0
    %3455 = vmatprep.subr.mxu0 0.0
    %3456 = vmatpush1.msra.mxu0 0.0
    %3457 = vmatprep.subr.mxu0 0.0
    %3458 = vmatpush1.msra.mxu0 0.0
    %3459 = vmatprep.subr.mxu0 0.0
    %3460 = vmatpush1.msra.mxu0 0.0
    %3461 = vmatprep.subr.mxu0 0.0
    %3462 = vmatpush1.msra.mxu0 0.0
    %3463 = vmatprep.subr.mxu0 0.0
    %3464 = vmatpush1.msra.mxu0 0.0
    %3465 = vmatprep.subr.mxu0 0.0
    %3466 = vmatpush1.msra.mxu0 0.0
    %3467 = vmatprep.subr.mxu0 0.0
    %3468 = vmatpush1.msra.mxu0 0.0
    %3469 = vmatprep.subr.mxu0 0.0
    %3470 = vmatpush1.msra.mxu0 0.0
    %3471 = vmatprep.subr.mxu0 0.0
    %3472 = vmatpush1.msra.mxu0 0.0
    %3473 = vmatprep.subr.mxu0 0.0
    %3474 = vmatpush1.msra.mxu0 0.0
    %3475 = vmatprep.subr.mxu0 0.0
    %3476 = vmatpush1.msra.mxu0 0.0
    %3477 = vmatprep.subr.mxu0 0.0
    %3478 = vmatpush1.msra.mxu0 0.0
    %3479 = vmatprep.subr.mxu0 0.0
    %3480 = vmatpush1.msra.mxu0 0.0
    %3481 = vmatprep.subr.mxu0 0.0
    %3482 = vmatpush1.msra.mxu0 0.0
    %3483 = vmatprep.subr.mxu0 0.0
    %3484 = vmatpush1.msra.mxu0 0.0
    %3485 = vmatprep.subr.mxu0 0.0
    %3486 = vmatpush1.msra.mxu0 0.0
    %3487 = vmatprep.subr.mxu0 0.0
    %3488 = vmatpush1.msra.mxu0 0.0
    %3489 = vmatprep.subr.mxu0 0.0
    %3490 = vmatpush1.msra.mxu0 0.0
    %3491 = vmatprep.subr.mxu0 0.0
    %3492 = vmatpush1.msra.mxu0 0.0
    %3493 = vmatprep.subr.mxu0 0.0
    %3494 = vmatpush1.msra.mxu0 0.0
    %3495 = vmatprep.subr.mxu0 0.0
    %3496 = vmatpush1.msra.mxu0 0.0
    %3497 = vmatprep.subr.mxu0 0.0
    %3498 = vmatpush1.msra.mxu0 0.0
    %3499 = vmatprep.subr.mxu0 0.0
    %3500 = vmatpush1.msra.mxu0 0.0
    %3501 = vmatprep.subr.mxu0 0.0
    %3502 = vmatpush1.msra.mxu0 0.0
    %3503 = vmatprep.subr.mxu0 0.0
    %3504 = vmatpush1.msra.mxu0 0.0
    %3505 = vmatprep.subr.mxu0 0.0
    %3506 = vmatpush1.msra.mxu0 0.0
    %3507 = vmatprep.subr.mxu0 0.0
    %3508 = vmatpush1.msra.mxu0 0.0
    %3509 = vmatprep.subr.mxu0 0.0
    %3510 = vmatpush1.msra.mxu0 0.0
    %3511 = vmatprep.subr.mxu0 0.0
    %3512 = vmatpush1.msra.mxu0 0.0
    %3513 = vmatprep.mubr.f32.mxu0 0.0
    %3514 = vmatmul.mubr.f32.gmra.mrb[0].mxu0 %v3447
    %v3515 = vpop.f32.mrb[0].mxu0
    %v3516 = vadd.f32 %v3443, %v3515
    %v3517 = vpop.f32.mrb[0].mxu0
    %3518 = vdwg.mxu0
    %vm3519 = vcmask 15360
    %3520 = vst.msk [vmem:[%s12] sm:$0xff] %vm3519, %v3516
    // Predicated region
    $region62: #{conv_classifier_forward.1} parent=1 // pred_check
      _
    $region63: #{conv_classifier_forward.1} parent=1 // pred_check_branch
      %3522 = sbr.rel (0) target = $region65
    $region64: #{conv_classifier_forward.1} parent=1 // pred_region
      _
    $region65: #{conv_classifier_forward.1} parent=1 // pred_fallthru
      _
    // Predicated region
    $region66: #{conv_classifier_forward.1} parent=1 // pred_check
      _
    $region67: #{conv_classifier_forward.1} parent=1 // pred_check_branch
      %3524 = sbr.rel (0) target = $region69
    $region68: #{conv_classifier_forward.1} parent=1 // pred_region
      _
    $region69: #{conv_classifier_forward.1} parent=1 // pred_fallthru
      _
    %3525 = vsyncpa [#allocation8], 1
    %3526 = vsyncpa [#allocation10], 1

</llo_original>
